<compile_context>
chip_gen: v6e
topology: v6e:2x2x1
jax: 0.10.0
libtpu: 0.0.40
codegen_flags: <defaults>
</compile_context>

<pallas_src>
import functools

import jax
import jax.numpy as jnp
import numpy as np
from jax.experimental import pallas as pl
from jax.experimental.pallas import tpu as pltpu

EPS = 1e-5
CP = 128                         # lane-dense channel padding
VMEM_LIMIT_BYTES = 48 * 1024 * 1024   # headroom under v7x's 64 MiB physical


# ----------------------------------------------------------------------------
# Channel configuration (verbatim port of get_configs)
# ----------------------------------------------------------------------------
def get_configs():
    level_config = {
        'level1': [4, 8, 12, 16],
        'level2': [4, 8, 12, 16, 20, 24, 28, 32],
        'level3': [4, 8, 12, 16, 20, 24, 28, 32, 36, 40, 44, 48, 52, 56, 60, 64],
    }
    model_config = {}
    for i in range(0, 7):
        model_config[i] = level_config['level1']
    for i in range(7, 13):
        model_config[i] = level_config['level2']
    for i in range(13, 20):
        model_config[i] = level_config['level3']
    return level_config, model_config


# ----------------------------------------------------------------------------
# Fused, batch-tiled Pallas kernel with streaming BN
# ----------------------------------------------------------------------------
def _block_kernel(*refs, stride, conv_sc, TN, H1, W1, m_total):
    """grid = (3 phases, T batch tiles); phase is the slow (outer) axis."""
    s = stride
    n_xs = s * s
    xs = refs[:n_xs]
    (w1_ref, w2_ref, g1_ref, b1_ref, g2_ref, b2_ref) = refs[n_xs:n_xs + 6]
    pos = n_xs + 6
    if conv_sc:
        out_hbm, z1_hbm, sc_hbm, z2_hbm = refs[pos:pos + 4]
        pos += 4
        y1p, zst, z2st, scst, ost, st1, bn1, st2, bn2 = refs[pos:]
    else:
        out_hbm, z1_hbm, z2_hbm = refs[pos:pos + 3]
        pos += 3
        y1p, zst, z2st, ost, st1, bn1, st2, bn2 = refs[pos:]
        sc_hbm = scst = None

    ph = pl.program_id(0)
    t = pl.program_id(1)
    TM = TN * H1 * W1
    C1 = 2 * CP if conv_sc else CP
    inv_m = 1.0 / float(m_total)

    # ---------------- phase 0: conv1 (+ fused 1x1 shortcut), BN1 stats -------
    @pl.when(ph == 0)
    def _phase0():
        # 9 shifted taps concatenated along the reduction dim -> one K=1152 dot
        slabs = []
        for kh in range(3):
            for kw in range(3):
                xr = xs[(kh % s) * s + (kw % s)]
                slabs.append(
                    xr[:, kh // s:kh // s + H1, kw // s:kw // s + W1, :]
                    .reshape(TM, CP))
        patches = jnp.concatenate(slabs, axis=-1)                 # (TM,9CP) bf16
        z = jnp.dot(patches, w1_ref[...],
                    preferred_element_type=jnp.float32)           # (TM, C1)

        @pl.when(t == 0)
        def _init_stats1():
            st1[0:1, :] = jnp.mean(z, axis=0, keepdims=True)      # shift
            st1[1:3, :] = jnp.zeros((2, C1), jnp.float32)

        zc = z - st1[0:1, :]                                       # shifted sums
        st1[1:2, :] += jnp.sum(zc, axis=0, keepdims=True)
        st1[2:3, :] += jnp.sum(zc * zc, axis=0, keepdims=True)

        zst[...] = z[:, :CP].astype(jnp.bfloat16)
        pltpu.sync_copy(zst, z1_hbm.at[t])
        if conv_sc:
            scst[...] = z[:, CP:].astype(jnp.bfloat16)
            pltpu.sync_copy(scst, sc_hbm.at[t])

    # ---------------- phase 1: BN1 + ReLU + conv2, BN2 stats -----------------
    @pl.when(ph == 1)
    def _phase1():
        @pl.when(t == 0)
        def _finalize_bn1():
            mean = st1[0:1, :] + st1[1:2, :] * inv_m
            var = jnp.maximum(st1[2:3, :] * inv_m
                              - (st1[1:2, :] * inv_m) ** 2, 0.0)
            a = g1_ref[...] * jax.lax.rsqrt(var + EPS)
            bn1[0:1, :] = a
            bn1[1:2, :] = b1_ref[...] - a * mean
            st2[1:3, :] = jnp.zeros((2, CP), jnp.float32)
            y1p[...] = jnp.zeros_like(y1p)     # halo only needs zeroing once

        pltpu.sync_copy(z1_hbm.at[t], zst)
        z1 = zst[...].astype(jnp.float32)
        y1 = jnp.maximum(z1 * bn1[0:1, :CP] + bn1[1:2, :CP], 0.0)
        y1p[:, 1:H1 + 1, 1:W1 + 1, :] = (
            y1.astype(jnp.bfloat16).reshape(TN, H1, W1, CP))

        slabs = [y1p[:, kh:kh + H1, kw:kw + W1, :].reshape(TM, CP)
                 for kh in range(3) for kw in range(3)]
        patches = jnp.concatenate(slabs, axis=-1)                 # (TM,9CP) bf16
        z2 = jnp.dot(patches, w2_ref[...],
                     preferred_element_type=jnp.float32)          # (TM, CP)

        @pl.when(t == 0)
        def _init_stats2():
            st2[0:1, :] = jnp.mean(z2, axis=0, keepdims=True)

        z2c = z2 - st2[0:1, :]
        st2[1:2, :] += jnp.sum(z2c, axis=0, keepdims=True)
        st2[2:3, :] += jnp.sum(z2c * z2c, axis=0, keepdims=True)

        z2st[...] = z2.astype(jnp.bfloat16)
        pltpu.sync_copy(z2st, z2_hbm.at[t])

    # ---------------- phase 2: BN2 + shortcut add + ReLU, write output -------
    @pl.when(ph == 2)
    def _phase2():
        @pl.when(t == 0)
        def _finalize_bn2():
            mean = st2[0:1, :] + st2[1:2, :] * inv_m
            var = jnp.maximum(st2[2:3, :] * inv_m
                              - (st2[1:2, :] * inv_m) ** 2, 0.0)
            a = g2_ref[...] * jax.lax.rsqrt(var + EPS)
            bn2[0:1, :] = a
            bn2[1:2, :] = b2_ref[...] - a * mean

        pltpu.sync_copy(z2_hbm.at[t], zst)
        y2 = zst[...].astype(jnp.float32) * bn2[0:1, :] + bn2[1:2, :]

        if conv_sc:
            pltpu.sync_copy(sc_hbm.at[t], scst)
            sc = scst[...].astype(jnp.float32) * bn1[0:1, CP:] + bn1[1:2, CP:]
        else:
            # identity residual straight from the resident input tile
            sc = xs[0][:, 1:H1 + 1, 1:W1 + 1, :].reshape(TM, CP).astype(jnp.float32)

        ost[...] = (jnp.maximum(y2 + sc, 0.0)
                    .astype(jnp.bfloat16).reshape(TN, H1, W1, CP))
        pltpu.sync_copy(ost, out_hbm.at[t])


def _auto_tile_n(N, H1, W1, conv_sc, budget_bytes):
    c1 = 2 * CP if conv_sc else CP
    # dominant per-image VMEM: patch slab (bf16) + conv out (f32) + staging /
    # padded-y1 / output buffers (bf16) + input tile double-buffering.
    per_img = H1 * W1 * (9 * CP * 2 + c1 * 4 + 12 * CP * 2)
    tn = int(max(1, min(N, budget_bytes // max(per_img, 1))))
    while N % tn:
        tn -= 1
    return tn


def _fused_block(xs, w1f, w2f, g1f, b1f, g2f, b2f,
                 *, stride, conv_sc, N, H1, W1, tile_n):
    assert N % tile_n == 0
    TN = tile_n
    T = N // TN
    TM = TN * H1 * W1
    C1 = 2 * CP if conv_sc else CP
    n_xs = stride * stride
    hs, ws = xs[0].shape[1], xs[0].shape[2]

    # Input tile only needs re-fetching in the phases that actually read it.
    if conv_sc:
        x_idx = lambda ph, t: (jnp.where(ph == 0, t, 0), 0, 0, 0)
    else:
        x_idx = lambda ph, t: (jnp.where(ph == 1, 0, t), 0, 0, 0)

    in_specs = [pl.BlockSpec((TN, hs, ws, CP), x_idx) for _ in range(n_xs)]
    in_specs += [
        pl.BlockSpec((9 * CP, C1), lambda ph, t: (0, 0)),   # w1 (+shortcut)
        pl.BlockSpec((9 * CP, CP), lambda ph, t: (0, 0)),   # w2
        pl.BlockSpec((1, C1), lambda ph, t: (0, 0)),        # gamma1 (+sc)
        pl.BlockSpec((1, C1), lambda ph, t: (0, 0)),        # beta1  (+sc)
        pl.BlockSpec((1, CP), lambda ph, t: (0, 0)),        # gamma2
        pl.BlockSpec((1, CP), lambda ph, t: (0, 0)),        # beta2
    ]

    out_shapes = [jax.ShapeDtypeStruct((T, TN, H1, W1, CP), jnp.bfloat16),  # out
                  jax.ShapeDtypeStruct((T, TM, CP), jnp.bfloat16)]          # z1
    if conv_sc:
        out_shapes.append(jax.ShapeDtypeStruct((T, TM, CP), jnp.bfloat16))  # sc
    out_shapes.append(jax.ShapeDtypeStruct((T, TM, CP), jnp.bfloat16))      # z2
    out_specs = [pl.BlockSpec(memory_space=pl.ANY) for _ in out_shapes]

    scratch = [
        pltpu.VMEM((TN, H1 + 2, W1 + 2, CP), jnp.bfloat16),  # y1 (spatial pad)
        pltpu.VMEM((TM, CP), jnp.bfloat16),                  # z staging
        pltpu.VMEM((TM, CP), jnp.bfloat16),                  # z2 staging
    ]
    if conv_sc:
        scratch.append(pltpu.VMEM((TM, CP), jnp.bfloat16))   # shortcut staging
    scratch += [
        pltpu.VMEM((TN, H1, W1, CP), jnp.bfloat16),          # output staging
        pltpu.VMEM((3, C1), jnp.float32),                    # BN1 shift/sum/sumsq
        pltpu.VMEM((2, C1), jnp.float32),                    # BN1 scale/shift
        pltpu.VMEM((3, CP), jnp.float32),                    # BN2 shift/sum/sumsq
        pltpu.VMEM((2, CP), jnp.float32),                    # BN2 scale/shift
    ]

    kernel = functools.partial(_block_kernel, stride=stride, conv_sc=conv_sc,
                               TN=TN, H1=H1, W1=W1, m_total=N * H1 * W1)

    outs = pl.pallas_call(
        kernel,
        out_shape=out_shapes,
        grid=(3, T),
        in_specs=in_specs,
        out_specs=out_specs,
        scratch_shapes=scratch,
        compiler_params=pltpu.CompilerParams(
            dimension_semantics=("arbitrary", "arbitrary"),
            vmem_limit_bytes=VMEM_LIMIT_BYTES),
    )(*xs, w1f, w2f, g1f, b1f, g2f, b2f)
    return outs[0]


# ----------------------------------------------------------------------------
# One-time weight re-layout / padding / bf16 casts (hoisted off the hot path)
# ----------------------------------------------------------------------------
def prepare_block_params(params, c_in, H, stride):
    c_mid = params['w1'].shape[0]
    c_out = params['w2'].shape[0]
    H1 = (H - 1) // stride + 1
    conv_sc = (c_out != c_in) or (H1 != H)
    C1 = 2 * CP if conv_sc else CP

    # rows ordered tap-major (kh,kw), each tap padded to CP input channels.
    w1t = jnp.transpose(params['w1'], (2, 3, 1, 0)).reshape(9, c_in, c_mid)
    w1f = jnp.zeros((9, CP, C1), jnp.float32).at[:, :c_in, :c_mid].set(w1t)
    if conv_sc:
        # 1x1 stride-s shortcut conv == center tap (kh=kw=1) of the 3x3 taps.
        wsc = params['wsc'][:, :, 0, 0].T                       # (c_in, c_out)
        w1f = w1f.at[4, :c_in, CP:CP + c_out].set(wsc)
    w1f = w1f.reshape(9 * CP, C1).astype(jnp.bfloat16)

    w2t = jnp.transpose(params['w2'], (2, 3, 1, 0)).reshape(9, c_mid, c_out)
    w2f = (jnp.zeros((9, CP, CP), jnp.float32).at[:, :c_mid, :c_out].set(w2t)
           .reshape(9 * CP, CP).astype(jnp.bfloat16))

    g1f = jnp.zeros((1, C1), jnp.float32).at[0, :c_mid].set(params['g1'])
    b1f = jnp.zeros((1, C1), jnp.float32).at[0, :c_mid].set(params['b1'])
    if conv_sc:
        g1f = g1f.at[0, CP:CP + c_out].set(params['gsc'])
        b1f = b1f.at[0, CP:CP + c_out].set(params['bsc'])
    g2f = jnp.zeros((1, CP), jnp.float32).at[0, :c_out].set(params['g2'])
    b2f = jnp.zeros((1, CP), jnp.float32).at[0, :c_out].set(params['b2'])

    return {'w1f': w1f, 'w2f': w2f, 'g1f': g1f, 'b1f': b1f,
            'g2f': g2f, 'b2f': b2f}


# ----------------------------------------------------------------------------
# Forward wrapper (PyTorch-shaped NCHW in / NCHW out for the test; in a real
# multi-block network the padded (N,H,W,128) bf16 NHWC layout produced by the
# kernel would be carried between blocks and these transposes would disappear)
# ----------------------------------------------------------------------------
@functools.partial(jax.jit, static_argnames=("stride", "c_out", "tile_n"))
def mutable_block_forward(x_nchw, prep, *, stride, c_out, tile_n=None):
    assert stride in (1, 2)
    x = jnp.transpose(x_nchw, (0, 2, 3, 1))                   # NHWC
    N, H, W, c_in = x.shape
    if stride == 2:
        assert H % 2 == 0 and W % 2 == 0
    H1 = (H - 1) // stride + 1
    W1 = (W - 1) // stride + 1
    conv_sc = (c_out != c_in) or (H1 != H)

    # channel-pad to 128, spatial pad 1, bf16 (one-time layout op)
    xp = jnp.zeros((N, H + 2, W + 2, CP), jnp.bfloat16)
    xp = xp.at[:, 1:H + 1, 1:W + 1, :c_in].set(x.astype(jnp.bfloat16))
    if stride == 1:
        xs = [xp]
    else:
        # space-to-depth: stride**2 shifted views, same total bytes, so the
        # kernel only ever takes contiguous slices.
        xs = [xp[:, p::stride, q::stride, :][:, :H1 + 1, :W1 + 1, :]
              for p in range(stride) for q in range(stride)]

    if tile_n is None:
        tile_n = _auto_tile_n(N, H1, W1, conv_sc, VMEM_LIMIT_BYTES // 2)

    out = _fused_block(xs, prep['w1f'], prep['w2f'], prep['g1f'], prep['b1f'],
                       prep['g2f'], prep['b2f'], stride=stride,
                       conv_sc=conv_sc, N=N, H1=H1, W1=W1, tile_n=tile_n)
    out = out.reshape(N, H1, W1, CP)[:, :, :, :c_out].astype(jnp.float32)
    return jnp.transpose(out, (0, 3, 1, 2))                   # back to NCHW


# ----------------------------------------------------------------------------
# Deterministic parameter construction (PyTorch-shaped, max channel choices)
# ----------------------------------------------------------------------------
def make_params(key, idx_list):
    _, mc = get_configs()
    c_in = max(mc[idx_list[0]])
    c_mid = max(mc[idx_list[0] + 1])
    c_out = max(mc[idx_list[1] + 1])

    def conv_w(k, cout, cin, ks):
        bound = 1.0 / np.sqrt(cin * ks * ks)
        return jax.random.uniform(k, (cout, cin, ks, ks), jnp.float32,
                                  -bound, bound)

    k1, k2, k3 = jax.random.split(key, 3)
    params = {
        'w1': conv_w(k1, c_mid, c_in, 3),
        'g1': jnp.ones((c_mid,), jnp.float32),
        'b1': jnp.zeros((c_mid,), jnp.float32),
        'w2': conv_w(k2, c_out, c_mid, 3),
        'g2': jnp.ones((c_out,), jnp.float32),
        'b2': jnp.zeros((c_out,), jnp.float32),
        'wsc': conv_w(k3, c_out, c_in, 1),
        'gsc': jnp.ones((c_out,), jnp.float32),
        'bsc': jnp.zeros((c_out,), jnp.float32),
    }
    return params, (c_in, c_mid, c_out)


# ----------------------------------------------------------------------------
# Pure-JAX reference (lax.conv, f32) for validation
# ----------------------------------------------------------------------------
def reference_forward(x_nchw, params, stride):
    def conv(x, w, s, pad):
        return jax.lax.conv_general_dilated(
            x, w, (s, s), [(pad, pad), (pad, pad)],
            dimension_numbers=('NCHW', 'OIHW', 'NCHW'))

    def bn(y, g, b):
        mean = jnp.mean(y, axis=(0, 2, 3), keepdims=True)
        var = jnp.mean((y - mean) ** 2, axis=(0, 2, 3), keepdims=True)
        yn = (y - mean) * jax.lax.rsqrt(var + EPS)
        return yn * g.reshape(1, -1, 1, 1) + b.reshape(1, -1, 1, 1)

    y = jnp.maximum(bn(conv(x_nchw, params['w1'], stride, 1),
                       params['g1'], params['b1']), 0.0)
    y = bn(conv(y, params['w2'], 1, 1), params['g2'], params['b2'])
    if y.shape[1] != x_nchw.shape[1] or y.shape[2] != x_nchw.shape[2]:
        sc = bn(conv(x_nchw, params['wsc'], stride, 0),
                params['gsc'], params['bsc'])
    else:
        sc = x_nchw
    return jnp.maximum(y + sc, 0.0)


# ----------------------------------------------------------------------------
if __name__ == "__main__":
    key = jax.random.PRNGKey(0)
    k_x1, k_p1, k_x2, k_p2 = jax.random.split(key, 4)

    # Case 1: level-1 block, stride 1 -> identity shortcut.
    # tile_n=1 forces two batch tiles so the streaming-BN path is exercised.
    params1, (cin1, _, cout1) = make_params(k_p1, idx_list=[1, 2])
    x1 = jax.random.normal(k_x1, (2, cin1, 8, 8), jnp.float32)       # (2,16,8,8)
    prep1 = prepare_block_params(params1, cin1, H=8, stride=1)
    out1 = jax.block_until_ready(
        mutable_block_forward(x1, prep1, stride=1, c_out=cout1, tile_n=1))
    ref1 = reference_forward(x1, params1, 1)
    assert out1.shape == (2, cout1, 8, 8)
    np.testing.assert_allclose(np.asarray(out1), np.asarray(ref1),
                               rtol=6e-2, atol=6e-2)   # bf16 MXU + bf16 staging

    # Case 2: level-1 -> level-2 transition, stride 2 -> conv1x1+BN shortcut,
    # auto tile_n (single tile).
    params2, (cin2, _, cout2) = make_params(k_p2, idx_list=[6, 7])
    x2 = jax.random.normal(k_x2, (2, cin2, 16, 16), jnp.float32)     # (2,16,16,16)
    prep2 = prepare_block_params(params2, cin2, H=16, stride=2)
    out2 = jax.block_until_ready(
        mutable_block_forward(x2, prep2, stride=2, c_out=cout2))
    ref2 = reference_forward(x2, params2, 2)
    assert out2.shape == (2, cout2, 8, 8)
    np.testing.assert_allclose(np.asarray(out2), np.asarray(ref2),
                               rtol=6e-2, atol=6e-2)

    print("KERNEL_OK")
</pallas_src>

<mosaic_0001>
module attributes {stable_mosaic.version = 11 : i64} {
  func.func @_block_kernel(%arg0: i32, %arg1: i32, %arg2: memref<1x10x10x128xbf16, #tpu.memory_space<vmem>>, %arg3: memref<1152x128xbf16, #tpu.memory_space<vmem>>, %arg4: memref<1152x128xbf16, #tpu.memory_space<vmem>>, %arg5: memref<1x128xf32, #tpu.memory_space<vmem>>, %arg6: memref<1x128xf32, #tpu.memory_space<vmem>>, %arg7: memref<1x128xf32, #tpu.memory_space<vmem>>, %arg8: memref<1x128xf32, #tpu.memory_space<vmem>>, %arg9: memref<2x1x8x8x128xbf16, #tpu.memory_space<any>>, %arg10: memref<2x64x128xbf16, #tpu.memory_space<any>>, %arg11: memref<2x64x128xbf16, #tpu.memory_space<any>>, %arg12: memref<1x10x10x128xbf16, #tpu.memory_space<vmem>>, %arg13: memref<64x128xbf16, #tpu.memory_space<vmem>>, %arg14: memref<64x128xbf16, #tpu.memory_space<vmem>>, %arg15: memref<1x8x8x128xbf16, #tpu.memory_space<vmem>>, %arg16: memref<3x128xf32, #tpu.memory_space<vmem>>, %arg17: memref<2x128xf32, #tpu.memory_space<vmem>>, %arg18: memref<3x128xf32, #tpu.memory_space<vmem>>, %arg19: memref<2x128xf32, #tpu.memory_space<vmem>>) attributes {dimension_semantics = [#tpu.dimension_semantics<arbitrary>, #tpu.dimension_semantics<arbitrary>], iteration_bounds = array<i64: 3, 2>, scalar_prefetch = 0 : i64, scratch_operands = 8 : i64, tpu.core_type = #tpu.core_type<tc>, window_params = [{transform_indices = @transform_0, window_bounds = array<i64: 1, 10, 10, 128>}, {pipeline_mode = #tpu.pipeline_mode<synchronous>, transform_indices = @transform_1, window_bounds = array<i64: 1152, 128>}, {pipeline_mode = #tpu.pipeline_mode<synchronous>, transform_indices = @transform_2, window_bounds = array<i64: 1152, 128>}, {pipeline_mode = #tpu.pipeline_mode<synchronous>, transform_indices = @transform_3, window_bounds = array<i64: 1, 128>}, {pipeline_mode = #tpu.pipeline_mode<synchronous>, transform_indices = @transform_4, window_bounds = array<i64: 1, 128>}, {pipeline_mode = #tpu.pipeline_mode<synchronous>, transform_indices = @transform_5, window_bounds = array<i64: 1, 128>}, {pipeline_mode = #tpu.pipeline_mode<synchronous>, transform_indices = @transform_6, window_bounds = array<i64: 1, 128>}, {}, {}, {}]} {
    %c0_i32 = arith.constant 0 : i32
    %0 = arith.cmpi eq, %arg0, %c0_i32 : i32
    %1 = arith.extui %0 : i1 to i32
    %c0_i32_0 = arith.constant 0 : i32
    %2 = arith.cmpi ne, %1, %c0_i32_0 : i32
    scf.if %2 {
      %c0 = arith.constant 0 : index
      %c0_3 = arith.constant 0 : index
      %c0_4 = arith.constant 0 : index
      %c0_5 = arith.constant 0 : index
      %9 = vector.load %arg2[%c0, %c0_3, %c0_4, %c0_5] : memref<1x10x10x128xbf16, #tpu.memory_space<vmem>>, vector<1x8x8x128xbf16>
      %10 = vector.shape_cast %9 : vector<1x8x8x128xbf16> to vector<64x128xbf16>
      %c0_6 = arith.constant 0 : index
      %c0_7 = arith.constant 0 : index
      %c1 = arith.constant 1 : index
      %c0_8 = arith.constant 0 : index
      %11 = vector.load %arg2[%c0_6, %c0_7, %c1, %c0_8] : memref<1x10x10x128xbf16, #tpu.memory_space<vmem>>, vector<1x8x8x128xbf16>
      %12 = vector.shape_cast %11 : vector<1x8x8x128xbf16> to vector<64x128xbf16>
      %c0_9 = arith.constant 0 : index
      %c0_10 = arith.constant 0 : index
      %c2 = arith.constant 2 : index
      %c0_11 = arith.constant 0 : index
      %13 = vector.load %arg2[%c0_9, %c0_10, %c2, %c0_11] : memref<1x10x10x128xbf16, #tpu.memory_space<vmem>>, vector<1x8x8x128xbf16>
      %14 = vector.shape_cast %13 : vector<1x8x8x128xbf16> to vector<64x128xbf16>
      %c0_12 = arith.constant 0 : index
      %c1_13 = arith.constant 1 : index
      %c0_14 = arith.constant 0 : index
      %c0_15 = arith.constant 0 : index
      %15 = vector.load %arg2[%c0_12, %c1_13, %c0_14, %c0_15] : memref<1x10x10x128xbf16, #tpu.memory_space<vmem>>, vector<1x8x8x128xbf16>
      %16 = vector.shape_cast %15 : vector<1x8x8x128xbf16> to vector<64x128xbf16>
      %c0_16 = arith.constant 0 : index
      %c1_17 = arith.constant 1 : index
      %c1_18 = arith.constant 1 : index
      %c0_19 = arith.constant 0 : index
      %17 = vector.load %arg2[%c0_16, %c1_17, %c1_18, %c0_19] : memref<1x10x10x128xbf16, #tpu.memory_space<vmem>>, vector<1x8x8x128xbf16>
      %18 = vector.shape_cast %17 : vector<1x8x8x128xbf16> to vector<64x128xbf16>
      %c0_20 = arith.constant 0 : index
      %c1_21 = arith.constant 1 : index
      %c2_22 = arith.constant 2 : index
      %c0_23 = arith.constant 0 : index
      %19 = vector.load %arg2[%c0_20, %c1_21, %c2_22, %c0_23] : memref<1x10x10x128xbf16, #tpu.memory_space<vmem>>, vector<1x8x8x128xbf16>
      %20 = vector.shape_cast %19 : vector<1x8x8x128xbf16> to vector<64x128xbf16>
      %c0_24 = arith.constant 0 : index
      %c2_25 = arith.constant 2 : index
      %c0_26 = arith.constant 0 : index
      %c0_27 = arith.constant 0 : index
      %21 = vector.load %arg2[%c0_24, %c2_25, %c0_26, %c0_27] : memref<1x10x10x128xbf16, #tpu.memory_space<vmem>>, vector<1x8x8x128xbf16>
      %22 = vector.shape_cast %21 : vector<1x8x8x128xbf16> to vector<64x128xbf16>
      %c0_28 = arith.constant 0 : index
      %c2_29 = arith.constant 2 : index
      %c1_30 = arith.constant 1 : index
      %c0_31 = arith.constant 0 : index
      %23 = vector.load %arg2[%c0_28, %c2_29, %c1_30, %c0_31] : memref<1x10x10x128xbf16, #tpu.memory_space<vmem>>, vector<1x8x8x128xbf16>
      %24 = vector.shape_cast %23 : vector<1x8x8x128xbf16> to vector<64x128xbf16>
      %c0_32 = arith.constant 0 : index
      %c2_33 = arith.constant 2 : index
      %c2_34 = arith.constant 2 : index
      %c0_35 = arith.constant 0 : index
      %25 = vector.load %arg2[%c0_32, %c2_33, %c2_34, %c0_35] : memref<1x10x10x128xbf16, #tpu.memory_space<vmem>>, vector<1x8x8x128xbf16>
      %26 = vector.shape_cast %25 : vector<1x8x8x128xbf16> to vector<64x128xbf16>
      %27 = tpu.concatenate %10, %12, %14, %16, %18, %20, %22, %24, %26 in 1 : vector<64x128xbf16>, vector<64x128xbf16>, vector<64x128xbf16>, vector<64x128xbf16>, vector<64x128xbf16>, vector<64x128xbf16>, vector<64x128xbf16>, vector<64x128xbf16>, vector<64x128xbf16> -> vector<64x1152xbf16>
      %c0_36 = arith.constant 0 : index
      %c0_37 = arith.constant 0 : index
      %28 = vector.load %arg3[%c0_36, %c0_37] : memref<1152x128xbf16, #tpu.memory_space<vmem>>, vector<1152x128xbf16>
      %cst = arith.constant dense<0.000000e+00> : vector<64x128xf32>
      %29 = tpu.matmul %27, %28, %cst {dimension_numbers = #tpu.dot_dimension_numbers<[1], [0], [0], [1], [0, 0, 1, 1], [], []>} : vector<64x1152xbf16>, vector<1152x128xbf16>, vector<64x128xf32> -> vector<64x128xf32>
      %c0_i32_38 = arith.constant 0 : i32
      %30 = arith.cmpi eq, %arg1, %c0_i32_38 : i32
      %31 = arith.extui %30 : i1 to i32
      %c0_i32_39 = arith.constant 0 : i32
      %32 = arith.cmpi ne, %31, %c0_i32_39 : i32
      scf.if %32 {
        %cst_54 = arith.constant dense<0.000000e+00> : vector<128xf32>
        %49 = vector.multi_reduction <add>, %29, %cst_54 [0] : vector<64x128xf32> to vector<128xf32>
        %50 = vector.shape_cast %49 : vector<128xf32> to vector<1x128xf32>
        %cst_55 = arith.constant 6.400000e+01 : f32
        %51 = vector.broadcast %cst_55 : f32 to vector<1x128xf32>
        %52 = arith.divf %50, %51 : vector<1x128xf32>
        %c0_56 = arith.constant 0 : index
        %c0_57 = arith.constant 0 : index
        %53 = vector.load %arg16[%c0_56, %c0_57] : memref<3x128xf32, #tpu.memory_space<vmem>>, vector<1x128xf32>
        tpu.vector_store %arg16[%c0_56, %c0_57], %52 {strides = array<i32>} : memref<3x128xf32, #tpu.memory_space<vmem>>, vector<1x128xf32>,
        %cst_58 = arith.constant 0.000000e+00 : f32
        %54 = vector.broadcast %cst_58 : f32 to vector<2x128xf32>
        %c1_59 = arith.constant 1 : index
        %c0_60 = arith.constant 0 : index
        %55 = vector.load %arg16[%c1_59, %c0_60] : memref<3x128xf32, #tpu.memory_space<vmem>>, vector<2x128xf32>
        tpu.vector_store %arg16[%c1_59, %c0_60], %54 {strides = array<i32>} : memref<3x128xf32, #tpu.memory_space<vmem>>, vector<2x128xf32>,
      } else {
      }
      %c0_40 = arith.constant 0 : index
      %c0_41 = arith.constant 0 : index
      %33 = vector.load %arg16[%c0_40, %c0_41] : memref<3x128xf32, #tpu.memory_space<vmem>>, vector<1x128xf32>
      %34 = vector.broadcast %33 : vector<1x128xf32> to vector<64x128xf32>
      %35 = arith.subf %29, %34 : vector<64x128xf32>
      %c1_42 = arith.constant 1 : index
      %c0_43 = arith.constant 0 : index
      %36 = vector.load %arg16[%c1_42, %c0_43] : memref<3x128xf32, #tpu.memory_space<vmem>>, vector<1x128xf32>
      %cst_44 = arith.constant dense<0.000000e+00> : vector<128xf32>
      %37 = vector.multi_reduction <add>, %35, %cst_44 [0] : vector<64x128xf32> to vector<128xf32>
      %38 = vector.shape_cast %37 : vector<128xf32> to vector<1x128xf32>
      %39 = arith.addf %36, %38 : vector<1x128xf32>
      %c1_45 = arith.constant 1 : index
      %c0_46 = arith.constant 0 : index
      %40 = vector.load %arg16[%c1_45, %c0_46] : memref<3x128xf32, #tpu.memory_space<vmem>>, vector<1x128xf32>
      tpu.vector_store %arg16[%c1_45, %c0_46], %39 {strides = array<i32>} : memref<3x128xf32, #tpu.memory_space<vmem>>, vector<1x128xf32>,
      %c2_47 = arith.constant 2 : index
      %c0_48 = arith.constant 0 : index
      %41 = vector.load %arg16[%c2_47, %c0_48] : memref<3x128xf32, #tpu.memory_space<vmem>>, vector<1x128xf32>
      %42 = arith.mulf %35, %35 : vector<64x128xf32>
      %cst_49 = arith.constant dense<0.000000e+00> : vector<128xf32>
      %43 = vector.multi_reduction <add>, %42, %cst_49 [0] : vector<64x128xf32> to vector<128xf32>
      %44 = vector.shape_cast %43 : vector<128xf32> to vector<1x128xf32>
      %45 = arith.addf %41, %44 : vector<1x128xf32>
      %c2_50 = arith.constant 2 : index
      %c0_51 = arith.constant 0 : index
      %46 = vector.load %arg16[%c2_50, %c0_51] : memref<3x128xf32, #tpu.memory_space<vmem>>, vector<1x128xf32>
      tpu.vector_store %arg16[%c2_50, %c0_51], %45 {strides = array<i32>} : memref<3x128xf32, #tpu.memory_space<vmem>>, vector<1x128xf32>,
      %47 = arith.truncf %29 : vector<64x128xf32> to vector<64x128xbf16>
      %c0_52 = arith.constant 0 : index
      %c0_53 = arith.constant 0 : index
      %48 = vector.load %arg13[%c0_52, %c0_53] : memref<64x128xbf16, #tpu.memory_space<vmem>>, vector<64x128xbf16>
      tpu.vector_store %arg13[%c0_52, %c0_53], %47 {strides = array<i32>} : memref<64x128xbf16, #tpu.memory_space<vmem>>, vector<64x128xbf16>,
      "tpu.region"() ({
        %49 = tpu.sem_alloc : memref<!tpu.dma_semaphore, #tpu.memory_space<semaphore_mem>>
        %c0_i32_54 = arith.constant 0 : i32
        %c0_i32_55 = arith.constant 0 : i32
        %50 = tpu.memref_slice %arg10[%arg1, %c0_i32_54, %c0_i32_55] : memref<2x64x128xbf16, #tpu.memory_space<any>> -> memref<1x64x128xbf16, #tpu.memory_space<any>>
        %51 = tpu.memref_squeeze %50 : memref<1x64x128xbf16, #tpu.memory_space<any>> -> memref<64x128xbf16, #tpu.memory_space<any>>
        tpu.enqueue_dma source(%arg13 : memref<64x128xbf16, #tpu.memory_space<vmem>>) target(%51 : memref<64x128xbf16, #tpu.memory_space<any>>) target_semaphore(%49 : memref<!tpu.dma_semaphore, #tpu.memory_space<semaphore_mem>>)
        %c0_i32_56 = arith.constant 0 : i32
        %c0_i32_57 = arith.constant 0 : i32
        %52 = tpu.memref_slice %arg10[%arg1, %c0_i32_56, %c0_i32_57] : memref<2x64x128xbf16, #tpu.memory_space<any>> -> memref<1x64x128xbf16, #tpu.memory_space<any>>
        %53 = tpu.memref_squeeze %52 : memref<1x64x128xbf16, #tpu.memory_space<any>> -> memref<64x128xbf16, #tpu.memory_space<any>>
        tpu.wait_dma2 semaphore(%49 : memref<!tpu.dma_semaphore, #tpu.memory_space<semaphore_mem>>) src(%arg13 : memref<64x128xbf16, #tpu.memory_space<vmem>>) dst(%53 : memref<64x128xbf16, #tpu.memory_space<any>>)
        tpu.yield
      }) : () -> ()
    } else {
    }
    %c1_i32 = arith.constant 1 : i32
    %3 = arith.cmpi eq, %arg0, %c1_i32 : i32
    %4 = arith.extui %3 : i1 to i32
    %c0_i32_1 = arith.constant 0 : i32
    %5 = arith.cmpi ne, %4, %c0_i32_1 : i32
    scf.if %5 {
      %c0_i32_3 = arith.constant 0 : i32
      %9 = arith.cmpi eq, %arg1, %c0_i32_3 : i32
      %10 = arith.extui %9 : i1 to i32
      %c0_i32_4 = arith.constant 0 : i32
      %11 = arith.cmpi ne, %10, %c0_i32_4 : i32
      scf.if %11 {
        %c0_67 = arith.constant 0 : index
        %c0_68 = arith.constant 0 : index
        %65 = vector.load %arg16[%c0_67, %c0_68] : memref<3x128xf32, #tpu.memory_space<vmem>>, vector<1x128xf32>
        %c1_69 = arith.constant 1 : index
        %c0_70 = arith.constant 0 : index
        %66 = vector.load %arg16[%c1_69, %c0_70] : memref<3x128xf32, #tpu.memory_space<vmem>>, vector<1x128xf32>
        %cst_71 = arith.constant 7.812500e-03 : f32
        %67 = vector.broadcast %cst_71 : f32 to vector<1x128xf32>
        %68 = arith.mulf %66, %67 : vector<1x128xf32>
        %69 = arith.addf %65, %68 : vector<1x128xf32>
        %c2_72 = arith.constant 2 : index
        %c0_73 = arith.constant 0 : index
        %70 = vector.load %arg16[%c2_72, %c0_73] : memref<3x128xf32, #tpu.memory_space<vmem>>, vector<1x128xf32>
        %cst_74 = arith.constant 7.812500e-03 : f32
        %71 = vector.broadcast %cst_74 : f32 to vector<1x128xf32>
        %72 = arith.mulf %70, %71 : vector<1x128xf32>
        %c1_75 = arith.constant 1 : index
        %c0_76 = arith.constant 0 : index
        %73 = vector.load %arg16[%c1_75, %c0_76] : memref<3x128xf32, #tpu.memory_space<vmem>>, vector<1x128xf32>
        %cst_77 = arith.constant 7.812500e-03 : f32
        %74 = vector.broadcast %cst_77 : f32 to vector<1x128xf32>
        %75 = arith.mulf %73, %74 : vector<1x128xf32>
        %76 = arith.mulf %75, %75 : vector<1x128xf32>
        %77 = arith.subf %72, %76 : vector<1x128xf32>
        %cst_78 = arith.constant 0.000000e+00 : f32
        %78 = vector.broadcast %cst_78 : f32 to vector<1x128xf32>
        %79 = arith.maximumf %77, %78 : vector<1x128xf32>
        %c0_79 = arith.constant 0 : index
        %c0_80 = arith.constant 0 : index
        %80 = vector.load %arg5[%c0_79, %c0_80] : memref<1x128xf32, #tpu.memory_space<vmem>>, vector<1x128xf32>
        %cst_81 = arith.constant 9.99999974E-6 : f32
        %81 = vector.broadcast %cst_81 : f32 to vector<1x128xf32>
        %82 = arith.addf %79, %81 : vector<1x128xf32>
        %83 = math.rsqrt %82 : vector<1x128xf32>
        %84 = arith.mulf %80, %83 : vector<1x128xf32>
        %c0_82 = arith.constant 0 : index
        %c0_83 = arith.constant 0 : index
        %85 = vector.load %arg17[%c0_82, %c0_83] : memref<2x128xf32, #tpu.memory_space<vmem>>, vector<1x128xf32>
        tpu.vector_store %arg17[%c0_82, %c0_83], %84 {strides = array<i32>} : memref<2x128xf32, #tpu.memory_space<vmem>>, vector<1x128xf32>,
        %c0_84 = arith.constant 0 : index
        %c0_85 = arith.constant 0 : index
        %86 = vector.load %arg6[%c0_84, %c0_85] : memref<1x128xf32, #tpu.memory_space<vmem>>, vector<1x128xf32>
        %87 = arith.mulf %84, %69 : vector<1x128xf32>
        %88 = arith.subf %86, %87 : vector<1x128xf32>
        %c1_86 = arith.constant 1 : index
        %c0_87 = arith.constant 0 : index
        %89 = vector.load %arg17[%c1_86, %c0_87] : memref<2x128xf32, #tpu.memory_space<vmem>>, vector<1x128xf32>
        tpu.vector_store %arg17[%c1_86, %c0_87], %88 {strides = array<i32>} : memref<2x128xf32, #tpu.memory_space<vmem>>, vector<1x128xf32>,
        %cst_88 = arith.constant 0.000000e+00 : f32
        %90 = vector.broadcast %cst_88 : f32 to vector<2x128xf32>
        %c1_89 = arith.constant 1 : index
        %c0_90 = arith.constant 0 : index
        %91 = vector.load %arg18[%c1_89, %c0_90] : memref<3x128xf32, #tpu.memory_space<vmem>>, vector<2x128xf32>
        tpu.vector_store %arg18[%c1_89, %c0_90], %90 {strides = array<i32>} : memref<3x128xf32, #tpu.memory_space<vmem>>, vector<2x128xf32>,
        %cst_91 = arith.constant 0.000000e+00 : bf16
        %92 = vector.broadcast %cst_91 : bf16 to vector<1x10x10x128xbf16>
        %c0_92 = arith.constant 0 : index
        %c0_93 = arith.constant 0 : index
        %c0_94 = arith.constant 0 : index
        %c0_95 = arith.constant 0 : index
        %93 = vector.load %arg12[%c0_92, %c0_93, %c0_94, %c0_95] : memref<1x10x10x128xbf16, #tpu.memory_space<vmem>>, vector<1x10x10x128xbf16>
        tpu.vector_store %arg12[%c0_92, %c0_93, %c0_94, %c0_95], %92 {strides = array<i32>} : memref<1x10x10x128xbf16, #tpu.memory_space<vmem>>, vector<1x10x10x128xbf16>,
      } else {
      }
      "tpu.region"() ({
        %65 = tpu.sem_alloc : memref<!tpu.dma_semaphore, #tpu.memory_space<semaphore_mem>>
        %c0_i32_67 = arith.constant 0 : i32
        %c0_i32_68 = arith.constant 0 : i32
        %66 = tpu.memref_slice %arg10[%arg1, %c0_i32_67, %c0_i32_68] : memref<2x64x128xbf16, #tpu.memory_space<any>> -> memref<1x64x128xbf16, #tpu.memory_space<any>>
        %67 = tpu.memref_squeeze %66 : memref<1x64x128xbf16, #tpu.memory_space<any>> -> memref<64x128xbf16, #tpu.memory_space<any>>
        tpu.enqueue_dma source(%67 : memref<64x128xbf16, #tpu.memory_space<any>>) target(%arg13 : memref<64x128xbf16, #tpu.memory_space<vmem>>) target_semaphore(%65 : memref<!tpu.dma_semaphore, #tpu.memory_space<semaphore_mem>>)
        %c0_i32_69 = arith.constant 0 : i32
        %c0_i32_70 = arith.constant 0 : i32
        %68 = tpu.memref_slice %arg10[%arg1, %c0_i32_69, %c0_i32_70] : memref<2x64x128xbf16, #tpu.memory_space<any>> -> memref<1x64x128xbf16, #tpu.memory_space<any>>
        %69 = tpu.memref_squeeze %68 : memref<1x64x128xbf16, #tpu.memory_space<any>> -> memref<64x128xbf16, #tpu.memory_space<any>>
        tpu.wait_dma2 semaphore(%65 : memref<!tpu.dma_semaphore, #tpu.memory_space<semaphore_mem>>) src(%69 : memref<64x128xbf16, #tpu.memory_space<any>>) dst(%arg13 : memref<64x128xbf16, #tpu.memory_space<vmem>>)
        tpu.yield
      }) : () -> ()
      %c0 = arith.constant 0 : index
      %c0_5 = arith.constant 0 : index
      %12 = vector.load %arg13[%c0, %c0_5] : memref<64x128xbf16, #tpu.memory_space<vmem>>, vector<64x128xbf16>
      %13 = arith.extf %12 : vector<64x128xbf16> to vector<64x128xf32>
      %c0_6 = arith.constant 0 : index
      %c0_7 = arith.constant 0 : index
      %14 = vector.load %arg17[%c0_6, %c0_7] : memref<2x128xf32, #tpu.memory_space<vmem>>, vector<1x128xf32>
      %15 = vector.broadcast %14 : vector<1x128xf32> to vector<64x128xf32>
      %16 = arith.mulf %13, %15 : vector<64x128xf32>
      %c1 = arith.constant 1 : index
      %c0_8 = arith.constant 0 : index
      %17 = vector.load %arg17[%c1, %c0_8] : memref<2x128xf32, #tpu.memory_space<vmem>>, vector<1x128xf32>
      %18 = vector.broadcast %17 : vector<1x128xf32> to vector<64x128xf32>
      %19 = arith.addf %16, %18 : vector<64x128xf32>
      %cst = arith.constant 0.000000e+00 : f32
      %20 = vector.broadcast %cst : f32 to vector<64x128xf32>
      %21 = arith.maximumf %19, %20 : vector<64x128xf32>
      %22 = arith.truncf %21 : vector<64x128xf32> to vector<64x128xbf16>
      %23 = vector.shape_cast %22 : vector<64x128xbf16> to vector<1x8x8x128xbf16>
      %c0_9 = arith.constant 0 : index
      %c1_10 = arith.constant 1 : index
      %c1_11 = arith.constant 1 : index
      %c0_12 = arith.constant 0 : index
      %24 = vector.load %arg12[%c0_9, %c1_10, %c1_11, %c0_12] : memref<1x10x10x128xbf16, #tpu.memory_space<vmem>>, vector<1x8x8x128xbf16>
      tpu.vector_store %arg12[%c0_9, %c1_10, %c1_11, %c0_12], %23 {strides = array<i32>} : memref<1x10x10x128xbf16, #tpu.memory_space<vmem>>, vector<1x8x8x128xbf16>,
      %c0_13 = arith.constant 0 : index
      %c0_14 = arith.constant 0 : index
      %c0_15 = arith.constant 0 : index
      %c0_16 = arith.constant 0 : index
      %25 = vector.load %arg12[%c0_13, %c0_14, %c0_15, %c0_16] : memref<1x10x10x128xbf16, #tpu.memory_space<vmem>>, vector<1x8x8x128xbf16>
      %26 = vector.shape_cast %25 : vector<1x8x8x128xbf16> to vector<64x128xbf16>
      %c0_17 = arith.constant 0 : index
      %c0_18 = arith.constant 0 : index
      %c1_19 = arith.constant 1 : index
      %c0_20 = arith.constant 0 : index
      %27 = vector.load %arg12[%c0_17, %c0_18, %c1_19, %c0_20] : memref<1x10x10x128xbf16, #tpu.memory_space<vmem>>, vector<1x8x8x128xbf16>
      %28 = vector.shape_cast %27 : vector<1x8x8x128xbf16> to vector<64x128xbf16>
      %c0_21 = arith.constant 0 : index
      %c0_22 = arith.constant 0 : index
      %c2 = arith.constant 2 : index
      %c0_23 = arith.constant 0 : index
      %29 = vector.load %arg12[%c0_21, %c0_22, %c2, %c0_23] : memref<1x10x10x128xbf16, #tpu.memory_space<vmem>>, vector<1x8x8x128xbf16>
      %30 = vector.shape_cast %29 : vector<1x8x8x128xbf16> to vector<64x128xbf16>
      %c0_24 = arith.constant 0 : index
      %c1_25 = arith.constant 1 : index
      %c0_26 = arith.constant 0 : index
      %c0_27 = arith.constant 0 : index
      %31 = vector.load %arg12[%c0_24, %c1_25, %c0_26, %c0_27] : memref<1x10x10x128xbf16, #tpu.memory_space<vmem>>, vector<1x8x8x128xbf16>
      %32 = vector.shape_cast %31 : vector<1x8x8x128xbf16> to vector<64x128xbf16>
      %c0_28 = arith.constant 0 : index
      %c1_29 = arith.constant 1 : index
      %c1_30 = arith.constant 1 : index
      %c0_31 = arith.constant 0 : index
      %33 = vector.load %arg12[%c0_28, %c1_29, %c1_30, %c0_31] : memref<1x10x10x128xbf16, #tpu.memory_space<vmem>>, vector<1x8x8x128xbf16>
      %34 = vector.shape_cast %33 : vector<1x8x8x128xbf16> to vector<64x128xbf16>
      %c0_32 = arith.constant 0 : index
      %c1_33 = arith.constant 1 : index
      %c2_34 = arith.constant 2 : index
      %c0_35 = arith.constant 0 : index
      %35 = vector.load %arg12[%c0_32, %c1_33, %c2_34, %c0_35] : memref<1x10x10x128xbf16, #tpu.memory_space<vmem>>, vector<1x8x8x128xbf16>
      %36 = vector.shape_cast %35 : vector<1x8x8x128xbf16> to vector<64x128xbf16>
      %c0_36 = arith.constant 0 : index
      %c2_37 = arith.constant 2 : index
      %c0_38 = arith.constant 0 : index
      %c0_39 = arith.constant 0 : index
      %37 = vector.load %arg12[%c0_36, %c2_37, %c0_38, %c0_39] : memref<1x10x10x128xbf16, #tpu.memory_space<vmem>>, vector<1x8x8x128xbf16>
      %38 = vector.shape_cast %37 : vector<1x8x8x128xbf16> to vector<64x128xbf16>
      %c0_40 = arith.constant 0 : index
      %c2_41 = arith.constant 2 : index
      %c1_42 = arith.constant 1 : index
      %c0_43 = arith.constant 0 : index
      %39 = vector.load %arg12[%c0_40, %c2_41, %c1_42, %c0_43] : memref<1x10x10x128xbf16, #tpu.memory_space<vmem>>, vector<1x8x8x128xbf16>
      %40 = vector.shape_cast %39 : vector<1x8x8x128xbf16> to vector<64x128xbf16>
      %c0_44 = arith.constant 0 : index
      %c2_45 = arith.constant 2 : index
      %c2_46 = arith.constant 2 : index
      %c0_47 = arith.constant 0 : index
      %41 = vector.load %arg12[%c0_44, %c2_45, %c2_46, %c0_47] : memref<1x10x10x128xbf16, #tpu.memory_space<vmem>>, vector<1x8x8x128xbf16>
      %42 = vector.shape_cast %41 : vector<1x8x8x128xbf16> to vector<64x128xbf16>
      %43 = tpu.concatenate %26, %28, %30, %32, %34, %36, %38, %40, %42 in 1 : vector<64x128xbf16>, vector<64x128xbf16>, vector<64x128xbf16>, vector<64x128xbf16>, vector<64x128xbf16>, vector<64x128xbf16>, vector<64x128xbf16>, vector<64x128xbf16>, vector<64x128xbf16> -> vector<64x1152xbf16>
      %c0_48 = arith.constant 0 : index
      %c0_49 = arith.constant 0 : index
      %44 = vector.load %arg4[%c0_48, %c0_49] : memref<1152x128xbf16, #tpu.memory_space<vmem>>, vector<1152x128xbf16>
      %cst_50 = arith.constant dense<0.000000e+00> : vector<64x128xf32>
      %45 = tpu.matmul %43, %44, %cst_50 {dimension_numbers = #tpu.dot_dimension_numbers<[1], [0], [0], [1], [0, 0, 1, 1], [], []>} : vector<64x1152xbf16>, vector<1152x128xbf16>, vector<64x128xf32> -> vector<64x128xf32>
      %c0_i32_51 = arith.constant 0 : i32
      %46 = arith.cmpi eq, %arg1, %c0_i32_51 : i32
      %47 = arith.extui %46 : i1 to i32
      %c0_i32_52 = arith.constant 0 : i32
      %48 = arith.cmpi ne, %47, %c0_i32_52 : i32
      scf.if %48 {
        %cst_67 = arith.constant dense<0.000000e+00> : vector<128xf32>
        %65 = vector.multi_reduction <add>, %45, %cst_67 [0] : vector<64x128xf32> to vector<128xf32>
        %66 = vector.shape_cast %65 : vector<128xf32> to vector<1x128xf32>
        %cst_68 = arith.constant 6.400000e+01 : f32
        %67 = vector.broadcast %cst_68 : f32 to vector<1x128xf32>
        %68 = arith.divf %66, %67 : vector<1x128xf32>
        %c0_69 = arith.constant 0 : index
        %c0_70 = arith.constant 0 : index
        %69 = vector.load %arg18[%c0_69, %c0_70] : memref<3x128xf32, #tpu.memory_space<vmem>>, vector<1x128xf32>
        tpu.vector_store %arg18[%c0_69, %c0_70], %68 {strides = array<i32>} : memref<3x128xf32, #tpu.memory_space<vmem>>, vector<1x128xf32>,
      } else {
      }
      %c0_53 = arith.constant 0 : index
      %c0_54 = arith.constant 0 : index
      %49 = vector.load %arg18[%c0_53, %c0_54] : memref<3x128xf32, #tpu.memory_space<vmem>>, vector<1x128xf32>
      %50 = vector.broadcast %49 : vector<1x128xf32> to vector<64x128xf32>
      %51 = arith.subf %45, %50 : vector<64x128xf32>
      %c1_55 = arith.constant 1 : index
      %c0_56 = arith.constant 0 : index
      %52 = vector.load %arg18[%c1_55, %c0_56] : memref<3x128xf32, #tpu.memory_space<vmem>>, vector<1x128xf32>
      %cst_57 = arith.constant dense<0.000000e+00> : vector<128xf32>
      %53 = vector.multi_reduction <add>, %51, %cst_57 [0] : vector<64x128xf32> to vector<128xf32>
      %54 = vector.shape_cast %53 : vector<128xf32> to vector<1x128xf32>
      %55 = arith.addf %52, %54 : vector<1x128xf32>
      %c1_58 = arith.constant 1 : index
      %c0_59 = arith.constant 0 : index
      %56 = vector.load %arg18[%c1_58, %c0_59] : memref<3x128xf32, #tpu.memory_space<vmem>>, vector<1x128xf32>
      tpu.vector_store %arg18[%c1_58, %c0_59], %55 {strides = array<i32>} : memref<3x128xf32, #tpu.memory_space<vmem>>, vector<1x128xf32>,
      %c2_60 = arith.constant 2 : index
      %c0_61 = arith.constant 0 : index
      %57 = vector.load %arg18[%c2_60, %c0_61] : memref<3x128xf32, #tpu.memory_space<vmem>>, vector<1x128xf32>
      %58 = arith.mulf %51, %51 : vector<64x128xf32>
      %cst_62 = arith.constant dense<0.000000e+00> : vector<128xf32>
      %59 = vector.multi_reduction <add>, %58, %cst_62 [0] : vector<64x128xf32> to vector<128xf32>
      %60 = vector.shape_cast %59 : vector<128xf32> to vector<1x128xf32>
      %61 = arith.addf %57, %60 : vector<1x128xf32>
      %c2_63 = arith.constant 2 : index
      %c0_64 = arith.constant 0 : index
      %62 = vector.load %arg18[%c2_63, %c0_64] : memref<3x128xf32, #tpu.memory_space<vmem>>, vector<1x128xf32>
      tpu.vector_store %arg18[%c2_63, %c0_64], %61 {strides = array<i32>} : memref<3x128xf32, #tpu.memory_space<vmem>>, vector<1x128xf32>,
      %63 = arith.truncf %45 : vector<64x128xf32> to vector<64x128xbf16>
      %c0_65 = arith.constant 0 : index
      %c0_66 = arith.constant 0 : index
      %64 = vector.load %arg14[%c0_65, %c0_66] : memref<64x128xbf16, #tpu.memory_space<vmem>>, vector<64x128xbf16>
      tpu.vector_store %arg14[%c0_65, %c0_66], %63 {strides = array<i32>} : memref<64x128xbf16, #tpu.memory_space<vmem>>, vector<64x128xbf16>,
      "tpu.region"() ({
        %65 = tpu.sem_alloc : memref<!tpu.dma_semaphore, #tpu.memory_space<semaphore_mem>>
        %c0_i32_67 = arith.constant 0 : i32
        %c0_i32_68 = arith.constant 0 : i32
        %66 = tpu.memref_slice %arg11[%arg1, %c0_i32_67, %c0_i32_68] : memref<2x64x128xbf16, #tpu.memory_space<any>> -> memref<1x64x128xbf16, #tpu.memory_space<any>>
        %67 = tpu.memref_squeeze %66 : memref<1x64x128xbf16, #tpu.memory_space<any>> -> memref<64x128xbf16, #tpu.memory_space<any>>
        tpu.enqueue_dma source(%arg14 : memref<64x128xbf16, #tpu.memory_space<vmem>>) target(%67 : memref<64x128xbf16, #tpu.memory_space<any>>) target_semaphore(%65 : memref<!tpu.dma_semaphore, #tpu.memory_space<semaphore_mem>>)
        %c0_i32_69 = arith.constant 0 : i32
        %c0_i32_70 = arith.constant 0 : i32
        %68 = tpu.memref_slice %arg11[%arg1, %c0_i32_69, %c0_i32_70] : memref<2x64x128xbf16, #tpu.memory_space<any>> -> memref<1x64x128xbf16, #tpu.memory_space<any>>
        %69 = tpu.memref_squeeze %68 : memref<1x64x128xbf16, #tpu.memory_space<any>> -> memref<64x128xbf16, #tpu.memory_space<any>>
        tpu.wait_dma2 semaphore(%65 : memref<!tpu.dma_semaphore, #tpu.memory_space<semaphore_mem>>) src(%arg14 : memref<64x128xbf16, #tpu.memory_space<vmem>>) dst(%69 : memref<64x128xbf16, #tpu.memory_space<any>>)
        tpu.yield
      }) : () -> ()
    } else {
    }
    %c2_i32 = arith.constant 2 : i32
    %6 = arith.cmpi eq, %arg0, %c2_i32 : i32
    %7 = arith.extui %6 : i1 to i32
    %c0_i32_2 = arith.constant 0 : i32
    %8 = arith.cmpi ne, %7, %c0_i32_2 : i32
    scf.if %8 {
      %c0_i32_3 = arith.constant 0 : i32
      %9 = arith.cmpi eq, %arg1, %c0_i32_3 : i32
      %10 = arith.extui %9 : i1 to i32
      %c0_i32_4 = arith.constant 0 : i32
      %11 = arith.cmpi ne, %10, %c0_i32_4 : i32
      scf.if %11 {
        %c0_17 = arith.constant 0 : index
        %c0_18 = arith.constant 0 : index
        %29 = vector.load %arg18[%c0_17, %c0_18] : memref<3x128xf32, #tpu.memory_space<vmem>>, vector<1x128xf32>
        %c1_19 = arith.constant 1 : index
        %c0_20 = arith.constant 0 : index
        %30 = vector.load %arg18[%c1_19, %c0_20] : memref<3x128xf32, #tpu.memory_space<vmem>>, vector<1x128xf32>
        %cst_21 = arith.constant 7.812500e-03 : f32
        %31 = vector.broadcast %cst_21 : f32 to vector<1x128xf32>
        %32 = arith.mulf %30, %31 : vector<1x128xf32>
        %33 = arith.addf %29, %32 : vector<1x128xf32>
        %c2 = arith.constant 2 : index
        %c0_22 = arith.constant 0 : index
        %34 = vector.load %arg18[%c2, %c0_22] : memref<3x128xf32, #tpu.memory_space<vmem>>, vector<1x128xf32>
        %cst_23 = arith.constant 7.812500e-03 : f32
        %35 = vector.broadcast %cst_23 : f32 to vector<1x128xf32>
        %36 = arith.mulf %34, %35 : vector<1x128xf32>
        %c1_24 = arith.constant 1 : index
        %c0_25 = arith.constant 0 : index
        %37 = vector.load %arg18[%c1_24, %c0_25] : memref<3x128xf32, #tpu.memory_space<vmem>>, vector<1x128xf32>
        %cst_26 = arith.constant 7.812500e-03 : f32
        %38 = vector.broadcast %cst_26 : f32 to vector<1x128xf32>
        %39 = arith.mulf %37, %38 : vector<1x128xf32>
        %40 = arith.mulf %39, %39 : vector<1x128xf32>
        %41 = arith.subf %36, %40 : vector<1x128xf32>
        %cst_27 = arith.constant 0.000000e+00 : f32
        %42 = vector.broadcast %cst_27 : f32 to vector<1x128xf32>
        %43 = arith.maximumf %41, %42 : vector<1x128xf32>
        %c0_28 = arith.constant 0 : index
        %c0_29 = arith.constant 0 : index
        %44 = vector.load %arg7[%c0_28, %c0_29] : memref<1x128xf32, #tpu.memory_space<vmem>>, vector<1x128xf32>
        %cst_30 = arith.constant 9.99999974E-6 : f32
        %45 = vector.broadcast %cst_30 : f32 to vector<1x128xf32>
        %46 = arith.addf %43, %45 : vector<1x128xf32>
        %47 = math.rsqrt %46 : vector<1x128xf32>
        %48 = arith.mulf %44, %47 : vector<1x128xf32>
        %c0_31 = arith.constant 0 : index
        %c0_32 = arith.constant 0 : index
        %49 = vector.load %arg19[%c0_31, %c0_32] : memref<2x128xf32, #tpu.memory_space<vmem>>, vector<1x128xf32>
        tpu.vector_store %arg19[%c0_31, %c0_32], %48 {strides = array<i32>} : memref<2x128xf32, #tpu.memory_space<vmem>>, vector<1x128xf32>,
        %c0_33 = arith.constant 0 : index
        %c0_34 = arith.constant 0 : index
        %50 = vector.load %arg8[%c0_33, %c0_34] : memref<1x128xf32, #tpu.memory_space<vmem>>, vector<1x128xf32>
        %51 = arith.mulf %48, %33 : vector<1x128xf32>
        %52 = arith.subf %50, %51 : vector<1x128xf32>
        %c1_35 = arith.constant 1 : index
        %c0_36 = arith.constant 0 : index
        %53 = vector.load %arg19[%c1_35, %c0_36] : memref<2x128xf32, #tpu.memory_space<vmem>>, vector<1x128xf32>
        tpu.vector_store %arg19[%c1_35, %c0_36], %52 {strides = array<i32>} : memref<2x128xf32, #tpu.memory_space<vmem>>, vector<1x128xf32>,
      } else {
      }
      "tpu.region"() ({
        %29 = tpu.sem_alloc : memref<!tpu.dma_semaphore, #tpu.memory_space<semaphore_mem>>
        %c0_i32_17 = arith.constant 0 : i32
        %c0_i32_18 = arith.constant 0 : i32
        %30 = tpu.memref_slice %arg11[%arg1, %c0_i32_17, %c0_i32_18] : memref<2x64x128xbf16, #tpu.memory_space<any>> -> memref<1x64x128xbf16, #tpu.memory_space<any>>
        %31 = tpu.memref_squeeze %30 : memref<1x64x128xbf16, #tpu.memory_space<any>> -> memref<64x128xbf16, #tpu.memory_space<any>>
        tpu.enqueue_dma source(%31 : memref<64x128xbf16, #tpu.memory_space<any>>) target(%arg13 : memref<64x128xbf16, #tpu.memory_space<vmem>>) target_semaphore(%29 : memref<!tpu.dma_semaphore, #tpu.memory_space<semaphore_mem>>)
        %c0_i32_19 = arith.constant 0 : i32
        %c0_i32_20 = arith.constant 0 : i32
        %32 = tpu.memref_slice %arg11[%arg1, %c0_i32_19, %c0_i32_20] : memref<2x64x128xbf16, #tpu.memory_space<any>> -> memref<1x64x128xbf16, #tpu.memory_space<any>>
        %33 = tpu.memref_squeeze %32 : memref<1x64x128xbf16, #tpu.memory_space<any>> -> memref<64x128xbf16, #tpu.memory_space<any>>
        tpu.wait_dma2 semaphore(%29 : memref<!tpu.dma_semaphore, #tpu.memory_space<semaphore_mem>>) src(%33 : memref<64x128xbf16, #tpu.memory_space<any>>) dst(%arg13 : memref<64x128xbf16, #tpu.memory_space<vmem>>)
        tpu.yield
      }) : () -> ()
      %c0 = arith.constant 0 : index
      %c0_5 = arith.constant 0 : index
      %12 = vector.load %arg13[%c0, %c0_5] : memref<64x128xbf16, #tpu.memory_space<vmem>>, vector<64x128xbf16>
      %13 = arith.extf %12 : vector<64x128xbf16> to vector<64x128xf32>
      %c0_6 = arith.constant 0 : index
      %c0_7 = arith.constant 0 : index
      %14 = vector.load %arg19[%c0_6, %c0_7] : memref<2x128xf32, #tpu.memory_space<vmem>>, vector<1x128xf32>
      %15 = vector.broadcast %14 : vector<1x128xf32> to vector<64x128xf32>
      %16 = arith.mulf %13, %15 : vector<64x128xf32>
      %c1 = arith.constant 1 : index
      %c0_8 = arith.constant 0 : index
      %17 = vector.load %arg19[%c1, %c0_8] : memref<2x128xf32, #tpu.memory_space<vmem>>, vector<1x128xf32>
      %18 = vector.broadcast %17 : vector<1x128xf32> to vector<64x128xf32>
      %19 = arith.addf %16, %18 : vector<64x128xf32>
      %c0_9 = arith.constant 0 : index
      %c1_10 = arith.constant 1 : index
      %c1_11 = arith.constant 1 : index
      %c0_12 = arith.constant 0 : index
      %20 = vector.load %arg2[%c0_9, %c1_10, %c1_11, %c0_12] : memref<1x10x10x128xbf16, #tpu.memory_space<vmem>>, vector<1x8x8x128xbf16>
      %21 = vector.shape_cast %20 : vector<1x8x8x128xbf16> to vector<64x128xbf16>
      %22 = arith.extf %21 : vector<64x128xbf16> to vector<64x128xf32>
      %23 = arith.addf %19, %22 : vector<64x128xf32>
      %cst = arith.constant 0.000000e+00 : f32
      %24 = vector.broadcast %cst : f32 to vector<64x128xf32>
      %25 = arith.maximumf %23, %24 : vector<64x128xf32>
      %26 = arith.truncf %25 : vector<64x128xf32> to vector<64x128xbf16>
      %27 = vector.shape_cast %26 : vector<64x128xbf16> to vector<1x8x8x128xbf16>
      %c0_13 = arith.constant 0 : index
      %c0_14 = arith.constant 0 : index
      %c0_15 = arith.constant 0 : index
      %c0_16 = arith.constant 0 : index
      %28 = vector.load %arg15[%c0_13, %c0_14, %c0_15, %c0_16] : memref<1x8x8x128xbf16, #tpu.memory_space<vmem>>, vector<1x8x8x128xbf16>
      tpu.vector_store %arg15[%c0_13, %c0_14, %c0_15, %c0_16], %27 {strides = array<i32>} : memref<1x8x8x128xbf16, #tpu.memory_space<vmem>>, vector<1x8x8x128xbf16>,
      "tpu.region"() ({
        %29 = tpu.sem_alloc : memref<!tpu.dma_semaphore, #tpu.memory_space<semaphore_mem>>
        %c0_i32_17 = arith.constant 0 : i32
        %c0_i32_18 = arith.constant 0 : i32
        %c0_i32_19 = arith.constant 0 : i32
        %c0_i32_20 = arith.constant 0 : i32
        %30 = tpu.memref_slice %arg9[%arg1, %c0_i32_17, %c0_i32_18, %c0_i32_19, %c0_i32_20] : memref<2x1x8x8x128xbf16, #tpu.memory_space<any>> -> memref<1x1x8x8x128xbf16, #tpu.memory_space<any>>
        %31 = tpu.memref_squeeze %30 : memref<1x1x8x8x128xbf16, #tpu.memory_space<any>> -> memref<1x8x8x128xbf16, #tpu.memory_space<any>>
        tpu.enqueue_dma source(%arg15 : memref<1x8x8x128xbf16, #tpu.memory_space<vmem>>) target(%31 : memref<1x8x8x128xbf16, #tpu.memory_space<any>>) target_semaphore(%29 : memref<!tpu.dma_semaphore, #tpu.memory_space<semaphore_mem>>)
        %c0_i32_21 = arith.constant 0 : i32
        %c0_i32_22 = arith.constant 0 : i32
        %c0_i32_23 = arith.constant 0 : i32
        %c0_i32_24 = arith.constant 0 : i32
        %32 = tpu.memref_slice %arg9[%arg1, %c0_i32_21, %c0_i32_22, %c0_i32_23, %c0_i32_24] : memref<2x1x8x8x128xbf16, #tpu.memory_space<any>> -> memref<1x1x8x8x128xbf16, #tpu.memory_space<any>>
        %33 = tpu.memref_squeeze %32 : memref<1x1x8x8x128xbf16, #tpu.memory_space<any>> -> memref<1x8x8x128xbf16, #tpu.memory_space<any>>
        tpu.wait_dma2 semaphore(%29 : memref<!tpu.dma_semaphore, #tpu.memory_space<semaphore_mem>>) src(%arg15 : memref<1x8x8x128xbf16, #tpu.memory_space<vmem>>) dst(%33 : memref<1x8x8x128xbf16, #tpu.memory_space<any>>)
        tpu.yield
      }) : () -> ()
    } else {
    }
    return
  }
  func.func @transform_0(%arg0: i32, %arg1: i32) -> (i32, i32, i32, i32) {
    %c1_i32 = arith.constant 1 : i32
    %0 = arith.cmpi eq, %arg0, %c1_i32 : i32
    %c0_i32 = arith.constant 0 : i32
    %1 = arith.select %0, %c0_i32, %arg1 : i32
    %c0_i32_0 = arith.constant 0 : i32
    %c0_i32_1 = arith.constant 0 : i32
    %c0_i32_2 = arith.constant 0 : i32
    %c0_i32_3 = arith.constant 0 : i32
    return %1, %c0_i32_0, %c0_i32_1, %c0_i32_2 : i32, i32, i32, i32
  }
  func.func @transform_1(%arg0: i32, %arg1: i32) -> (i32, i32) {
    %c0_i32 = arith.constant 0 : i32
    %c0_i32_0 = arith.constant 0 : i32
    %c0_i32_1 = arith.constant 0 : i32
    return %c0_i32, %c0_i32_0 : i32, i32
  }
  func.func @transform_2(%arg0: i32, %arg1: i32) -> (i32, i32) {
    %c0_i32 = arith.constant 0 : i32
    %c0_i32_0 = arith.constant 0 : i32
    %c0_i32_1 = arith.constant 0 : i32
    return %c0_i32, %c0_i32_0 : i32, i32
  }
  func.func @transform_3(%arg0: i32, %arg1: i32) -> (i32, i32) {
    %c0_i32 = arith.constant 0 : i32
    %c0_i32_0 = arith.constant 0 : i32
    %c0_i32_1 = arith.constant 0 : i32
    return %c0_i32, %c0_i32_0 : i32, i32
  }
  func.func @transform_4(%arg0: i32, %arg1: i32) -> (i32, i32) {
    %c0_i32 = arith.constant 0 : i32
    %c0_i32_0 = arith.constant 0 : i32
    %c0_i32_1 = arith.constant 0 : i32
    return %c0_i32, %c0_i32_0 : i32, i32
  }
  func.func @transform_5(%arg0: i32, %arg1: i32) -> (i32, i32) {
    %c0_i32 = arith.constant 0 : i32
    %c0_i32_0 = arith.constant 0 : i32
    %c0_i32_1 = arith.constant 0 : i32
    return %c0_i32, %c0_i32_0 : i32, i32
  }
  func.func @transform_6(%arg0: i32, %arg1: i32) -> (i32, i32) {
    %c0_i32 = arith.constant 0 : i32
    %c0_i32_0 = arith.constant 0 : i32
    %c0_i32_1 = arith.constant 0 : i32
    return %c0_i32, %c0_i32_0 : i32, i32
  }
}

</mosaic_0001>

<llo_original>
// kernel: mutable_block_forward.1
$region0: #{mutable_block_forward.1}
  #allocation0 [shape = 'u32[]', space=smem, size = 0x4, offset = 0x4, fixed_abs, tag = 'smem constant byte address 0x4 - core index']
  #allocation1 [shape = 'u32[144,128]{1,0:T(1,128)}', space=vmem, size = 0x12000, scoped, tag = 'internal scratch']
  #allocation2 [shape = 'bf16[1,10,10,128]{3,2,1,0:T(8,128)(2,1)}', space=vmem, size = 0xa000, scoped, tag = 'scratch operand']
  #allocation3 [shape = 'bf16[64,128]{1,0:T(8,128)(2,1)}', space=vmem, size = 0x4000, scoped, tag = 'scratch operand']
  #allocation4 [shape = 'bf16[64,128]{1,0:T(8,128)(2,1)}', space=vmem, size = 0x4000, scoped, tag = 'scratch operand']
  #allocation5 [shape = 'bf16[1,8,8,128]{3,2,1,0:T(8,128)(2,1)}', space=vmem, size = 0x4000, scoped, tag = 'scratch operand']
  #allocation6 [shape = 'f32[3,128]{1,0:T(4,128)}', space=vmem, size = 0x800, scoped, tag = 'scratch operand']
  #allocation7 [shape = 'f32[2,128]{1,0:T(2,128)}', space=vmem, size = 0x400, scoped, tag = 'scratch operand']
  #allocation8 [shape = 'f32[3,128]{1,0:T(4,128)}', space=vmem, size = 0x800, scoped, tag = 'scratch operand']
  #allocation9 [shape = 'f32[2,128]{1,0:T(2,128)}', space=vmem, size = 0x400, scoped, tag = 'scratch operand']
  #allocation15 [shape = 's32[]', space=sflag, size = 0x4, offset = 0, fixed_abs, tag = 'sflag constant byte address 0x0 - dummy sync flag']
  #allocation16 [shape = 's32[]', space=sflag, size = 0x4, offset = 0, fixed_abs, tag = 'sflag constant byte address 0x0 - dummy sync flag']
  #allocation17 [shape = 'u32[]', space=smem, size = 0x4, offset = 0x44, fixed_abs, tag = 'smem constant byte address 0x44 - assertion arg 0']
  #allocation18 [shape = 'u32[]', space=smem, size = 0x4, offset = 0x48, fixed_abs, tag = 'smem constant byte address 0x48 - assertion arg 1']
  #allocation20 [shape = 's32[]', space=sflag, size = 0x4, offset = 0, fixed_abs, tag = 'sflag constant byte address 0x0 - dummy sync flag']
  #allocation21 [shape = 's32[]', space=sflag, size = 0x4, offset = 0, fixed_abs, tag = 'sflag constant byte address 0x0 - dummy sync flag']
  #allocation23 [shape = 's32[]', space=sflag, size = 0x4, offset = 0, fixed_abs, tag = 'sflag constant byte address 0x0 - dummy sync flag']
  #allocation24 [shape = 's32[]', space=sflag, size = 0x4, offset = 0, fixed_abs, tag = 'sflag constant byte address 0x0 - dummy sync flag']
  #allocation26 [shape = 's32[]', space=sflag, size = 0x4, offset = 0, fixed_abs, tag = 'sflag constant byte address 0x0 - dummy sync flag']
  #allocation27 [shape = 's32[]', space=sflag, size = 0x4, offset = 0, fixed_abs, tag = 'sflag constant byte address 0x0 - dummy sync flag']
  #allocation29 [shape = 's32[]', space=sflag, size = 0x4, offset = 0, fixed_abs, tag = 'sflag constant byte address 0x0 - dummy sync flag']
  %s0 = inlined_call_operand.vmem [shape: bf16[2,10,10,128], index: 0, kind: input, shape index: {}]
  %s1 = inlined_call_operand.hbm [shape: bf16[1152,128], index: 1, kind: input, shape index: {}]
  %s2 = inlined_call_operand.hbm [shape: bf16[1152,128], index: 2, kind: input, shape index: {}]
  %s3 = inlined_call_operand.vmem [shape: f32[1,128], index: 3, kind: input, shape index: {}]
  %s4 = inlined_call_operand.vmem [shape: f32[1,128], index: 4, kind: input, shape index: {}]
  %s5 = inlined_call_operand.vmem [shape: f32[1,128], index: 5, kind: input, shape index: {}]
  %s6 = inlined_call_operand.vmem [shape: f32[1,128], index: 6, kind: input, shape index: {}]
  %s7 = inlined_call_operand.vmem [shape: bf16[2,1,8,8,128], index: 7, kind: output, shape index: {0}]
  %s8 = inlined_call_operand.hbm [shape: bf16[2,64,128], index: 8, kind: output, shape index: {1}]
  %s9 = inlined_call_operand.hbm [shape: bf16[2,64,128], index: 9, kind: output, shape index: {2}]
  %10 = xla_tuple %s7, %s8, %s9
  %s11 = sld [smem:[#allocation0]]
  $region140: #{mutable_block_forward.1} parent=0
    _
  %s13 = ssub.s32 1, %s11
  %s14 = scalar_select 0, %s13, %s11
  $region1: #{mutable_block_forward.1} parent=0
    #allocation10 [shape = 'u8[294912]{0}', space=vmem, size = 0x48000, scoped, tag = 'input window, operand 1, single buffered']
    #allocation11 [shape = 's32[2]{0}', space=sflag, size = 0x8, scoped, tag = 'scoped memory for mutable_block_forward.1']
    #allocation12 [shape = 'u8[294912]{0}', space=vmem, size = 0x48000, scoped, tag = 'input window, operand 2, single buffered']
    #allocation13 [shape = 's32[1]{0}', space=sflag, size = 0x4, scoped, tag = 'scoped memory for mutable_block_forward.1']
    %15 = vsyncpa [#allocation11], 0
    %16 = vsyncpa [#allocation13], 0
    loop: start=0, step=1, limit=7
    $region2: #{mutable_block_forward.1} parent=1 // loop_pre_header
      _
    $region3: #{mutable_block_forward.1} parent=1 // loop_header
      %s18 = sphi 0, %s22
      %p19 = scmp.ge.s32.totalorder %s18, 7
      %s24 = sphi 0, %s34
      %s25 = sphi 0, %s30
      %s26 = sphi 0, %s24
      %s27 = sphi 0, %s25
      %s41 = sphi 0, %s43
      %s44 = sphi 0, %s41
      %s54 = sphi 0, %s44
      %s58 = sphi 0, %s58
      %s60 = sphi 0, %s58
      %s68 = sphi 0, %s60
      %s72 = sphi 0, %s72
      %s74 = sphi 0, %s72
      %s82 = sphi 0, %s74
      %s86 = sphi 0, %s86
      %s88 = sphi 0, %s86
      %s96 = sphi 0, %s88
      %s100 = sphi 0, %s100
      %s102 = sphi 0, %s100
      %s110 = sphi 0, %s102
      %s114 = sphi 0, %s114
      %s116 = sphi 0, %s114
      %s124 = sphi 0, %s116
      %s128 = sphi 0, %s128
      %s130 = sphi 0, %s128
      %s138 = sphi 0, %s130
    $region4: #{mutable_block_forward.1} parent=1 // loop_header_branch
      %21 = sbr.rel (%p19) target = $region8
    $region5: #{mutable_block_forward.1} parent=1 // loop_body
      %s23 = ssub.s32 %s18, 1
      %s28 = sadd.s32 1, %s25
      %p29 = scmp.ge.s32.totalorder %s28, 2
      %s30 = scalar_select %p29, 0, %s28
      %s31 = sadd.s32 1, %s24
      %s32 = scalar_select %p29, %s31, %s24
      %p33 = scmp.ge.s32.totalorder %s32, 3
      %s34 = scalar_select %p33, 0, %s32
      %p35 = scmp.eq.s32.totalorder %s24, 1
      %s36 = scalar_select %p35, 0, %s25
      %p37 = scmp.eq.s32.totalorder %s34, 1
      %s38 = scalar_select %p37, 0, %s30
      %s39 = ssub.s32 %s36, %s38
      %p40 = scmp.eq.s32.totalorder %s39, 0
      %s42 = sadd.s32 %s41, 1
      %s43 = scalar_select %p40, %s41, %s42
      %p45 = pneg %p40
      %p46 = scmp.eq.s32.totalorder %s18, 5
      %p47 = por %p45, %p46
      %p48 = scmp.ne.s32.totalorder %s41, %s44
      %p49 = scmp.eq.s32.totalorder %s18, 0
      %p50 = por %p48, %p49
      %p51 = scmp.ne.s32.totalorder %s41, %s44
      %p52 = scmp.eq.s32.totalorder %s23, 5
      %p53 = por %p51, %p52
      %p55 = scmp.ne.s32.totalorder %s44, %s54
      %p56 = scmp.eq.s32.totalorder %s23, 0
      %p57 = por %p55, %p56
      %s59 = sadd.s32 %s58, 1
      %p61 = scmp.eq.s32.totalorder %s18, 5
      %p62 = scmp.ne.s32.totalorder %s58, %s60
      %p63 = scmp.eq.s32.totalorder %s18, 0
      %p64 = por %p62, %p63
      %p65 = scmp.ne.s32.totalorder %s58, %s60
      %p66 = scmp.eq.s32.totalorder %s23, 5
      %p67 = por %p65, %p66
      %p69 = scmp.ne.s32.totalorder %s60, %s68
      %p70 = scmp.eq.s32.totalorder %s23, 0
      %p71 = por %p69, %p70
      %s73 = sadd.s32 %s72, 1
      %p75 = scmp.eq.s32.totalorder %s18, 5
      %p76 = scmp.ne.s32.totalorder %s72, %s74
      %p77 = scmp.eq.s32.totalorder %s18, 0
      %p78 = por %p76, %p77
      %p79 = scmp.ne.s32.totalorder %s72, %s74
      %p80 = scmp.eq.s32.totalorder %s23, 5
      %p81 = por %p79, %p80
      %p83 = scmp.ne.s32.totalorder %s74, %s82
      %p84 = scmp.eq.s32.totalorder %s23, 0
      %p85 = por %p83, %p84
      %s87 = sadd.s32 %s86, 1
      %p89 = scmp.eq.s32.totalorder %s18, 5
      %p90 = scmp.ne.s32.totalorder %s86, %s88
      %p91 = scmp.eq.s32.totalorder %s18, 0
      %p92 = por %p90, %p91
      %p93 = scmp.ne.s32.totalorder %s86, %s88
      %p94 = scmp.eq.s32.totalorder %s23, 5
      %p95 = por %p93, %p94
      %p97 = scmp.ne.s32.totalorder %s88, %s96
      %p98 = scmp.eq.s32.totalorder %s23, 0
      %p99 = por %p97, %p98
      %s101 = sadd.s32 %s100, 1
      %p103 = scmp.eq.s32.totalorder %s18, 5
      %p104 = scmp.ne.s32.totalorder %s100, %s102
      %p105 = scmp.eq.s32.totalorder %s18, 0
      %p106 = por %p104, %p105
      %p107 = scmp.ne.s32.totalorder %s100, %s102
      %p108 = scmp.eq.s32.totalorder %s23, 5
      %p109 = por %p107, %p108
      %p111 = scmp.ne.s32.totalorder %s102, %s110
      %p112 = scmp.eq.s32.totalorder %s23, 0
      %p113 = por %p111, %p112
      %s115 = sadd.s32 %s114, 1
      %p117 = scmp.eq.s32.totalorder %s18, 5
      %p118 = scmp.ne.s32.totalorder %s114, %s116
      %p119 = scmp.eq.s32.totalorder %s18, 0
      %p120 = por %p118, %p119
      %p121 = scmp.ne.s32.totalorder %s114, %s116
      %p122 = scmp.eq.s32.totalorder %s23, 5
      %p123 = por %p121, %p122
      %p125 = scmp.ne.s32.totalorder %s116, %s124
      %p126 = scmp.eq.s32.totalorder %s23, 0
      %p127 = por %p125, %p126
      %s129 = sadd.s32 %s128, 1
      %p131 = scmp.eq.s32.totalorder %s18, 5
      %p132 = scmp.ne.s32.totalorder %s128, %s130
      %p133 = scmp.eq.s32.totalorder %s18, 0
      %p134 = por %p132, %p133
      %p135 = scmp.ne.s32.totalorder %s128, %s130
      %p136 = scmp.eq.s32.totalorder %s23, 5
      %p137 = por %p135, %p136
      %p139 = scmp.ne.s32.totalorder %s130, %s138
      %p140 = scmp.eq.s32.totalorder %s23, 0
      %p141 = por %p139, %p140
      %p142 = scmp.le.s32.totalorder 1, %s18
      // Predicated region
      $region9: #{mutable_block_forward.1} parent=5 // pred_check
        %p143 = pneg %p142
      $region10: #{mutable_block_forward.1} parent=5 // pred_check_branch
        %145 = sbr.rel (%p143) target = $region12
      $region11: #{mutable_block_forward.1} parent=5 // pred_region
        %s146 = ssub.s32 %s18, 1
        // Predicated region
        $region13: #{mutable_block_forward.1} parent=11 // pred_check
          %p147 = pneg %p71
        $region14: #{mutable_block_forward.1} parent=11 // pred_check_branch
          %149 = sbr.rel (%p147) target = $region16
        $region15: #{mutable_block_forward.1} parent=11 // pred_region
          %s151 = ssub.s32 9216, 9216
          %152 = vsyncadd [#allocation11], %s151
          %s153 = sshll.u32 [#allocation10], 4
          %s154 = int_to_ptr.vmem [resolvable:$true] %s153
          %159 = dma.hbm_to_vmem [thread:$0]  %s1, 9216, %s154, [#allocation11], 64, 64, 4
        $region16: #{mutable_block_forward.1} parent=11 // pred_fallthru
          _
        // Predicated region
        $region17: #{mutable_block_forward.1} parent=11 // pred_check
          %p160 = pneg %p85
        $region18: #{mutable_block_forward.1} parent=11 // pred_check_branch
          %162 = sbr.rel (%p160) target = $region20
        $region19: #{mutable_block_forward.1} parent=11 // pred_region
          %s164 = ssub.s32 9216, 9216
          %165 = vsyncadd [#allocation13], %s164
          %s166 = sshll.u32 [#allocation12], 4
          %s167 = int_to_ptr.vmem [resolvable:$true] %s166
          %172 = dma.hbm_to_vmem [thread:$0]  %s2, 9216, %s167, [#allocation13], 64, 64, 4
        $region20: #{mutable_block_forward.1} parent=11 // pred_fallthru
          _
        // Predicated region
        $region21: #{mutable_block_forward.1} parent=11 // pred_check
          %p173 = pneg %p99
        $region22: #{mutable_block_forward.1} parent=11 // pred_check_branch
          %175 = sbr.rel (%p173) target = $region24
        $region23: #{mutable_block_forward.1} parent=11 // pred_region
          _
        $region24: #{mutable_block_forward.1} parent=11 // pred_fallthru
          _
        // Predicated region
        $region25: #{mutable_block_forward.1} parent=11 // pred_check
          %p176 = pneg %p113
        $region26: #{mutable_block_forward.1} parent=11 // pred_check_branch
          %178 = sbr.rel (%p176) target = $region28
        $region27: #{mutable_block_forward.1} parent=11 // pred_region
          _
        $region28: #{mutable_block_forward.1} parent=11 // pred_fallthru
          _
        // Predicated region
        $region29: #{mutable_block_forward.1} parent=11 // pred_check
          %p179 = pneg %p127
        $region30: #{mutable_block_forward.1} parent=11 // pred_check_branch
          %181 = sbr.rel (%p179) target = $region32
        $region31: #{mutable_block_forward.1} parent=11 // pred_region
          _
        $region32: #{mutable_block_forward.1} parent=11 // pred_fallthru
          _
        // Predicated region
        $region33: #{mutable_block_forward.1} parent=11 // pred_check
          %p182 = pneg %p141
        $region34: #{mutable_block_forward.1} parent=11 // pred_check_branch
          %184 = sbr.rel (%p182) target = $region36
        $region35: #{mutable_block_forward.1} parent=11 // pred_region
          _
        $region36: #{mutable_block_forward.1} parent=11 // pred_fallthru
          _
      $region12: #{mutable_block_forward.1} parent=5 // pred_fallthru
        _
      %p185 = scmp.lt.s32.totalorder %s18, 6
      // Predicated region
      $region37: #{mutable_block_forward.1} parent=5 // pred_check
        %p186 = pneg %p185
      $region38: #{mutable_block_forward.1} parent=5 // pred_check_branch
        %188 = sbr.rel (%p186) target = $region40
      $region39: #{mutable_block_forward.1} parent=5 // pred_region
        // Predicated region
        $region41: #{mutable_block_forward.1} parent=39 // pred_check
          %p189 = pneg %p50
        $region42: #{mutable_block_forward.1} parent=39 // pred_check_branch
          %191 = sbr.rel (%p189) target = $region44
        $region43: #{mutable_block_forward.1} parent=39 // pred_region
          %p192 = scmp.eq.s32.totalorder %s24, 1
          %s193 = scalar_select %p192, 0, %s25
          %p194 = scmp.lt.s32.totalorder %s193, 1
          %s195 = scalar_select %p194, %s193, 1
          %s196 = smul.addr %s195, 20
          %s197 = smul.addr %s196, 4
          %s198 = scalar_lea.vmem %s0, %s197
          %p199 = scmp.eq.s32.totalorder %s24, 1
          %s200 = scalar_select %p199, 0, %s25
        $region44: #{mutable_block_forward.1} parent=39 // pred_fallthru
          _
      $region40: #{mutable_block_forward.1} parent=5 // pred_fallthru
        _
      %p201 = scmp.le.s32.totalorder 1, %s18
      // Predicated region
      $region45: #{mutable_block_forward.1} parent=5 // pred_check
        %p202 = pneg %p201
      $region46: #{mutable_block_forward.1} parent=5 // pred_check_branch
        %204 = sbr.rel (%p202) target = $region48
      $region47: #{mutable_block_forward.1} parent=5 // pred_region
        %s205 = ssub.s32 %s18, 1
        // Predicated region
        $region49: #{mutable_block_forward.1} parent=47 // pred_check
          %p206 = pneg %p71
        $region50: #{mutable_block_forward.1} parent=47 // pred_check_branch
          %208 = sbr.rel (%p206) target = $region52
        $region51: #{mutable_block_forward.1} parent=47 // pred_region
          %209 = dma.done [#allocation11], 9216
        $region52: #{mutable_block_forward.1} parent=47 // pred_fallthru
          _
        // Predicated region
        $region53: #{mutable_block_forward.1} parent=47 // pred_check
          %p210 = pneg %p85
        $region54: #{mutable_block_forward.1} parent=47 // pred_check_branch
          %212 = sbr.rel (%p210) target = $region56
        $region55: #{mutable_block_forward.1} parent=47 // pred_region
          %213 = dma.done [#allocation13], 9216
        $region56: #{mutable_block_forward.1} parent=47 // pred_fallthru
          _
        %p214 = scmp.eq.s32.totalorder %s26, 1
        %s215 = scalar_select %p214, 0, %s27
        %p216 = scmp.lt.s32.totalorder %s215, 1
        %s217 = scalar_select %p216, %s215, 1
        %s218 = smul.addr %s217, 20
        %s219 = smul.addr %s218, 4
        %s220 = scalar_lea.vmem %s0, %s219
        %p221 = pneg %p57
        %p222 = pneg %p53
        %p223 = pneg %p71
        %p224 = pneg %p67
        %p225 = pneg %p85
        %p226 = pneg %p81
        %p227 = pneg %p99
        %p228 = pneg %p95
        %p229 = pneg %p113
        %p230 = pneg %p109
        %p231 = pneg %p127
        %p232 = pneg %p123
        %p233 = pneg %p141
        %p234 = pneg %p137
        %p235 = scmp.eq.s32.totalorder %s26, 1
        %s236 = scalar_select %p235, 0, %s27
        %p237 = scmp.lt.s32.totalorder %s236, 1
        %s238 = scalar_select %p237, %s236, 1
        %s239 = smul.addr %s238, 20
        %s240 = smul.addr %s239, 4
        %s241 = scalar_lea.vmem %s0, %s240
        %p242 = scmp.eq.s32.totalorder %s26, 1
        %s243 = scalar_select %p242, 0, %s27
        %p245 = scmp.eq.s32.totalorder %s26, 0
        // Predicated region
        $region57: #{mutable_block_forward.1} parent=47 // pred_check
          %p246 = pneg %p245
        $region58: #{mutable_block_forward.1} parent=47 // pred_check_branch
          %248 = sbr.rel (%p246) target = $region60
        $region59: #{mutable_block_forward.1} parent=47 // pred_region
          %v249 = vld [vmem:[%s241] sm:$0xf]
          %v250 = vld [vmem:[%s241 + $0x8] sm:$0xf]
          %v251 = vld [vmem:[%s241 + $0x10] sm:$0xf]
          %v252 = vld [vmem:[%s241 + $0x18] sm:$0xf]
          %v253 = vld [vmem:[%s241 + $0x20] sm:$0xf]
          %v254 = vld [vmem:[%s241 + $0x28] sm:$0xf]
          %v255 = vld [vmem:[%s241 + $0x30] sm:$0xf]
          %v256 = vld [vmem:[%s241 + $0x38] sm:$0xf]
          %v257 = vld [vmem:[%s241 + $0x4] sm:$0x1]
          %v258 = vld [vmem:[%s241 + $0xc] sm:$0x1]
          %v259 = vld [vmem:[%s241 + $0x14] sm:$0x1]
          %v260 = vld [vmem:[%s241 + $0x1c] sm:$0x1]
          %v261 = vld [vmem:[%s241 + $0x24] sm:$0x1]
          %v262 = vld [vmem:[%s241 + $0x2c] sm:$0x1]
          %v263 = vld [vmem:[%s241 + $0x34] sm:$0x1]
          %v264 = vld [vmem:[%s241 + $0x3c] sm:$0x1]
          %vm265 = vsmask.f32 3328
          %vm266 = vsmask.f32 7440
          %vm267 = vmor %vm265, %vm266
          %v269 = vshrl.u32 %v249, 16
          %v271 = vrot.slane %v269, 4
          %v272 = vshll.u32 %v249, 16
          %v274 = vrot.slane %v272, 5
          %v275 = vor.u32 %v271, %v274
          %v276 = vrot.slane %v275, 4
          %v278 = vshll.u32 %v257, 16
          %v280 = vrot.slane %v278, 5
          %v281 = vsel %vm267, %v276, %v280
          %v283 = vshrl.u32 %v250, 16
          %v285 = vrot.slane %v283, 4
          %v286 = vshll.u32 %v250, 16
          %v288 = vrot.slane %v286, 5
          %v289 = vor.u32 %v285, %v288
          %v290 = vrot.slane %v289, 4
          %v292 = vshll.u32 %v258, 16
          %v294 = vrot.slane %v292, 5
          %v295 = vsel %vm267, %v290, %v294
          %v297 = vshrl.u32 %v251, 16
          %v299 = vrot.slane %v297, 4
          %v300 = vshll.u32 %v251, 16
          %v302 = vrot.slane %v300, 5
          %v303 = vor.u32 %v299, %v302
          %v304 = vrot.slane %v303, 4
          %v306 = vshll.u32 %v259, 16
          %v308 = vrot.slane %v306, 5
          %v309 = vsel %vm267, %v304, %v308
          %v311 = vshrl.u32 %v252, 16
          %v313 = vrot.slane %v311, 4
          %v314 = vshll.u32 %v252, 16
          %v316 = vrot.slane %v314, 5
          %v317 = vor.u32 %v313, %v316
          %v318 = vrot.slane %v317, 4
          %v320 = vshll.u32 %v260, 16
          %v322 = vrot.slane %v320, 5
          %v323 = vsel %vm267, %v318, %v322
          %v325 = vshrl.u32 %v253, 16
          %v327 = vrot.slane %v325, 4
          %v328 = vshll.u32 %v253, 16
          %v330 = vrot.slane %v328, 5
          %v331 = vor.u32 %v327, %v330
          %v332 = vrot.slane %v331, 4
          %v334 = vshll.u32 %v261, 16
          %v336 = vrot.slane %v334, 5
          %v337 = vsel %vm267, %v332, %v336
          %v339 = vshrl.u32 %v254, 16
          %v341 = vrot.slane %v339, 4
          %v342 = vshll.u32 %v254, 16
          %v344 = vrot.slane %v342, 5
          %v345 = vor.u32 %v341, %v344
          %v346 = vrot.slane %v345, 4
          %v348 = vshll.u32 %v262, 16
          %v350 = vrot.slane %v348, 5
          %v351 = vsel %vm267, %v346, %v350
          %v353 = vshrl.u32 %v255, 16
          %v355 = vrot.slane %v353, 4
          %v356 = vshll.u32 %v255, 16
          %v358 = vrot.slane %v356, 5
          %v359 = vor.u32 %v355, %v358
          %v360 = vrot.slane %v359, 4
          %v362 = vshll.u32 %v263, 16
          %v364 = vrot.slane %v362, 5
          %v365 = vsel %vm267, %v360, %v364
          %v367 = vshrl.u32 %v256, 16
          %v369 = vrot.slane %v367, 4
          %v370 = vshll.u32 %v256, 16
          %v372 = vrot.slane %v370, 5
          %v373 = vor.u32 %v369, %v372
          %v374 = vrot.slane %v373, 4
          %v376 = vshll.u32 %v264, 16
          %v378 = vrot.slane %v376, 5
          %v379 = vsel %vm267, %v374, %v378
          %v380 = vld [vmem:[%s241] sm:$0xe]
          %v381 = vld [vmem:[%s241 + $0x8] sm:$0xe]
          %v382 = vld [vmem:[%s241 + $0x10] sm:$0xe]
          %v383 = vld [vmem:[%s241 + $0x18] sm:$0xe]
          %v384 = vld [vmem:[%s241 + $0x20] sm:$0xe]
          %v385 = vld [vmem:[%s241 + $0x28] sm:$0xe]
          %v386 = vld [vmem:[%s241 + $0x30] sm:$0xe]
          %v387 = vld [vmem:[%s241 + $0x38] sm:$0xe]
          %vm404 = vcmask 1042432
          %vm405 = vcmask 1046532
          %vm406 = vmor %vm404, %vm405
          %v407 = vrot.slane %v380, 5
          %v408 = vrot.slane %v407, 4
          %v409 = vrot.slane %v257, 5
          %v410 = vsel %vm406, %v408, %v409
          %v411 = vrot.slane %v381, 5
          %v412 = vrot.slane %v411, 4
          %v413 = vrot.slane %v258, 5
          %v414 = vsel %vm406, %v412, %v413
          %v415 = vrot.slane %v382, 5
          %v416 = vrot.slane %v415, 4
          %v417 = vrot.slane %v259, 5
          %v418 = vsel %vm406, %v416, %v417
          %v419 = vrot.slane %v383, 5
          %v420 = vrot.slane %v419, 4
          %v421 = vrot.slane %v260, 5
          %v422 = vsel %vm406, %v420, %v421
          %v423 = vrot.slane %v384, 5
          %v424 = vrot.slane %v423, 4
          %v425 = vrot.slane %v261, 5
          %v426 = vsel %vm406, %v424, %v425
          %v427 = vrot.slane %v385, 5
          %v428 = vrot.slane %v427, 4
          %v429 = vrot.slane %v262, 5
          %v430 = vsel %vm406, %v428, %v429
          %v431 = vrot.slane %v386, 5
          %v432 = vrot.slane %v431, 4
          %v433 = vrot.slane %v263, 5
          %v434 = vsel %vm406, %v432, %v433
          %v435 = vrot.slane %v387, 5
          %v436 = vrot.slane %v435, 4
          %v437 = vrot.slane %v264, 5
          %v438 = vsel %vm406, %v436, %v437
          %s439 = scalar_lea.vmem %s241, 8
          %v440 = vld [vmem:[%s439] sm:$0xf]
          %v441 = vld [vmem:[%s439 + $0x8] sm:$0xf]
          %v442 = vld [vmem:[%s439 + $0x10] sm:$0xf]
          %v443 = vld [vmem:[%s439 + $0x18] sm:$0xf]
          %v444 = vld [vmem:[%s439 + $0x20] sm:$0xf]
          %v445 = vld [vmem:[%s439 + $0x28] sm:$0xf]
          %v446 = vld [vmem:[%s439 + $0x30] sm:$0xf]
          %v447 = vld [vmem:[%s439 + $0x38] sm:$0xf]
          %v448 = vld [vmem:[%s439 + $0x4] sm:$0x1]
          %v449 = vld [vmem:[%s439 + $0xc] sm:$0x1]
          %v450 = vld [vmem:[%s439 + $0x14] sm:$0x1]
          %v451 = vld [vmem:[%s439 + $0x1c] sm:$0x1]
          %v452 = vld [vmem:[%s439 + $0x24] sm:$0x1]
          %v453 = vld [vmem:[%s439 + $0x2c] sm:$0x1]
          %v454 = vld [vmem:[%s439 + $0x34] sm:$0x1]
          %v455 = vld [vmem:[%s439 + $0x3c] sm:$0x1]
          %v457 = vshrl.u32 %v440, 16
          %v459 = vrot.slane %v457, 4
          %v460 = vshll.u32 %v440, 16
          %v462 = vrot.slane %v460, 5
          %v463 = vor.u32 %v459, %v462
          %v464 = vrot.slane %v463, 4
          %v466 = vshll.u32 %v448, 16
          %v468 = vrot.slane %v466, 5
          %v469 = vsel %vm267, %v464, %v468
          %v471 = vshrl.u32 %v441, 16
          %v473 = vrot.slane %v471, 4
          %v474 = vshll.u32 %v441, 16
          %v476 = vrot.slane %v474, 5
          %v477 = vor.u32 %v473, %v476
          %v478 = vrot.slane %v477, 4
          %v480 = vshll.u32 %v449, 16
          %v482 = vrot.slane %v480, 5
          %v483 = vsel %vm267, %v478, %v482
          %v485 = vshrl.u32 %v442, 16
          %v487 = vrot.slane %v485, 4
          %v488 = vshll.u32 %v442, 16
          %v490 = vrot.slane %v488, 5
          %v491 = vor.u32 %v487, %v490
          %v492 = vrot.slane %v491, 4
          %v494 = vshll.u32 %v450, 16
          %v496 = vrot.slane %v494, 5
          %v497 = vsel %vm267, %v492, %v496
          %v499 = vshrl.u32 %v443, 16
          %v501 = vrot.slane %v499, 4
          %v502 = vshll.u32 %v443, 16
          %v504 = vrot.slane %v502, 5
          %v505 = vor.u32 %v501, %v504
          %v506 = vrot.slane %v505, 4
          %v508 = vshll.u32 %v451, 16
          %v510 = vrot.slane %v508, 5
          %v511 = vsel %vm267, %v506, %v510
          %v513 = vshrl.u32 %v444, 16
          %v515 = vrot.slane %v513, 4
          %v516 = vshll.u32 %v444, 16
          %v518 = vrot.slane %v516, 5
          %v519 = vor.u32 %v515, %v518
          %v520 = vrot.slane %v519, 4
          %v522 = vshll.u32 %v452, 16
          %v524 = vrot.slane %v522, 5
          %v525 = vsel %vm267, %v520, %v524
          %v527 = vshrl.u32 %v445, 16
          %v529 = vrot.slane %v527, 4
          %v530 = vshll.u32 %v445, 16
          %v532 = vrot.slane %v530, 5
          %v533 = vor.u32 %v529, %v532
          %v534 = vrot.slane %v533, 4
          %v536 = vshll.u32 %v453, 16
          %v538 = vrot.slane %v536, 5
          %v539 = vsel %vm267, %v534, %v538
          %v541 = vshrl.u32 %v446, 16
          %v543 = vrot.slane %v541, 4
          %v544 = vshll.u32 %v446, 16
          %v546 = vrot.slane %v544, 5
          %v547 = vor.u32 %v543, %v546
          %v548 = vrot.slane %v547, 4
          %v550 = vshll.u32 %v454, 16
          %v552 = vrot.slane %v550, 5
          %v553 = vsel %vm267, %v548, %v552
          %v555 = vshrl.u32 %v447, 16
          %v557 = vrot.slane %v555, 4
          %v558 = vshll.u32 %v447, 16
          %v560 = vrot.slane %v558, 5
          %v561 = vor.u32 %v557, %v560
          %v562 = vrot.slane %v561, 4
          %v564 = vshll.u32 %v455, 16
          %v566 = vrot.slane %v564, 5
          %v567 = vsel %vm267, %v562, %v566
          %v568 = vld [vmem:[%s439] sm:$0xe]
          %v569 = vld [vmem:[%s439 + $0x8] sm:$0xe]
          %v570 = vld [vmem:[%s439 + $0x10] sm:$0xe]
          %v571 = vld [vmem:[%s439 + $0x18] sm:$0xe]
          %v572 = vld [vmem:[%s439 + $0x20] sm:$0xe]
          %v573 = vld [vmem:[%s439 + $0x28] sm:$0xe]
          %v574 = vld [vmem:[%s439 + $0x30] sm:$0xe]
          %v575 = vld [vmem:[%s439 + $0x38] sm:$0xe]
          %v592 = vrot.slane %v568, 5
          %v593 = vrot.slane %v592, 4
          %v594 = vrot.slane %v448, 5
          %v595 = vsel %vm406, %v593, %v594
          %v596 = vrot.slane %v569, 5
          %v597 = vrot.slane %v596, 4
          %v598 = vrot.slane %v449, 5
          %v599 = vsel %vm406, %v597, %v598
          %v600 = vrot.slane %v570, 5
          %v601 = vrot.slane %v600, 4
          %v602 = vrot.slane %v450, 5
          %v603 = vsel %vm406, %v601, %v602
          %v604 = vrot.slane %v571, 5
          %v605 = vrot.slane %v604, 4
          %v606 = vrot.slane %v451, 5
          %v607 = vsel %vm406, %v605, %v606
          %v608 = vrot.slane %v572, 5
          %v609 = vrot.slane %v608, 4
          %v610 = vrot.slane %v452, 5
          %v611 = vsel %vm406, %v609, %v610
          %v612 = vrot.slane %v573, 5
          %v613 = vrot.slane %v612, 4
          %v614 = vrot.slane %v453, 5
          %v615 = vsel %vm406, %v613, %v614
          %v616 = vrot.slane %v574, 5
          %v617 = vrot.slane %v616, 4
          %v618 = vrot.slane %v454, 5
          %v619 = vsel %vm406, %v617, %v618
          %v620 = vrot.slane %v575, 5
          %v621 = vrot.slane %v620, 4
          %v622 = vrot.slane %v455, 5
          %v623 = vsel %vm406, %v621, %v622
          %s624 = scalar_lea.vmem %s241, 16
          %v625 = vld [vmem:[%s624] sm:$0xf]
          %v626 = vld [vmem:[%s624 + $0x8] sm:$0xf]
          %v627 = vld [vmem:[%s624 + $0x10] sm:$0xf]
          %v628 = vld [vmem:[%s624 + $0x18] sm:$0xf]
          %v629 = vld [vmem:[%s624 + $0x20] sm:$0xf]
          %v630 = vld [vmem:[%s624 + $0x28] sm:$0xf]
          %v631 = vld [vmem:[%s624 + $0x30] sm:$0xf]
          %v632 = vld [vmem:[%s624 + $0x38] sm:$0xf]
          %v633 = vld [vmem:[%s624 + $0x4] sm:$0x1]
          %v634 = vld [vmem:[%s624 + $0xc] sm:$0x1]
          %v635 = vld [vmem:[%s624 + $0x14] sm:$0x1]
          %v636 = vld [vmem:[%s624 + $0x1c] sm:$0x1]
          %v637 = vld [vmem:[%s624 + $0x24] sm:$0x1]
          %v638 = vld [vmem:[%s624 + $0x2c] sm:$0x1]
          %v639 = vld [vmem:[%s624 + $0x34] sm:$0x1]
          %v640 = vld [vmem:[%s624 + $0x3c] sm:$0x1]
          %v642 = vshrl.u32 %v625, 16
          %v644 = vrot.slane %v642, 4
          %v645 = vshll.u32 %v625, 16
          %v647 = vrot.slane %v645, 5
          %v648 = vor.u32 %v644, %v647
          %v649 = vrot.slane %v648, 4
          %v651 = vshll.u32 %v633, 16
          %v653 = vrot.slane %v651, 5
          %v654 = vsel %vm267, %v649, %v653
          %v656 = vshrl.u32 %v626, 16
          %v658 = vrot.slane %v656, 4
          %v659 = vshll.u32 %v626, 16
          %v661 = vrot.slane %v659, 5
          %v662 = vor.u32 %v658, %v661
          %v663 = vrot.slane %v662, 4
          %v665 = vshll.u32 %v634, 16
          %v667 = vrot.slane %v665, 5
          %v668 = vsel %vm267, %v663, %v667
          %v670 = vshrl.u32 %v627, 16
          %v672 = vrot.slane %v670, 4
          %v673 = vshll.u32 %v627, 16
          %v675 = vrot.slane %v673, 5
          %v676 = vor.u32 %v672, %v675
          %v677 = vrot.slane %v676, 4
          %v679 = vshll.u32 %v635, 16
          %v681 = vrot.slane %v679, 5
          %v682 = vsel %vm267, %v677, %v681
          %v684 = vshrl.u32 %v628, 16
          %v686 = vrot.slane %v684, 4
          %v687 = vshll.u32 %v628, 16
          %v689 = vrot.slane %v687, 5
          %v690 = vor.u32 %v686, %v689
          %v691 = vrot.slane %v690, 4
          %v693 = vshll.u32 %v636, 16
          %v695 = vrot.slane %v693, 5
          %v696 = vsel %vm267, %v691, %v695
          %v698 = vshrl.u32 %v629, 16
          %v700 = vrot.slane %v698, 4
          %v701 = vshll.u32 %v629, 16
          %v703 = vrot.slane %v701, 5
          %v704 = vor.u32 %v700, %v703
          %v705 = vrot.slane %v704, 4
          %v707 = vshll.u32 %v637, 16
          %v709 = vrot.slane %v707, 5
          %v710 = vsel %vm267, %v705, %v709
          %v712 = vshrl.u32 %v630, 16
          %v714 = vrot.slane %v712, 4
          %v715 = vshll.u32 %v630, 16
          %v717 = vrot.slane %v715, 5
          %v718 = vor.u32 %v714, %v717
          %v719 = vrot.slane %v718, 4
          %v721 = vshll.u32 %v638, 16
          %v723 = vrot.slane %v721, 5
          %v724 = vsel %vm267, %v719, %v723
          %v726 = vshrl.u32 %v631, 16
          %v728 = vrot.slane %v726, 4
          %v729 = vshll.u32 %v631, 16
          %v731 = vrot.slane %v729, 5
          %v732 = vor.u32 %v728, %v731
          %v733 = vrot.slane %v732, 4
          %v735 = vshll.u32 %v639, 16
          %v737 = vrot.slane %v735, 5
          %v738 = vsel %vm267, %v733, %v737
          %v740 = vshrl.u32 %v632, 16
          %v742 = vrot.slane %v740, 4
          %v743 = vshll.u32 %v632, 16
          %v745 = vrot.slane %v743, 5
          %v746 = vor.u32 %v742, %v745
          %v747 = vrot.slane %v746, 4
          %v749 = vshll.u32 %v640, 16
          %v751 = vrot.slane %v749, 5
          %v752 = vsel %vm267, %v747, %v751
          %v753 = vld [vmem:[%s624] sm:$0xe]
          %v754 = vld [vmem:[%s624 + $0x8] sm:$0xe]
          %v755 = vld [vmem:[%s624 + $0x10] sm:$0xe]
          %v756 = vld [vmem:[%s624 + $0x18] sm:$0xe]
          %v757 = vld [vmem:[%s624 + $0x20] sm:$0xe]
          %v758 = vld [vmem:[%s624 + $0x28] sm:$0xe]
          %v759 = vld [vmem:[%s624 + $0x30] sm:$0xe]
          %v760 = vld [vmem:[%s624 + $0x38] sm:$0xe]
          %v777 = vrot.slane %v753, 5
          %v778 = vrot.slane %v777, 4
          %v779 = vrot.slane %v633, 5
          %v780 = vsel %vm406, %v778, %v779
          %v781 = vrot.slane %v754, 5
          %v782 = vrot.slane %v781, 4
          %v783 = vrot.slane %v634, 5
          %v784 = vsel %vm406, %v782, %v783
          %v785 = vrot.slane %v755, 5
          %v786 = vrot.slane %v785, 4
          %v787 = vrot.slane %v635, 5
          %v788 = vsel %vm406, %v786, %v787
          %v789 = vrot.slane %v756, 5
          %v790 = vrot.slane %v789, 4
          %v791 = vrot.slane %v636, 5
          %v792 = vsel %vm406, %v790, %v791
          %v793 = vrot.slane %v757, 5
          %v794 = vrot.slane %v793, 4
          %v795 = vrot.slane %v637, 5
          %v796 = vsel %vm406, %v794, %v795
          %v797 = vrot.slane %v758, 5
          %v798 = vrot.slane %v797, 4
          %v799 = vrot.slane %v638, 5
          %v800 = vsel %vm406, %v798, %v799
          %v801 = vrot.slane %v759, 5
          %v802 = vrot.slane %v801, 4
          %v803 = vrot.slane %v639, 5
          %v804 = vsel %vm406, %v802, %v803
          %v805 = vrot.slane %v760, 5
          %v806 = vrot.slane %v805, 4
          %v807 = vrot.slane %v640, 5
          %v808 = vsel %vm406, %v806, %v807
          %v817 = vunpack.c.l.b16 %v249
          %v818 = vunpack.c.l.b16 %v250
          %v819 = vunpack.c.l.b16 %v251
          %v820 = vunpack.c.l.b16 %v252
          %v821 = vunpack.c.l.b16 %v253
          %v822 = vunpack.c.l.b16 %v254
          %v823 = vunpack.c.l.b16 %v255
          %v824 = vunpack.c.l.b16 %v256
          %v825 = vpack.c.b16 %v818, %v817
          %v826 = vpack.c.b16 %v820, %v819
          %v827 = vpack.c.b16 %v822, %v821
          %v828 = vpack.c.b16 %v824, %v823
          %v833 = vunpack.c.l.b16 %v281
          %v834 = vunpack.c.l.b16 %v295
          %v835 = vunpack.c.l.b16 %v309
          %v836 = vunpack.c.l.b16 %v323
          %v837 = vunpack.c.l.b16 %v337
          %v838 = vunpack.c.l.b16 %v351
          %v839 = vunpack.c.l.b16 %v365
          %v840 = vunpack.c.l.b16 %v379
          %v841 = vpack.c.b16 %v834, %v833
          %v842 = vpack.c.b16 %v836, %v835
          %v843 = vpack.c.b16 %v838, %v837
          %v844 = vpack.c.b16 %v840, %v839
          %v849 = vunpack.c.l.b16 %v410
          %v850 = vunpack.c.l.b16 %v414
          %v851 = vunpack.c.l.b16 %v418
          %v852 = vunpack.c.l.b16 %v422
          %v853 = vunpack.c.l.b16 %v426
          %v854 = vunpack.c.l.b16 %v430
          %v855 = vunpack.c.l.b16 %v434
          %v856 = vunpack.c.l.b16 %v438
          %v857 = vpack.c.b16 %v850, %v849
          %v858 = vpack.c.b16 %v852, %v851
          %v859 = vpack.c.b16 %v854, %v853
          %v860 = vpack.c.b16 %v856, %v855
          %v873 = vunpack.c.l.b16 %v440
          %v874 = vunpack.c.l.b16 %v441
          %v875 = vunpack.c.l.b16 %v442
          %v876 = vunpack.c.l.b16 %v443
          %v877 = vunpack.c.l.b16 %v444
          %v878 = vunpack.c.l.b16 %v445
          %v879 = vunpack.c.l.b16 %v446
          %v880 = vunpack.c.l.b16 %v447
          %v881 = vpack.c.b16 %v874, %v873
          %v882 = vpack.c.b16 %v876, %v875
          %v883 = vpack.c.b16 %v878, %v877
          %v884 = vpack.c.b16 %v880, %v879
          %v889 = vunpack.c.l.b16 %v469
          %v890 = vunpack.c.l.b16 %v483
          %v891 = vunpack.c.l.b16 %v497
          %v892 = vunpack.c.l.b16 %v511
          %v893 = vunpack.c.l.b16 %v525
          %v894 = vunpack.c.l.b16 %v539
          %v895 = vunpack.c.l.b16 %v553
          %v896 = vunpack.c.l.b16 %v567
          %v897 = vpack.c.b16 %v890, %v889
          %v898 = vpack.c.b16 %v892, %v891
          %v899 = vpack.c.b16 %v894, %v893
          %v900 = vpack.c.b16 %v896, %v895
          %v905 = vunpack.c.l.b16 %v595
          %v906 = vunpack.c.l.b16 %v599
          %v907 = vunpack.c.l.b16 %v603
          %v908 = vunpack.c.l.b16 %v607
          %v909 = vunpack.c.l.b16 %v611
          %v910 = vunpack.c.l.b16 %v615
          %v911 = vunpack.c.l.b16 %v619
          %v912 = vunpack.c.l.b16 %v623
          %v913 = vpack.c.b16 %v906, %v905
          %v914 = vpack.c.b16 %v908, %v907
          %v915 = vpack.c.b16 %v910, %v909
          %v916 = vpack.c.b16 %v912, %v911
          %v929 = vunpack.c.l.b16 %v625
          %v930 = vunpack.c.l.b16 %v626
          %v931 = vunpack.c.l.b16 %v627
          %v932 = vunpack.c.l.b16 %v628
          %v933 = vunpack.c.l.b16 %v629
          %v934 = vunpack.c.l.b16 %v630
          %v935 = vunpack.c.l.b16 %v631
          %v936 = vunpack.c.l.b16 %v632
          %v937 = vpack.c.b16 %v930, %v929
          %v938 = vpack.c.b16 %v932, %v931
          %v939 = vpack.c.b16 %v934, %v933
          %v940 = vpack.c.b16 %v936, %v935
          %v945 = vunpack.c.l.b16 %v654
          %v946 = vunpack.c.l.b16 %v668
          %v947 = vunpack.c.l.b16 %v682
          %v948 = vunpack.c.l.b16 %v696
          %v949 = vunpack.c.l.b16 %v710
          %v950 = vunpack.c.l.b16 %v724
          %v951 = vunpack.c.l.b16 %v738
          %v952 = vunpack.c.l.b16 %v752
          %v953 = vpack.c.b16 %v946, %v945
          %v954 = vpack.c.b16 %v948, %v947
          %v955 = vpack.c.b16 %v950, %v949
          %v956 = vpack.c.b16 %v952, %v951
          %v961 = vunpack.c.l.b16 %v780
          %v962 = vunpack.c.l.b16 %v784
          %v963 = vunpack.c.l.b16 %v788
          %v964 = vunpack.c.l.b16 %v792
          %v965 = vunpack.c.l.b16 %v796
          %v966 = vunpack.c.l.b16 %v800
          %v967 = vunpack.c.l.b16 %v804
          %v968 = vunpack.c.l.b16 %v808
          %v969 = vpack.c.b16 %v962, %v961
          %v970 = vpack.c.b16 %v964, %v963
          %v971 = vpack.c.b16 %v966, %v965
          %v972 = vpack.c.b16 %v968, %v967
          %v977 = vld [vmem:[#allocation10] sm:$0xf]
          %v978 = vld [vmem:[#allocation10 + $0x4] sm:$0xf]
          %v979 = vld [vmem:[#allocation10 + $0x8] sm:$0xf]
          %v980 = vld [vmem:[#allocation10 + $0xc] sm:$0xf]
          %v981 = vld [vmem:[#allocation10 + $0x10] sm:$0xf]
          %v982 = vld [vmem:[#allocation10 + $0x14] sm:$0xf]
          %v983 = vld [vmem:[#allocation10 + $0x18] sm:$0xf]
          %v984 = vld [vmem:[#allocation10 + $0x1c] sm:$0xf]
          %v985 = vld [vmem:[#allocation10 + $0x20] sm:$0xf]
          %v986 = vld [vmem:[#allocation10 + $0x24] sm:$0xf]
          %v987 = vld [vmem:[#allocation10 + $0x28] sm:$0xf]
          %v988 = vld [vmem:[#allocation10 + $0x2c] sm:$0xf]
          %v989 = vld [vmem:[#allocation10 + $0x30] sm:$0xf]
          %v990 = vld [vmem:[#allocation10 + $0x34] sm:$0xf]
          %v991 = vld [vmem:[#allocation10 + $0x38] sm:$0xf]
          %v992 = vld [vmem:[#allocation10 + $0x3c] sm:$0xf]
          %v993 = vld [vmem:[#allocation10 + $0x40] sm:$0xf]
          %v994 = vld [vmem:[#allocation10 + $0x44] sm:$0xf]
          %v995 = vld [vmem:[#allocation10 + $0x48] sm:$0xf]
          %v996 = vld [vmem:[#allocation10 + $0x4c] sm:$0xf]
          %v997 = vld [vmem:[#allocation10 + $0x50] sm:$0xf]
          %v998 = vld [vmem:[#allocation10 + $0x54] sm:$0xf]
          %v999 = vld [vmem:[#allocation10 + $0x58] sm:$0xf]
          %v1000 = vld [vmem:[#allocation10 + $0x5c] sm:$0xf]
          %v1001 = vld [vmem:[#allocation10 + $0x60] sm:$0xf]
          %v1002 = vld [vmem:[#allocation10 + $0x64] sm:$0xf]
          %v1003 = vld [vmem:[#allocation10 + $0x68] sm:$0xf]
          %v1004 = vld [vmem:[#allocation10 + $0x6c] sm:$0xf]
          %v1005 = vld [vmem:[#allocation10 + $0x70] sm:$0xf]
          %v1006 = vld [vmem:[#allocation10 + $0x74] sm:$0xf]
          %v1007 = vld [vmem:[#allocation10 + $0x78] sm:$0xf]
          %v1008 = vld [vmem:[#allocation10 + $0x7c] sm:$0xf]
          %v1009 = vld [vmem:[#allocation10 + $0x80] sm:$0xf]
          %v1010 = vld [vmem:[#allocation10 + $0x84] sm:$0xf]
          %v1011 = vld [vmem:[#allocation10 + $0x88] sm:$0xf]
          %v1012 = vld [vmem:[#allocation10 + $0x8c] sm:$0xf]
          %v1013 = vld [vmem:[#allocation10 + $0x90] sm:$0xf]
          %v1014 = vld [vmem:[#allocation10 + $0x94] sm:$0xf]
          %v1015 = vld [vmem:[#allocation10 + $0x98] sm:$0xf]
          %v1016 = vld [vmem:[#allocation10 + $0x9c] sm:$0xf]
          %v1017 = vld [vmem:[#allocation10 + $0xa0] sm:$0xf]
          %v1018 = vld [vmem:[#allocation10 + $0xa4] sm:$0xf]
          %v1019 = vld [vmem:[#allocation10 + $0xa8] sm:$0xf]
          %v1020 = vld [vmem:[#allocation10 + $0xac] sm:$0xf]
          %v1021 = vld [vmem:[#allocation10 + $0xb0] sm:$0xf]
          %v1022 = vld [vmem:[#allocation10 + $0xb4] sm:$0xf]
          %v1023 = vld [vmem:[#allocation10 + $0xb8] sm:$0xf]
          %v1024 = vld [vmem:[#allocation10 + $0xbc] sm:$0xf]
          %v1025 = vld [vmem:[#allocation10 + $0xc0] sm:$0xf]
          %v1026 = vld [vmem:[#allocation10 + $0xc4] sm:$0xf]
          %v1027 = vld [vmem:[#allocation10 + $0xc8] sm:$0xf]
          %v1028 = vld [vmem:[#allocation10 + $0xcc] sm:$0xf]
          %v1029 = vld [vmem:[#allocation10 + $0xd0] sm:$0xf]
          %v1030 = vld [vmem:[#allocation10 + $0xd4] sm:$0xf]
          %v1031 = vld [vmem:[#allocation10 + $0xd8] sm:$0xf]
          %v1032 = vld [vmem:[#allocation10 + $0xdc] sm:$0xf]
          %v1033 = vld [vmem:[#allocation10 + $0xe0] sm:$0xf]
          %v1034 = vld [vmem:[#allocation10 + $0xe4] sm:$0xf]
          %v1035 = vld [vmem:[#allocation10 + $0xe8] sm:$0xf]
          %v1036 = vld [vmem:[#allocation10 + $0xec] sm:$0xf]
          %v1037 = vld [vmem:[#allocation10 + $0xf0] sm:$0xf]
          %v1038 = vld [vmem:[#allocation10 + $0xf4] sm:$0xf]
          %v1039 = vld [vmem:[#allocation10 + $0xf8] sm:$0xf]
          %v1040 = vld [vmem:[#allocation10 + $0xfc] sm:$0xf]
          %v1041 = vld [vmem:[#allocation10 + $0x100] sm:$0xf]
          %v1042 = vld [vmem:[#allocation10 + $0x104] sm:$0xf]
          %v1043 = vld [vmem:[#allocation10 + $0x108] sm:$0xf]
          %v1044 = vld [vmem:[#allocation10 + $0x10c] sm:$0xf]
          %v1045 = vld [vmem:[#allocation10 + $0x110] sm:$0xf]
          %v1046 = vld [vmem:[#allocation10 + $0x114] sm:$0xf]
          %v1047 = vld [vmem:[#allocation10 + $0x118] sm:$0xf]
          %v1048 = vld [vmem:[#allocation10 + $0x11c] sm:$0xf]
          %v1049 = vld [vmem:[#allocation10 + $0x120] sm:$0xf]
          %v1050 = vld [vmem:[#allocation10 + $0x124] sm:$0xf]
          %v1051 = vld [vmem:[#allocation10 + $0x128] sm:$0xf]
          %v1052 = vld [vmem:[#allocation10 + $0x12c] sm:$0xf]
          %v1053 = vld [vmem:[#allocation10 + $0x130] sm:$0xf]
          %v1054 = vld [vmem:[#allocation10 + $0x134] sm:$0xf]
          %v1055 = vld [vmem:[#allocation10 + $0x138] sm:$0xf]
          %v1056 = vld [vmem:[#allocation10 + $0x13c] sm:$0xf]
          %v1057 = vld [vmem:[#allocation10 + $0x140] sm:$0xf]
          %v1058 = vld [vmem:[#allocation10 + $0x144] sm:$0xf]
          %v1059 = vld [vmem:[#allocation10 + $0x148] sm:$0xf]
          %v1060 = vld [vmem:[#allocation10 + $0x14c] sm:$0xf]
          %v1061 = vld [vmem:[#allocation10 + $0x150] sm:$0xf]
          %v1062 = vld [vmem:[#allocation10 + $0x154] sm:$0xf]
          %v1063 = vld [vmem:[#allocation10 + $0x158] sm:$0xf]
          %v1064 = vld [vmem:[#allocation10 + $0x15c] sm:$0xf]
          %v1065 = vld [vmem:[#allocation10 + $0x160] sm:$0xf]
          %v1066 = vld [vmem:[#allocation10 + $0x164] sm:$0xf]
          %v1067 = vld [vmem:[#allocation10 + $0x168] sm:$0xf]
          %v1068 = vld [vmem:[#allocation10 + $0x16c] sm:$0xf]
          %v1069 = vld [vmem:[#allocation10 + $0x170] sm:$0xf]
          %v1070 = vld [vmem:[#allocation10 + $0x174] sm:$0xf]
          %v1071 = vld [vmem:[#allocation10 + $0x178] sm:$0xf]
          %v1072 = vld [vmem:[#allocation10 + $0x17c] sm:$0xf]
          %v1073 = vld [vmem:[#allocation10 + $0x180] sm:$0xf]
          %v1074 = vld [vmem:[#allocation10 + $0x184] sm:$0xf]
          %v1075 = vld [vmem:[#allocation10 + $0x188] sm:$0xf]
          %v1076 = vld [vmem:[#allocation10 + $0x18c] sm:$0xf]
          %v1077 = vld [vmem:[#allocation10 + $0x190] sm:$0xf]
          %v1078 = vld [vmem:[#allocation10 + $0x194] sm:$0xf]
          %v1079 = vld [vmem:[#allocation10 + $0x198] sm:$0xf]
          %v1080 = vld [vmem:[#allocation10 + $0x19c] sm:$0xf]
          %v1081 = vld [vmem:[#allocation10 + $0x1a0] sm:$0xf]
          %v1082 = vld [vmem:[#allocation10 + $0x1a4] sm:$0xf]
          %v1083 = vld [vmem:[#allocation10 + $0x1a8] sm:$0xf]
          %v1084 = vld [vmem:[#allocation10 + $0x1ac] sm:$0xf]
          %v1085 = vld [vmem:[#allocation10 + $0x1b0] sm:$0xf]
          %v1086 = vld [vmem:[#allocation10 + $0x1b4] sm:$0xf]
          %v1087 = vld [vmem:[#allocation10 + $0x1b8] sm:$0xf]
          %v1088 = vld [vmem:[#allocation10 + $0x1bc] sm:$0xf]
          %v1089 = vld [vmem:[#allocation10 + $0x1c0] sm:$0xf]
          %v1090 = vld [vmem:[#allocation10 + $0x1c4] sm:$0xf]
          %v1091 = vld [vmem:[#allocation10 + $0x1c8] sm:$0xf]
          %v1092 = vld [vmem:[#allocation10 + $0x1cc] sm:$0xf]
          %v1093 = vld [vmem:[#allocation10 + $0x1d0] sm:$0xf]
          %v1094 = vld [vmem:[#allocation10 + $0x1d4] sm:$0xf]
          %v1095 = vld [vmem:[#allocation10 + $0x1d8] sm:$0xf]
          %v1096 = vld [vmem:[#allocation10 + $0x1dc] sm:$0xf]
          %v1097 = vld [vmem:[#allocation10 + $0x1e0] sm:$0xf]
          %v1098 = vld [vmem:[#allocation10 + $0x1e4] sm:$0xf]
          %v1099 = vld [vmem:[#allocation10 + $0x1e8] sm:$0xf]
          %v1100 = vld [vmem:[#allocation10 + $0x1ec] sm:$0xf]
          %v1101 = vld [vmem:[#allocation10 + $0x1f0] sm:$0xf]
          %v1102 = vld [vmem:[#allocation10 + $0x1f4] sm:$0xf]
          %v1103 = vld [vmem:[#allocation10 + $0x1f8] sm:$0xf]
          %v1104 = vld [vmem:[#allocation10 + $0x1fc] sm:$0xf]
          %v1105 = vld [vmem:[#allocation10 + $0x200] sm:$0xf]
          %v1106 = vld [vmem:[#allocation10 + $0x204] sm:$0xf]
          %v1107 = vld [vmem:[#allocation10 + $0x208] sm:$0xf]
          %v1108 = vld [vmem:[#allocation10 + $0x20c] sm:$0xf]
          %v1109 = vld [vmem:[#allocation10 + $0x210] sm:$0xf]
          %v1110 = vld [vmem:[#allocation10 + $0x214] sm:$0xf]
          %v1111 = vld [vmem:[#allocation10 + $0x218] sm:$0xf]
          %v1112 = vld [vmem:[#allocation10 + $0x21c] sm:$0xf]
          %v1113 = vld [vmem:[#allocation10 + $0x220] sm:$0xf]
          %v1114 = vld [vmem:[#allocation10 + $0x224] sm:$0xf]
          %v1115 = vld [vmem:[#allocation10 + $0x228] sm:$0xf]
          %v1116 = vld [vmem:[#allocation10 + $0x22c] sm:$0xf]
          %v1117 = vld [vmem:[#allocation10 + $0x230] sm:$0xf]
          %v1118 = vld [vmem:[#allocation10 + $0x234] sm:$0xf]
          %v1119 = vld [vmem:[#allocation10 + $0x238] sm:$0xf]
          %v1120 = vld [vmem:[#allocation10 + $0x23c] sm:$0xf]
          %v1265 = vunpack.c.l.b16 %v977
          %v1266 = vunpack.c.l.b16 %v978
          %v1267 = vunpack.c.l.b16 %v979
          %v1268 = vunpack.c.l.b16 %v980
          %v1269 = vunpack.c.l.b16 %v981
          %v1270 = vunpack.c.l.b16 %v982
          %v1271 = vunpack.c.l.b16 %v983
          %v1272 = vunpack.c.l.b16 %v984
          %v1273 = vunpack.c.l.b16 %v985
          %v1274 = vunpack.c.l.b16 %v986
          %v1275 = vunpack.c.l.b16 %v987
          %v1276 = vunpack.c.l.b16 %v988
          %v1277 = vunpack.c.l.b16 %v989
          %v1278 = vunpack.c.l.b16 %v990
          %v1279 = vunpack.c.l.b16 %v991
          %v1280 = vunpack.c.l.b16 %v992
          %v1281 = vunpack.c.l.b16 %v993
          %v1282 = vunpack.c.l.b16 %v994
          %v1283 = vunpack.c.l.b16 %v995
          %v1284 = vunpack.c.l.b16 %v996
          %v1285 = vunpack.c.l.b16 %v997
          %v1286 = vunpack.c.l.b16 %v998
          %v1287 = vunpack.c.l.b16 %v999
          %v1288 = vunpack.c.l.b16 %v1000
          %v1289 = vunpack.c.l.b16 %v1001
          %v1290 = vunpack.c.l.b16 %v1002
          %v1291 = vunpack.c.l.b16 %v1003
          %v1292 = vunpack.c.l.b16 %v1004
          %v1293 = vunpack.c.l.b16 %v1005
          %v1294 = vunpack.c.l.b16 %v1006
          %v1295 = vunpack.c.l.b16 %v1007
          %v1296 = vunpack.c.l.b16 %v1008
          %v1297 = vunpack.c.l.b16 %v1009
          %v1298 = vunpack.c.l.b16 %v1010
          %v1299 = vunpack.c.l.b16 %v1011
          %v1300 = vunpack.c.l.b16 %v1012
          %v1301 = vunpack.c.l.b16 %v1013
          %v1302 = vunpack.c.l.b16 %v1014
          %v1303 = vunpack.c.l.b16 %v1015
          %v1304 = vunpack.c.l.b16 %v1016
          %v1305 = vunpack.c.l.b16 %v1017
          %v1306 = vunpack.c.l.b16 %v1018
          %v1307 = vunpack.c.l.b16 %v1019
          %v1308 = vunpack.c.l.b16 %v1020
          %v1309 = vunpack.c.l.b16 %v1021
          %v1310 = vunpack.c.l.b16 %v1022
          %v1311 = vunpack.c.l.b16 %v1023
          %v1312 = vunpack.c.l.b16 %v1024
          %v1313 = vunpack.c.l.b16 %v1025
          %v1314 = vunpack.c.l.b16 %v1026
          %v1315 = vunpack.c.l.b16 %v1027
          %v1316 = vunpack.c.l.b16 %v1028
          %v1317 = vunpack.c.l.b16 %v1029
          %v1318 = vunpack.c.l.b16 %v1030
          %v1319 = vunpack.c.l.b16 %v1031
          %v1320 = vunpack.c.l.b16 %v1032
          %v1321 = vunpack.c.l.b16 %v1033
          %v1322 = vunpack.c.l.b16 %v1034
          %v1323 = vunpack.c.l.b16 %v1035
          %v1324 = vunpack.c.l.b16 %v1036
          %v1325 = vunpack.c.l.b16 %v1037
          %v1326 = vunpack.c.l.b16 %v1038
          %v1327 = vunpack.c.l.b16 %v1039
          %v1328 = vunpack.c.l.b16 %v1040
          %v1329 = vunpack.c.l.b16 %v1041
          %v1330 = vunpack.c.l.b16 %v1042
          %v1331 = vunpack.c.l.b16 %v1043
          %v1332 = vunpack.c.l.b16 %v1044
          %v1333 = vunpack.c.l.b16 %v1045
          %v1334 = vunpack.c.l.b16 %v1046
          %v1335 = vunpack.c.l.b16 %v1047
          %v1336 = vunpack.c.l.b16 %v1048
          %v1337 = vunpack.c.l.b16 %v1049
          %v1338 = vunpack.c.l.b16 %v1050
          %v1339 = vunpack.c.l.b16 %v1051
          %v1340 = vunpack.c.l.b16 %v1052
          %v1341 = vunpack.c.l.b16 %v1053
          %v1342 = vunpack.c.l.b16 %v1054
          %v1343 = vunpack.c.l.b16 %v1055
          %v1344 = vunpack.c.l.b16 %v1056
          %v1345 = vunpack.c.l.b16 %v1057
          %v1346 = vunpack.c.l.b16 %v1058
          %v1347 = vunpack.c.l.b16 %v1059
          %v1348 = vunpack.c.l.b16 %v1060
          %v1349 = vunpack.c.l.b16 %v1061
          %v1350 = vunpack.c.l.b16 %v1062
          %v1351 = vunpack.c.l.b16 %v1063
          %v1352 = vunpack.c.l.b16 %v1064
          %v1353 = vunpack.c.l.b16 %v1065
          %v1354 = vunpack.c.l.b16 %v1066
          %v1355 = vunpack.c.l.b16 %v1067
          %v1356 = vunpack.c.l.b16 %v1068
          %v1357 = vunpack.c.l.b16 %v1069
          %v1358 = vunpack.c.l.b16 %v1070
          %v1359 = vunpack.c.l.b16 %v1071
          %v1360 = vunpack.c.l.b16 %v1072
          %v1361 = vunpack.c.l.b16 %v1073
          %v1362 = vunpack.c.l.b16 %v1074
          %v1363 = vunpack.c.l.b16 %v1075
          %v1364 = vunpack.c.l.b16 %v1076
          %v1365 = vunpack.c.l.b16 %v1077
          %v1366 = vunpack.c.l.b16 %v1078
          %v1367 = vunpack.c.l.b16 %v1079
          %v1368 = vunpack.c.l.b16 %v1080
          %v1369 = vunpack.c.l.b16 %v1081
          %v1370 = vunpack.c.l.b16 %v1082
          %v1371 = vunpack.c.l.b16 %v1083
          %v1372 = vunpack.c.l.b16 %v1084
          %v1373 = vunpack.c.l.b16 %v1085
          %v1374 = vunpack.c.l.b16 %v1086
          %v1375 = vunpack.c.l.b16 %v1087
          %v1376 = vunpack.c.l.b16 %v1088
          %v1377 = vunpack.c.l.b16 %v1089
          %v1378 = vunpack.c.l.b16 %v1090
          %v1379 = vunpack.c.l.b16 %v1091
          %v1380 = vunpack.c.l.b16 %v1092
          %v1381 = vunpack.c.l.b16 %v1093
          %v1382 = vunpack.c.l.b16 %v1094
          %v1383 = vunpack.c.l.b16 %v1095
          %v1384 = vunpack.c.l.b16 %v1096
          %v1385 = vunpack.c.l.b16 %v1097
          %v1386 = vunpack.c.l.b16 %v1098
          %v1387 = vunpack.c.l.b16 %v1099
          %v1388 = vunpack.c.l.b16 %v1100
          %v1389 = vunpack.c.l.b16 %v1101
          %v1390 = vunpack.c.l.b16 %v1102
          %v1391 = vunpack.c.l.b16 %v1103
          %v1392 = vunpack.c.l.b16 %v1104
          %v1393 = vunpack.c.l.b16 %v1105
          %v1394 = vunpack.c.l.b16 %v1106
          %v1395 = vunpack.c.l.b16 %v1107
          %v1396 = vunpack.c.l.b16 %v1108
          %v1397 = vunpack.c.l.b16 %v1109
          %v1398 = vunpack.c.l.b16 %v1110
          %v1399 = vunpack.c.l.b16 %v1111
          %v1400 = vunpack.c.l.b16 %v1112
          %v1401 = vunpack.c.l.b16 %v1113
          %v1402 = vunpack.c.l.b16 %v1114
          %v1403 = vunpack.c.l.b16 %v1115
          %v1404 = vunpack.c.l.b16 %v1116
          %v1405 = vunpack.c.l.b16 %v1117
          %v1406 = vunpack.c.l.b16 %v1118
          %v1407 = vunpack.c.l.b16 %v1119
          %v1408 = vunpack.c.l.b16 %v1120
          %v1409 = vpack.c.b16 %v1266, %v1265
          %v1410 = vpack.c.b16 %v1268, %v1267
          %v1411 = vpack.c.b16 %v1270, %v1269
          %v1412 = vpack.c.b16 %v1272, %v1271
          %v1413 = vpack.c.b16 %v1274, %v1273
          %v1414 = vpack.c.b16 %v1276, %v1275
          %v1415 = vpack.c.b16 %v1278, %v1277
          %v1416 = vpack.c.b16 %v1280, %v1279
          %v1417 = vpack.c.b16 %v1282, %v1281
          %v1418 = vpack.c.b16 %v1284, %v1283
          %v1419 = vpack.c.b16 %v1286, %v1285
          %v1420 = vpack.c.b16 %v1288, %v1287
          %v1421 = vpack.c.b16 %v1290, %v1289
          %v1422 = vpack.c.b16 %v1292, %v1291
          %v1423 = vpack.c.b16 %v1294, %v1293
          %v1424 = vpack.c.b16 %v1296, %v1295
          %v1425 = vpack.c.b16 %v1298, %v1297
          %v1426 = vpack.c.b16 %v1300, %v1299
          %v1427 = vpack.c.b16 %v1302, %v1301
          %v1428 = vpack.c.b16 %v1304, %v1303
          %v1429 = vpack.c.b16 %v1306, %v1305
          %v1430 = vpack.c.b16 %v1308, %v1307
          %v1431 = vpack.c.b16 %v1310, %v1309
          %v1432 = vpack.c.b16 %v1312, %v1311
          %v1433 = vpack.c.b16 %v1314, %v1313
          %v1434 = vpack.c.b16 %v1316, %v1315
          %v1435 = vpack.c.b16 %v1318, %v1317
          %v1436 = vpack.c.b16 %v1320, %v1319
          %v1437 = vpack.c.b16 %v1322, %v1321
          %v1438 = vpack.c.b16 %v1324, %v1323
          %v1439 = vpack.c.b16 %v1326, %v1325
          %v1440 = vpack.c.b16 %v1328, %v1327
          %v1441 = vpack.c.b16 %v1330, %v1329
          %v1442 = vpack.c.b16 %v1332, %v1331
          %v1443 = vpack.c.b16 %v1334, %v1333
          %v1444 = vpack.c.b16 %v1336, %v1335
          %v1445 = vpack.c.b16 %v1338, %v1337
          %v1446 = vpack.c.b16 %v1340, %v1339
          %v1447 = vpack.c.b16 %v1342, %v1341
          %v1448 = vpack.c.b16 %v1344, %v1343
          %v1449 = vpack.c.b16 %v1346, %v1345
          %v1450 = vpack.c.b16 %v1348, %v1347
          %v1451 = vpack.c.b16 %v1350, %v1349
          %v1452 = vpack.c.b16 %v1352, %v1351
          %v1453 = vpack.c.b16 %v1354, %v1353
          %v1454 = vpack.c.b16 %v1356, %v1355
          %v1455 = vpack.c.b16 %v1358, %v1357
          %v1456 = vpack.c.b16 %v1360, %v1359
          %v1457 = vpack.c.b16 %v1362, %v1361
          %v1458 = vpack.c.b16 %v1364, %v1363
          %v1459 = vpack.c.b16 %v1366, %v1365
          %v1460 = vpack.c.b16 %v1368, %v1367
          %v1461 = vpack.c.b16 %v1370, %v1369
          %v1462 = vpack.c.b16 %v1372, %v1371
          %v1463 = vpack.c.b16 %v1374, %v1373
          %v1464 = vpack.c.b16 %v1376, %v1375
          %v1465 = vpack.c.b16 %v1378, %v1377
          %v1466 = vpack.c.b16 %v1380, %v1379
          %v1467 = vpack.c.b16 %v1382, %v1381
          %v1468 = vpack.c.b16 %v1384, %v1383
          %v1469 = vpack.c.b16 %v1386, %v1385
          %v1470 = vpack.c.b16 %v1388, %v1387
          %v1471 = vpack.c.b16 %v1390, %v1389
          %v1472 = vpack.c.b16 %v1392, %v1391
          %v1473 = vpack.c.b16 %v1394, %v1393
          %v1474 = vpack.c.b16 %v1396, %v1395
          %v1475 = vpack.c.b16 %v1398, %v1397
          %v1476 = vpack.c.b16 %v1400, %v1399
          %v1477 = vpack.c.b16 %v1402, %v1401
          %v1478 = vpack.c.b16 %v1404, %v1403
          %v1479 = vpack.c.b16 %v1406, %v1405
          %v1480 = vpack.c.b16 %v1408, %v1407
          %1553 = vmatprep.subr.bf16.mxu0 0
          %1554 = vmatpush1.bf16.msra.mxu0 %v1416
          %1555 = vmatprep.subr.bf16.mxu0 0
          %1556 = vmatpush1.bf16.msra.mxu0 %v1415
          %1557 = vmatprep.subr.bf16.mxu0 0
          %1558 = vmatpush1.bf16.msra.mxu0 %v1414
          %1559 = vmatprep.subr.bf16.mxu0 0
          %1560 = vmatpush1.bf16.msra.mxu0 %v1413
          %1561 = vmatprep.subr.bf16.mxu0 0
          %1562 = vmatpush1.bf16.msra.mxu0 %v1412
          %1563 = vmatprep.subr.bf16.mxu0 0
          %1564 = vmatpush1.bf16.msra.mxu0 %v1411
          %1565 = vmatprep.subr.bf16.mxu0 0
          %1566 = vmatpush1.bf16.msra.mxu0 %v1410
          %1567 = vmatprep.subr.bf16.mxu0 0
          %1568 = vmatpush1.bf16.msra.mxu0 %v1409
          %1569 = vmatprep.subr.bf16.mxu0 0
          %1570 = vmatpush2.bf16.msra.mxu0 %v1424
          %1571 = vmatprep.subr.bf16.mxu0 0
          %1572 = vmatpush2.bf16.msra.mxu0 %v1423
          %1573 = vmatprep.subr.bf16.mxu0 0
          %1574 = vmatpush2.bf16.msra.mxu0 %v1422
          %1575 = vmatprep.subr.bf16.mxu0 0
          %1576 = vmatpush2.bf16.msra.mxu0 %v1421
          %1577 = vmatprep.subr.bf16.mxu0 0
          %1578 = vmatpush2.bf16.msra.mxu0 %v1420
          %1579 = vmatprep.subr.bf16.mxu0 0
          %1580 = vmatpush2.bf16.msra.mxu0 %v1419
          %1581 = vmatprep.subr.bf16.mxu0 0
          %1582 = vmatpush2.bf16.msra.mxu0 %v1418
          %1583 = vmatprep.subr.bf16.mxu0 0
          %1584 = vmatpush2.bf16.msra.mxu0 %v1417
          %1585 = vmatprep.mubr.bf16.mxu0 %v841
          %1586 = vmatmul.mubr.bf16.gmra.mxu0 %v825
          %v1587 = vpop.f32.mrf.mxu0
          %v1588 = vadd.f32 0.0, %v1587
          %v1589 = vpop.f32.mrf.mxu0
          %v1590 = vpop.f32.mrf.mxu0
          %v1591 = vadd.f32 0.0, %v1590
          %v1592 = vpop.f32.mrf.mxu0
          %1593 = vmatprep.mubr.bf16.mxu0 %v842
          %1594 = vmatmul.mubr.bf16.gmra.mxu0 %v826
          %v1595 = vpop.f32.mrf.mxu0
          %v1596 = vadd.f32 0.0, %v1595
          %v1597 = vpop.f32.mrf.mxu0
          %v1598 = vpop.f32.mrf.mxu0
          %v1599 = vadd.f32 0.0, %v1598
          %v1600 = vpop.f32.mrf.mxu0
          %1601 = vmatprep.mubr.bf16.mxu0 %v843
          %1602 = vmatmul.mubr.bf16.gmra.mxu0 %v827
          %v1603 = vpop.f32.mrf.mxu0
          %v1604 = vadd.f32 0.0, %v1603
          %v1605 = vpop.f32.mrf.mxu0
          %v1606 = vpop.f32.mrf.mxu0
          %v1607 = vadd.f32 0.0, %v1606
          %v1608 = vpop.f32.mrf.mxu0
          %1609 = vmatprep.mubr.bf16.mxu0 %v844
          %1610 = vmatmul.mubr.bf16.gmra.mxu0 %v828
          %v1611 = vpop.f32.mrf.mxu0
          %v1612 = vadd.f32 0.0, %v1611
          %v1613 = vpop.f32.mrf.mxu0
          %v1614 = vpop.f32.mrf.mxu0
          %v1615 = vadd.f32 0.0, %v1614
          %v1616 = vpop.f32.mrf.mxu0
          %1617 = vdwg.mxu0
          %1618 = vmatprep.subr.bf16.mxu0 0
          %1619 = vmatpush1.bf16.msra.mxu0 %v1432
          %1620 = vmatprep.subr.bf16.mxu0 0
          %1621 = vmatpush1.bf16.msra.mxu0 %v1431
          %1622 = vmatprep.subr.bf16.mxu0 0
          %1623 = vmatpush1.bf16.msra.mxu0 %v1430
          %1624 = vmatprep.subr.bf16.mxu0 0
          %1625 = vmatpush1.bf16.msra.mxu0 %v1429
          %1626 = vmatprep.subr.bf16.mxu0 0
          %1627 = vmatpush1.bf16.msra.mxu0 %v1428
          %1628 = vmatprep.subr.bf16.mxu0 0
          %1629 = vmatpush1.bf16.msra.mxu0 %v1427
          %1630 = vmatprep.subr.bf16.mxu0 0
          %1631 = vmatpush1.bf16.msra.mxu0 %v1426
          %1632 = vmatprep.subr.bf16.mxu0 0
          %1633 = vmatpush1.bf16.msra.mxu0 %v1425
          %1634 = vmatprep.subr.bf16.mxu0 0
          %1635 = vmatpush2.bf16.msra.mxu0 %v1440
          %1636 = vmatprep.subr.bf16.mxu0 0
          %1637 = vmatpush2.bf16.msra.mxu0 %v1439
          %1638 = vmatprep.subr.bf16.mxu0 0
          %1639 = vmatpush2.bf16.msra.mxu0 %v1438
          %1640 = vmatprep.subr.bf16.mxu0 0
          %1641 = vmatpush2.bf16.msra.mxu0 %v1437
          %1642 = vmatprep.subr.bf16.mxu0 0
          %1643 = vmatpush2.bf16.msra.mxu0 %v1436
          %1644 = vmatprep.subr.bf16.mxu0 0
          %1645 = vmatpush2.bf16.msra.mxu0 %v1435
          %1646 = vmatprep.subr.bf16.mxu0 0
          %1647 = vmatpush2.bf16.msra.mxu0 %v1434
          %1648 = vmatprep.subr.bf16.mxu0 0
          %1649 = vmatpush2.bf16.msra.mxu0 %v1433
          %1650 = vmatprep.mubr.bf16.mxu0 %v881
          %1651 = vmatmul.mubr.bf16.gmra.mxu0 %v857
          %v1652 = vpop.f32.mrf.mxu0
          %v1653 = vadd.f32 %v1588, %v1652
          %v1654 = vpop.f32.mrf.mxu0
          %v1655 = vpop.f32.mrf.mxu0
          %v1656 = vadd.f32 %v1591, %v1655
          %v1657 = vpop.f32.mrf.mxu0
          %1658 = vmatprep.mubr.bf16.mxu0 %v882
          %1659 = vmatmul.mubr.bf16.gmra.mxu0 %v858
          %v1660 = vpop.f32.mrf.mxu0
          %v1661 = vadd.f32 %v1596, %v1660
          %v1662 = vpop.f32.mrf.mxu0
          %v1663 = vpop.f32.mrf.mxu0
          %v1664 = vadd.f32 %v1599, %v1663
          %v1665 = vpop.f32.mrf.mxu0
          %1666 = vmatprep.mubr.bf16.mxu0 %v883
          %1667 = vmatmul.mubr.bf16.gmra.mxu0 %v859
          %v1668 = vpop.f32.mrf.mxu0
          %v1669 = vadd.f32 %v1604, %v1668
          %v1670 = vpop.f32.mrf.mxu0
          %v1671 = vpop.f32.mrf.mxu0
          %v1672 = vadd.f32 %v1607, %v1671
          %v1673 = vpop.f32.mrf.mxu0
          %1674 = vmatprep.mubr.bf16.mxu0 %v884
          %1675 = vmatmul.mubr.bf16.gmra.mxu0 %v860
          %v1676 = vpop.f32.mrf.mxu0
          %v1677 = vadd.f32 %v1612, %v1676
          %v1678 = vpop.f32.mrf.mxu0
          %v1679 = vpop.f32.mrf.mxu0
          %v1680 = vadd.f32 %v1615, %v1679
          %v1681 = vpop.f32.mrf.mxu0
          %1682 = vdwg.mxu0
          %1683 = vmatprep.subr.bf16.mxu0 0
          %1684 = vmatpush1.bf16.msra.mxu0 %v1448
          %1685 = vmatprep.subr.bf16.mxu0 0
          %1686 = vmatpush1.bf16.msra.mxu0 %v1447
          %1687 = vmatprep.subr.bf16.mxu0 0
          %1688 = vmatpush1.bf16.msra.mxu0 %v1446
          %1689 = vmatprep.subr.bf16.mxu0 0
          %1690 = vmatpush1.bf16.msra.mxu0 %v1445
          %1691 = vmatprep.subr.bf16.mxu0 0
          %1692 = vmatpush1.bf16.msra.mxu0 %v1444
          %1693 = vmatprep.subr.bf16.mxu0 0
          %1694 = vmatpush1.bf16.msra.mxu0 %v1443
          %1695 = vmatprep.subr.bf16.mxu0 0
          %1696 = vmatpush1.bf16.msra.mxu0 %v1442
          %1697 = vmatprep.subr.bf16.mxu0 0
          %1698 = vmatpush1.bf16.msra.mxu0 %v1441
          %1699 = vmatprep.subr.bf16.mxu0 0
          %1700 = vmatpush2.bf16.msra.mxu0 %v1456
          %1701 = vmatprep.subr.bf16.mxu0 0
          %1702 = vmatpush2.bf16.msra.mxu0 %v1455
          %1703 = vmatprep.subr.bf16.mxu0 0
          %1704 = vmatpush2.bf16.msra.mxu0 %v1454
          %1705 = vmatprep.subr.bf16.mxu0 0
          %1706 = vmatpush2.bf16.msra.mxu0 %v1453
          %1707 = vmatprep.subr.bf16.mxu0 0
          %1708 = vmatpush2.bf16.msra.mxu0 %v1452
          %1709 = vmatprep.subr.bf16.mxu0 0
          %1710 = vmatpush2.bf16.msra.mxu0 %v1451
          %1711 = vmatprep.subr.bf16.mxu0 0
          %1712 = vmatpush2.bf16.msra.mxu0 %v1450
          %1713 = vmatprep.subr.bf16.mxu0 0
          %1714 = vmatpush2.bf16.msra.mxu0 %v1449
          %1715 = vmatprep.mubr.bf16.mxu0 %v913
          %1716 = vmatmul.mubr.bf16.gmra.mxu0 %v897
          %v1717 = vpop.f32.mrf.mxu0
          %v1718 = vadd.f32 %v1653, %v1717
          %v1719 = vpop.f32.mrf.mxu0
          %v1720 = vpop.f32.mrf.mxu0
          %v1721 = vadd.f32 %v1656, %v1720
          %v1722 = vpop.f32.mrf.mxu0
          %1723 = vmatprep.mubr.bf16.mxu0 %v914
          %1724 = vmatmul.mubr.bf16.gmra.mxu0 %v898
          %v1725 = vpop.f32.mrf.mxu0
          %v1726 = vadd.f32 %v1661, %v1725
          %v1727 = vpop.f32.mrf.mxu0
          %v1728 = vpop.f32.mrf.mxu0
          %v1729 = vadd.f32 %v1664, %v1728
          %v1730 = vpop.f32.mrf.mxu0
          %1731 = vmatprep.mubr.bf16.mxu0 %v915
          %1732 = vmatmul.mubr.bf16.gmra.mxu0 %v899
          %v1733 = vpop.f32.mrf.mxu0
          %v1734 = vadd.f32 %v1669, %v1733
          %v1735 = vpop.f32.mrf.mxu0
          %v1736 = vpop.f32.mrf.mxu0
          %v1737 = vadd.f32 %v1672, %v1736
          %v1738 = vpop.f32.mrf.mxu0
          %1739 = vmatprep.mubr.bf16.mxu0 %v916
          %1740 = vmatmul.mubr.bf16.gmra.mxu0 %v900
          %v1741 = vpop.f32.mrf.mxu0
          %v1742 = vadd.f32 %v1677, %v1741
          %v1743 = vpop.f32.mrf.mxu0
          %v1744 = vpop.f32.mrf.mxu0
          %v1745 = vadd.f32 %v1680, %v1744
          %v1746 = vpop.f32.mrf.mxu0
          %1747 = vdwg.mxu0
          %1748 = vmatprep.subr.bf16.mxu0 0
          %1749 = vmatpush1.bf16.msra.mxu0 %v1464
          %1750 = vmatprep.subr.bf16.mxu0 0
          %1751 = vmatpush1.bf16.msra.mxu0 %v1463
          %1752 = vmatprep.subr.bf16.mxu0 0
          %1753 = vmatpush1.bf16.msra.mxu0 %v1462
          %1754 = vmatprep.subr.bf16.mxu0 0
          %1755 = vmatpush1.bf16.msra.mxu0 %v1461
          %1756 = vmatprep.subr.bf16.mxu0 0
          %1757 = vmatpush1.bf16.msra.mxu0 %v1460
          %1758 = vmatprep.subr.bf16.mxu0 0
          %1759 = vmatpush1.bf16.msra.mxu0 %v1459
          %1760 = vmatprep.subr.bf16.mxu0 0
          %1761 = vmatpush1.bf16.msra.mxu0 %v1458
          %1762 = vmatprep.subr.bf16.mxu0 0
          %1763 = vmatpush1.bf16.msra.mxu0 %v1457
          %1764 = vmatprep.subr.bf16.mxu0 0
          %1765 = vmatpush2.bf16.msra.mxu0 %v1472
          %1766 = vmatprep.subr.bf16.mxu0 0
          %1767 = vmatpush2.bf16.msra.mxu0 %v1471
          %1768 = vmatprep.subr.bf16.mxu0 0
          %1769 = vmatpush2.bf16.msra.mxu0 %v1470
          %1770 = vmatprep.subr.bf16.mxu0 0
          %1771 = vmatpush2.bf16.msra.mxu0 %v1469
          %1772 = vmatprep.subr.bf16.mxu0 0
          %1773 = vmatpush2.bf16.msra.mxu0 %v1468
          %1774 = vmatprep.subr.bf16.mxu0 0
          %1775 = vmatpush2.bf16.msra.mxu0 %v1467
          %1776 = vmatprep.subr.bf16.mxu0 0
          %1777 = vmatpush2.bf16.msra.mxu0 %v1466
          %1778 = vmatprep.subr.bf16.mxu0 0
          %1779 = vmatpush2.bf16.msra.mxu0 %v1465
          %1780 = vmatprep.mubr.bf16.mxu0 %v953
          %1781 = vmatmul.mubr.bf16.gmra.mxu0 %v937
          %v1782 = vpop.f32.mrf.mxu0
          %v1783 = vadd.f32 %v1718, %v1782
          %v1784 = vpop.f32.mrf.mxu0
          %v1785 = vpop.f32.mrf.mxu0
          %v1786 = vadd.f32 %v1721, %v1785
          %v1787 = vpop.f32.mrf.mxu0
          %1788 = vmatprep.mubr.bf16.mxu0 %v954
          %1789 = vmatmul.mubr.bf16.gmra.mxu0 %v938
          %v1790 = vpop.f32.mrf.mxu0
          %v1791 = vadd.f32 %v1726, %v1790
          %v1792 = vpop.f32.mrf.mxu0
          %v1793 = vpop.f32.mrf.mxu0
          %v1794 = vadd.f32 %v1729, %v1793
          %v1795 = vpop.f32.mrf.mxu0
          %1796 = vmatprep.mubr.bf16.mxu0 %v955
          %1797 = vmatmul.mubr.bf16.gmra.mxu0 %v939
          %v1798 = vpop.f32.mrf.mxu0
          %v1799 = vadd.f32 %v1734, %v1798
          %v1800 = vpop.f32.mrf.mxu0
          %v1801 = vpop.f32.mrf.mxu0
          %v1802 = vadd.f32 %v1737, %v1801
          %v1803 = vpop.f32.mrf.mxu0
          %1804 = vmatprep.mubr.bf16.mxu0 %v956
          %1805 = vmatmul.mubr.bf16.gmra.mxu0 %v940
          %v1806 = vpop.f32.mrf.mxu0
          %v1807 = vadd.f32 %v1742, %v1806
          %v1808 = vpop.f32.mrf.mxu0
          %v1809 = vpop.f32.mrf.mxu0
          %v1810 = vadd.f32 %v1745, %v1809
          %v1811 = vpop.f32.mrf.mxu0
          %1812 = vdwg.mxu0
          %1813 = vmatprep.subr.bf16.mxu0 0
          %1814 = vmatpush1.bf16.msra.mxu0 %v1480
          %1815 = vmatprep.subr.bf16.mxu0 0
          %1816 = vmatpush1.bf16.msra.mxu0 %v1479
          %1817 = vmatprep.subr.bf16.mxu0 0
          %1818 = vmatpush1.bf16.msra.mxu0 %v1478
          %1819 = vmatprep.subr.bf16.mxu0 0
          %1820 = vmatpush1.bf16.msra.mxu0 %v1477
          %1821 = vmatprep.subr.bf16.mxu0 0
          %1822 = vmatpush1.bf16.msra.mxu0 %v1476
          %1823 = vmatprep.subr.bf16.mxu0 0
          %1824 = vmatpush1.bf16.msra.mxu0 %v1475
          %1825 = vmatprep.subr.bf16.mxu0 0
          %1826 = vmatpush1.bf16.msra.mxu0 %v1474
          %1827 = vmatprep.subr.bf16.mxu0 0
          %1828 = vmatpush1.bf16.msra.mxu0 %v1473
          %1829 = vmatprep.subr.bf16.mxu0 0
          %1830 = vmatpush2.bf16.msra.mxu0 0
          %1831 = vmatprep.subr.bf16.mxu0 0
          %1832 = vmatpush2.bf16.msra.mxu0 0
          %1833 = vmatprep.subr.bf16.mxu0 0
          %1834 = vmatpush2.bf16.msra.mxu0 0
          %1835 = vmatprep.subr.bf16.mxu0 0
          %1836 = vmatpush2.bf16.msra.mxu0 0
          %1837 = vmatprep.subr.bf16.mxu0 0
          %1838 = vmatpush2.bf16.msra.mxu0 0
          %1839 = vmatprep.subr.bf16.mxu0 0
          %1840 = vmatpush2.bf16.msra.mxu0 0
          %1841 = vmatprep.subr.bf16.mxu0 0
          %1842 = vmatpush2.bf16.msra.mxu0 0
          %1843 = vmatprep.subr.bf16.mxu0 0
          %1844 = vmatpush2.bf16.msra.mxu0 0
          %1845 = vmatprep.mubr.bf16.mxu0 0
          %1846 = vmatmul.mubr.bf16.gmra.mxu0 %v969
          %v1847 = vpop.f32.mrf.mxu0
          %v1848 = vadd.f32 %v1783, %v1847
          %v1849 = vpop.f32.mrf.mxu0
          %v1850 = vpop.f32.mrf.mxu0
          %v1851 = vadd.f32 %v1786, %v1850
          %v1852 = vpop.f32.mrf.mxu0
          %1853 = vmatprep.mubr.bf16.mxu0 0
          %1854 = vmatmul.mubr.bf16.gmra.mxu0 %v970
          %v1855 = vpop.f32.mrf.mxu0
          %v1856 = vadd.f32 %v1791, %v1855
          %v1857 = vpop.f32.mrf.mxu0
          %v1858 = vpop.f32.mrf.mxu0
          %v1859 = vadd.f32 %v1794, %v1858
          %v1860 = vpop.f32.mrf.mxu0
          %1861 = vmatprep.mubr.bf16.mxu0 0
          %1862 = vmatmul.mubr.bf16.gmra.mxu0 %v971
          %v1863 = vpop.f32.mrf.mxu0
          %v1864 = vadd.f32 %v1799, %v1863
          %v1865 = vpop.f32.mrf.mxu0
          %v1866 = vpop.f32.mrf.mxu0
          %v1867 = vadd.f32 %v1802, %v1866
          %v1868 = vpop.f32.mrf.mxu0
          %1869 = vmatprep.mubr.bf16.mxu0 0
          %1870 = vmatmul.mubr.bf16.gmra.mxu0 %v972
          %v1871 = vpop.f32.mrf.mxu0
          %v1872 = vadd.f32 %v1807, %v1871
          %v1873 = vpop.f32.mrf.mxu0
          %v1874 = vpop.f32.mrf.mxu0
          %v1875 = vadd.f32 %v1810, %v1874
          %v1876 = vpop.f32.mrf.mxu0
          %1877 = vdwg.mxu0
          %p1878 = scmp.eq.s32.totalorder %s27, 0
          // Predicated region
          $region61: #{mutable_block_forward.1} parent=59 // pred_check
            %p1879 = pneg %p1878
          $region62: #{mutable_block_forward.1} parent=59 // pred_check_branch
            %1881 = sbr.rel (%p1879) target = $region64
          $region63: #{mutable_block_forward.1} parent=59 // pred_region
            %v1882 = vadd.f32 %v1848, %v1851
            %v1883 = vadd.f32 %v1882, %v1856
            %v1884 = vadd.f32 %v1883, %v1859
            %v1885 = vadd.f32 %v1884, %v1864
            %v1886 = vadd.f32 %v1885, %v1867
            %v1887 = vadd.f32 %v1886, %v1872
            %v1888 = vadd.f32 %v1887, %v1875
            %v1889 = vrot.slane %v1888, 4
            %v1890 = vadd.f32 %v1888, %v1889
            %v1891 = vrot.slane %v1890, 2
            %v1892 = vadd.f32 %v1890, %v1891
            %v1893 = vrot.slane %v1892, 1
            %v1894 = vadd.f32 %v1892, %v1893
            %v1895 = vrcp.pop 64.0
            %v1896 = vmul.f32 %v1894, %v1895
            %1897 = vst [vmem:[#allocation6] sm:$0x1] %v1896
            %1898 = vst [vmem:[#allocation6 + $0x1] sm:$0x3] 0.0
          $region64: #{mutable_block_forward.1} parent=59 // pred_fallthru
            _
          %v1899 = vld [vmem:[#allocation6] sm:$0x1]
          %v1900 = vlaneseq
          %v1901 = vshrl.u32 %v1900, 7
          %v1902 = vsub.s32 0, %v1901
          %v1903 = vrot.slane %v1899, %v1902
          %v1904 = vsub.f32 %v1848, %v1903
          %v1905 = vsub.f32 %v1851, %v1903
          %v1906 = vsub.f32 %v1856, %v1903
          %v1907 = vsub.f32 %v1859, %v1903
          %v1908 = vsub.f32 %v1864, %v1903
          %v1909 = vsub.f32 %v1867, %v1903
          %v1910 = vsub.f32 %v1872, %v1903
          %v1911 = vsub.f32 %v1875, %v1903
          %v1912 = vld [vmem:[#allocation6 + $0x1] sm:$0x1]
          %v1913 = vadd.f32 %v1904, %v1905
          %v1914 = vadd.f32 %v1913, %v1906
          %v1915 = vadd.f32 %v1914, %v1907
          %v1916 = vadd.f32 %v1915, %v1908
          %v1917 = vadd.f32 %v1916, %v1909
          %v1918 = vadd.f32 %v1917, %v1910
          %v1919 = vadd.f32 %v1918, %v1911
          %v1920 = vrot.slane %v1919, 4
          %v1921 = vadd.f32 %v1919, %v1920
          %v1922 = vrot.slane %v1921, 2
          %v1923 = vadd.f32 %v1921, %v1922
          %v1924 = vrot.slane %v1923, 1
          %v1925 = vadd.f32 %v1923, %v1924
          %v1926 = vadd.f32 %v1912, %v1925
          %1927 = vst [vmem:[#allocation6 + $0x1] sm:$0x1] %v1926
          %v1928 = vld [vmem:[#allocation6 + $0x2] sm:$0x1]
          %v1929 = vmul.f32 %v1904, %v1904
          %v1930 = vmul.f32 %v1905, %v1905
          %v1931 = vmul.f32 %v1906, %v1906
          %v1932 = vmul.f32 %v1907, %v1907
          %v1933 = vmul.f32 %v1908, %v1908
          %v1934 = vmul.f32 %v1909, %v1909
          %v1935 = vmul.f32 %v1910, %v1910
          %v1936 = vmul.f32 %v1911, %v1911
          %v1937 = vadd.f32 %v1929, %v1930
          %v1938 = vadd.f32 %v1937, %v1931
          %v1939 = vadd.f32 %v1938, %v1932
          %v1940 = vadd.f32 %v1939, %v1933
          %v1941 = vadd.f32 %v1940, %v1934
          %v1942 = vadd.f32 %v1941, %v1935
          %v1943 = vadd.f32 %v1942, %v1936
          %v1944 = vrot.slane %v1943, 4
          %v1945 = vadd.f32 %v1943, %v1944
          %v1946 = vrot.slane %v1945, 2
          %v1947 = vadd.f32 %v1945, %v1946
          %v1948 = vrot.slane %v1947, 1
          %v1949 = vadd.f32 %v1947, %v1948
          %v1950 = vadd.f32 %v1928, %v1949
          %1951 = vst [vmem:[#allocation6 + $0x2] sm:$0x1] %v1950
          %v1952 = vpack.c.bf16 %v1851, %v1848
          %v1953 = vpack.c.bf16 %v1859, %v1856
          %v1954 = vpack.c.bf16 %v1867, %v1864
          %v1955 = vpack.c.bf16 %v1875, %v1872
          %v1960 = vunpack.c.l.b16 %v1952
          %v1961 = vunpack.c.h.b16 %v1952
          %v1962 = vunpack.c.l.b16 %v1953
          %v1963 = vunpack.c.h.b16 %v1953
          %v1964 = vunpack.c.l.b16 %v1954
          %v1965 = vunpack.c.h.b16 %v1954
          %v1966 = vunpack.c.l.b16 %v1955
          %v1967 = vunpack.c.h.b16 %v1955
          %v1968 = vpack.c.b16 %v1960, %v1960
          %v1969 = vpack.c.b16 %v1961, %v1961
          %v1970 = vpack.c.b16 %v1962, %v1962
          %v1971 = vpack.c.b16 %v1963, %v1963
          %v1972 = vpack.c.b16 %v1964, %v1964
          %v1973 = vpack.c.b16 %v1965, %v1965
          %v1974 = vpack.c.b16 %v1966, %v1966
          %v1975 = vpack.c.b16 %v1967, %v1967
          %1984 = vst [vmem:[#allocation3] sm:$0xf] %v1968
          %1985 = vst [vmem:[#allocation3 + $0x4] sm:$0xf] %v1969
          %1986 = vst [vmem:[#allocation3 + $0x8] sm:$0xf] %v1970
          %1987 = vst [vmem:[#allocation3 + $0xc] sm:$0xf] %v1971
          %1988 = vst [vmem:[#allocation3 + $0x10] sm:$0xf] %v1972
          %1989 = vst [vmem:[#allocation3 + $0x14] sm:$0xf] %v1973
          %1990 = vst [vmem:[#allocation3 + $0x18] sm:$0xf] %v1974
          %1991 = vst [vmem:[#allocation3 + $0x1c] sm:$0xf] %v1975
          $region65: #{mutable_block_forward.1} parent=59
            #allocation14 [shape = 's32[1]{0}', space=sflag, size = 0x4, scoped, tag = 'scoped memory for mutable_block_forward.1']
            %s1992 = smul.u32 %s27, 8
            %s1993 = smul.addr %s1992, 64
            %s1994 = scalar_lea.hbm %s8, %s1993
            // Predicated region
            $region66: #{mutable_block_forward.1} parent=65 // pred_check
              _
            $region67: #{mutable_block_forward.1} parent=65 // pred_check_branch
              %1996 = sbr.rel target = $region69
            $region68: #{mutable_block_forward.1} parent=65 // pred_region
              %1997 = sst [smem:[#allocation17]] [#allocation16]
              %1998 = sst [smem:[#allocation18]] [#allocation15]
            $region69: #{mutable_block_forward.1} parent=65 // pred_fallthru
              _
            %2000 = shalt.err (0)
            %s2002 = sshll.u32 [#allocation3], 4
            %s2003 = int_to_ptr.vmem [resolvable:$true] %s2002
            %2005 = dma.vmem_to_hbm [thread:$0]  %s2003, 512, %s1994, [#allocation14]
            %s2006 = smul.u32 4, 8
            %s2007 = smul.u32 %s2006, 1
            %s2008 = sshll.u32 %s2007, 4
            %2009 = dma.done [#allocation14], %s2008
        $region60: #{mutable_block_forward.1} parent=47 // pred_fallthru
          _
        %p2010 = scmp.eq.s32.totalorder %s26, 1
        // Predicated region
        $region70: #{mutable_block_forward.1} parent=47 // pred_check
          %p2011 = pneg %p2010
        $region71: #{mutable_block_forward.1} parent=47 // pred_check_branch
          %2013 = sbr.rel (%p2011) target = $region73
        $region72: #{mutable_block_forward.1} parent=47 // pred_region
          %p2014 = scmp.eq.s32.totalorder %s27, 0
          // Predicated region
          $region74: #{mutable_block_forward.1} parent=72 // pred_check
            %p2015 = pneg %p2014
          $region75: #{mutable_block_forward.1} parent=72 // pred_check_branch
            %2017 = sbr.rel (%p2015) target = $region77
          $region76: #{mutable_block_forward.1} parent=72 // pred_region
            %v2018 = vld [vmem:[#allocation6] sm:$0x1]
            %v2019 = vld [vmem:[#allocation6 + $0x1] sm:$0x1]
            %v2020 = vmul.f32 %v2019, 0.0078125
            %v2021 = vadd.f32 %v2018, %v2020
            %v2022 = vld [vmem:[#allocation6 + $0x2] sm:$0x1]
            %v2023 = vmul.f32 %v2022, 0.0078125
            %v2024 = vmul.f32 %v2020, %v2020
            %v2025 = vsub.f32 %v2023, %v2024
            %v2026 = vmax.f32 %v2025, 0.0
            %v2027 = vld [vmem:[%s3] sm:$0x1]
            %v2028 = vadd.f32 %v2026, 1e-05
            %v2029 = vrsqrt.pop %v2028
            %v2030 = vmul.f32 %v2027, %v2029
            %2031 = vst [vmem:[#allocation7] sm:$0x1] %v2030
            %v2032 = vld [vmem:[%s4] sm:$0x1]
            %v2033 = vmul.f32 %v2030, %v2021
            %v2034 = vsub.f32 %v2032, %v2033
            %2035 = vst [vmem:[#allocation7 + $0x1] sm:$0x1] %v2034
            %2036 = vst [vmem:[#allocation8 + $0x1] sm:$0x3] 0.0
            %2037 = vst [vmem:[#allocation2] sm:$0xf] 0
            %2038 = vst [vmem:[#allocation2 + $0x4] sm:$0x1] 0
            %2039 = vst [vmem:[#allocation2 + $0x8] sm:$0xf] 0
            %2040 = vst [vmem:[#allocation2 + $0xc] sm:$0x1] 0
            %2041 = vst [vmem:[#allocation2 + $0x10] sm:$0xf] 0
            %2042 = vst [vmem:[#allocation2 + $0x14] sm:$0x1] 0
            %2043 = vst [vmem:[#allocation2 + $0x18] sm:$0xf] 0
            %2044 = vst [vmem:[#allocation2 + $0x1c] sm:$0x1] 0
            %2045 = vst [vmem:[#allocation2 + $0x20] sm:$0xf] 0
            %2046 = vst [vmem:[#allocation2 + $0x24] sm:$0x1] 0
            %2047 = vst [vmem:[#allocation2 + $0x28] sm:$0xf] 0
            %2048 = vst [vmem:[#allocation2 + $0x2c] sm:$0x1] 0
            %2049 = vst [vmem:[#allocation2 + $0x30] sm:$0xf] 0
            %2050 = vst [vmem:[#allocation2 + $0x34] sm:$0x1] 0
            %2051 = vst [vmem:[#allocation2 + $0x38] sm:$0xf] 0
            %2052 = vst [vmem:[#allocation2 + $0x3c] sm:$0x1] 0
            %2053 = vst [vmem:[#allocation2 + $0x40] sm:$0xf] 0
            %2054 = vst [vmem:[#allocation2 + $0x44] sm:$0x1] 0
            %2055 = vst [vmem:[#allocation2 + $0x48] sm:$0xf] 0
            %2056 = vst [vmem:[#allocation2 + $0x4c] sm:$0x1] 0
          $region77: #{mutable_block_forward.1} parent=72 // pred_fallthru
            _
          $region78: #{mutable_block_forward.1} parent=72
            #allocation19 [shape = 's32[1]{0}', space=sflag, size = 0x4, scoped, tag = 'scoped memory for mutable_block_forward.1']
            %s2057 = smul.u32 %s27, 8
            %s2058 = smul.addr %s2057, 64
            %s2059 = scalar_lea.hbm %s8, %s2058
            // Predicated region
            $region79: #{mutable_block_forward.1} parent=78 // pred_check
              _
            $region80: #{mutable_block_forward.1} parent=78 // pred_check_branch
              %2061 = sbr.rel target = $region82
            $region81: #{mutable_block_forward.1} parent=78 // pred_region
              %2062 = sst [smem:[#allocation17]] [#allocation21]
              %2063 = sst [smem:[#allocation18]] [#allocation20]
            $region82: #{mutable_block_forward.1} parent=78 // pred_fallthru
              _
            %2065 = shalt.err (0)
            %s2067 = sshll.u32 [#allocation3], 4
            %s2068 = int_to_ptr.vmem [resolvable:$true] %s2067
            %2070 = dma.hbm_to_vmem [thread:$0]  %s2059, 512, %s2068, [#allocation19]
            %s2071 = smul.u32 4, 8
            %s2072 = smul.u32 %s2071, 1
            %s2073 = sshll.u32 %s2072, 4
            %2074 = dma.done [#allocation19], %s2073
          %v2075 = vld [vmem:[#allocation3] sm:$0xf]
          %v2076 = vld [vmem:[#allocation3 + $0x4] sm:$0xf]
          %v2077 = vld [vmem:[#allocation3 + $0x8] sm:$0xf]
          %v2078 = vld [vmem:[#allocation3 + $0xc] sm:$0xf]
          %v2079 = vld [vmem:[#allocation3 + $0x10] sm:$0xf]
          %v2080 = vld [vmem:[#allocation3 + $0x14] sm:$0xf]
          %v2081 = vld [vmem:[#allocation3 + $0x18] sm:$0xf]
          %v2082 = vld [vmem:[#allocation3 + $0x1c] sm:$0xf]
          %v2083 = vunpack.c.l.bf16 %v2075
          %v2084 = vunpack.c.l.bf16 %v2076
          %v2085 = vunpack.c.l.bf16 %v2077
          %v2086 = vunpack.c.l.bf16 %v2078
          %v2087 = vunpack.c.l.bf16 %v2079
          %v2088 = vunpack.c.l.bf16 %v2080
          %v2089 = vunpack.c.l.bf16 %v2081
          %v2090 = vunpack.c.l.bf16 %v2082
          %v2091 = vld [vmem:[#allocation7] sm:$0x1]
          %v2092 = vlaneseq
          %v2093 = vshrl.u32 %v2092, 7
          %v2094 = vsub.s32 0, %v2093
          %v2095 = vrot.slane %v2091, %v2094
          %v2096 = vmul.f32 %v2083, %v2095
          %v2097 = vmul.f32 %v2084, %v2095
          %v2098 = vmul.f32 %v2085, %v2095
          %v2099 = vmul.f32 %v2086, %v2095
          %v2100 = vmul.f32 %v2087, %v2095
          %v2101 = vmul.f32 %v2088, %v2095
          %v2102 = vmul.f32 %v2089, %v2095
          %v2103 = vmul.f32 %v2090, %v2095
          %v2104 = vld [vmem:[#allocation7 + $0x1] sm:$0x1]
          %v2105 = vlaneseq
          %v2106 = vshrl.u32 %v2105, 7
          %v2107 = vsub.s32 0, %v2106
          %v2108 = vrot.slane %v2104, %v2107
          %v2109 = vadd.f32 %v2096, %v2108
          %v2110 = vadd.f32 %v2097, %v2108
          %v2111 = vadd.f32 %v2098, %v2108
          %v2112 = vadd.f32 %v2099, %v2108
          %v2113 = vadd.f32 %v2100, %v2108
          %v2114 = vadd.f32 %v2101, %v2108
          %v2115 = vadd.f32 %v2102, %v2108
          %v2116 = vadd.f32 %v2103, %v2108
          %v2117 = vmax.f32 %v2109, 0.0
          %v2118 = vmax.f32 %v2110, 0.0
          %v2119 = vmax.f32 %v2111, 0.0
          %v2120 = vmax.f32 %v2112, 0.0
          %v2121 = vmax.f32 %v2113, 0.0
          %v2122 = vmax.f32 %v2114, 0.0
          %v2123 = vmax.f32 %v2115, 0.0
          %v2124 = vmax.f32 %v2116, 0.0
          %v2125 = vpack.c.bf16 %v2118, %v2117
          %v2126 = vpack.c.bf16 %v2120, %v2119
          %v2127 = vpack.c.bf16 %v2122, %v2121
          %v2128 = vpack.c.bf16 %v2124, %v2123
          %v2133 = vunpack.c.l.b16 %v2125
          %v2134 = vunpack.c.h.b16 %v2125
          %v2135 = vunpack.c.l.b16 %v2126
          %v2136 = vunpack.c.h.b16 %v2126
          %v2137 = vunpack.c.l.b16 %v2127
          %v2138 = vunpack.c.h.b16 %v2127
          %v2139 = vunpack.c.l.b16 %v2128
          %v2140 = vunpack.c.h.b16 %v2128
          %v2141 = vpack.c.b16 %v2133, %v2133
          %v2142 = vpack.c.b16 %v2134, %v2134
          %v2143 = vpack.c.b16 %v2135, %v2135
          %v2144 = vpack.c.b16 %v2136, %v2136
          %v2145 = vpack.c.b16 %v2137, %v2137
          %v2146 = vpack.c.b16 %v2138, %v2138
          %v2147 = vpack.c.b16 %v2139, %v2139
          %v2148 = vpack.c.b16 %v2140, %v2140
          %v2150 = vshrl.u32 %v2141, 16
          %v2152 = vrot.slane %v2150, 7
          %v2153 = vshll.u32 %v2141, 16
          %v2155 = vor.u32 %v2152, %v2153
          %v2156 = vrot.slane %v2152, 4
          %v2158 = vshrl.u32 %v2142, 16
          %v2160 = vrot.slane %v2158, 7
          %v2161 = vshll.u32 %v2142, 16
          %v2163 = vor.u32 %v2160, %v2161
          %v2164 = vrot.slane %v2160, 4
          %v2166 = vshrl.u32 %v2143, 16
          %v2168 = vrot.slane %v2166, 7
          %v2169 = vshll.u32 %v2143, 16
          %v2171 = vor.u32 %v2168, %v2169
          %v2172 = vrot.slane %v2168, 4
          %v2174 = vshrl.u32 %v2144, 16
          %v2176 = vrot.slane %v2174, 7
          %v2177 = vshll.u32 %v2144, 16
          %v2179 = vor.u32 %v2176, %v2177
          %v2180 = vrot.slane %v2176, 4
          %v2182 = vshrl.u32 %v2145, 16
          %v2184 = vrot.slane %v2182, 7
          %v2185 = vshll.u32 %v2145, 16
          %v2187 = vor.u32 %v2184, %v2185
          %v2188 = vrot.slane %v2184, 4
          %v2190 = vshrl.u32 %v2146, 16
          %v2192 = vrot.slane %v2190, 7
          %v2193 = vshll.u32 %v2146, 16
          %v2195 = vor.u32 %v2192, %v2193
          %v2196 = vrot.slane %v2192, 4
          %v2198 = vshrl.u32 %v2147, 16
          %v2200 = vrot.slane %v2198, 7
          %v2201 = vshll.u32 %v2147, 16
          %v2203 = vor.u32 %v2200, %v2201
          %v2204 = vrot.slane %v2200, 4
          %v2206 = vshrl.u32 %v2148, 16
          %v2208 = vrot.slane %v2206, 7
          %v2209 = vshll.u32 %v2148, 16
          %v2211 = vor.u32 %v2208, %v2209
          %v2212 = vrot.slane %v2208, 4
          %s2229 = scalar_lea.vmem [#allocation2], 8
          %vm2230 = vcmask 1043456
          %vm2231 = vsmask.f32 7938
          %vm2232 = vmand %vm2230, %vm2231
          %v2233 = vld [vmem:[%s2229] sm:$0xf]
          %v2234 = vsel %vm2232, %v2155, %v2233
          %2235 = vst [vmem:[%s2229] sm:$0xf] %v2234
          %vm2236 = vcmask 1040384
          %vm2237 = vsmask.f32 256
          %vm2238 = vmand %vm2236, %vm2237
          %v2239 = vld [vmem:[%s2229 + $0x4] sm:$0x1]
          %v2240 = vsel %vm2238, %v2156, %v2239
          %2241 = vst [vmem:[%s2229 + $0x4] sm:$0x1] %v2240
          %v2242 = vld [vmem:[%s2229 + $0x8] sm:$0xf]
          %v2243 = vsel %vm2232, %v2163, %v2242
          %2244 = vst [vmem:[%s2229 + $0x8] sm:$0xf] %v2243
          %v2245 = vld [vmem:[%s2229 + $0xc] sm:$0x1]
          %v2246 = vsel %vm2238, %v2164, %v2245
          %2247 = vst [vmem:[%s2229 + $0xc] sm:$0x1] %v2246
          %v2248 = vld [vmem:[%s2229 + $0x10] sm:$0xf]
          %v2249 = vsel %vm2232, %v2171, %v2248
          %2250 = vst [vmem:[%s2229 + $0x10] sm:$0xf] %v2249
          %v2251 = vld [vmem:[%s2229 + $0x14] sm:$0x1]
          %v2252 = vsel %vm2238, %v2172, %v2251
          %2253 = vst [vmem:[%s2229 + $0x14] sm:$0x1] %v2252
          %v2254 = vld [vmem:[%s2229 + $0x18] sm:$0xf]
          %v2255 = vsel %vm2232, %v2179, %v2254
          %2256 = vst [vmem:[%s2229 + $0x18] sm:$0xf] %v2255
          %v2257 = vld [vmem:[%s2229 + $0x1c] sm:$0x1]
          %v2258 = vsel %vm2238, %v2180, %v2257
          %2259 = vst [vmem:[%s2229 + $0x1c] sm:$0x1] %v2258
          %v2260 = vld [vmem:[%s2229 + $0x20] sm:$0xf]
          %v2261 = vsel %vm2232, %v2187, %v2260
          %2262 = vst [vmem:[%s2229 + $0x20] sm:$0xf] %v2261
          %v2263 = vld [vmem:[%s2229 + $0x24] sm:$0x1]
          %v2264 = vsel %vm2238, %v2188, %v2263
          %2265 = vst [vmem:[%s2229 + $0x24] sm:$0x1] %v2264
          %v2266 = vld [vmem:[%s2229 + $0x28] sm:$0xf]
          %v2267 = vsel %vm2232, %v2195, %v2266
          %2268 = vst [vmem:[%s2229 + $0x28] sm:$0xf] %v2267
          %v2269 = vld [vmem:[%s2229 + $0x2c] sm:$0x1]
          %v2270 = vsel %vm2238, %v2196, %v2269
          %2271 = vst [vmem:[%s2229 + $0x2c] sm:$0x1] %v2270
          %v2272 = vld [vmem:[%s2229 + $0x30] sm:$0xf]
          %v2273 = vsel %vm2232, %v2203, %v2272
          %2274 = vst [vmem:[%s2229 + $0x30] sm:$0xf] %v2273
          %v2275 = vld [vmem:[%s2229 + $0x34] sm:$0x1]
          %v2276 = vsel %vm2238, %v2204, %v2275
          %2277 = vst [vmem:[%s2229 + $0x34] sm:$0x1] %v2276
          %v2278 = vld [vmem:[%s2229 + $0x38] sm:$0xf]
          %v2279 = vsel %vm2232, %v2211, %v2278
          %2280 = vst [vmem:[%s2229 + $0x38] sm:$0xf] %v2279
          %v2281 = vld [vmem:[%s2229 + $0x3c] sm:$0x1]
          %v2282 = vsel %vm2238, %v2212, %v2281
          %2283 = vst [vmem:[%s2229 + $0x3c] sm:$0x1] %v2282
          %v2284 = vld [vmem:[#allocation2] sm:$0xf]
          %v2285 = vld [vmem:[#allocation2 + $0x8] sm:$0xf]
          %v2286 = vld [vmem:[#allocation2 + $0x10] sm:$0xf]
          %v2287 = vld [vmem:[#allocation2 + $0x18] sm:$0xf]
          %v2288 = vld [vmem:[#allocation2 + $0x20] sm:$0xf]
          %v2289 = vld [vmem:[#allocation2 + $0x28] sm:$0xf]
          %v2290 = vld [vmem:[#allocation2 + $0x30] sm:$0xf]
          %v2291 = vld [vmem:[#allocation2 + $0x38] sm:$0xf]
          %v2292 = vld [vmem:[#allocation2 + $0x4] sm:$0x1]
          %v2293 = vld [vmem:[#allocation2 + $0xc] sm:$0x1]
          %v2294 = vld [vmem:[#allocation2 + $0x14] sm:$0x1]
          %v2295 = vld [vmem:[#allocation2 + $0x1c] sm:$0x1]
          %v2296 = vld [vmem:[#allocation2 + $0x24] sm:$0x1]
          %v2297 = vld [vmem:[#allocation2 + $0x2c] sm:$0x1]
          %v2298 = vld [vmem:[#allocation2 + $0x34] sm:$0x1]
          %v2299 = vld [vmem:[#allocation2 + $0x3c] sm:$0x1]
          %vm2300 = vsmask.f32 3328
          %vm2301 = vsmask.f32 7440
          %vm2302 = vmor %vm2300, %vm2301
          %v2304 = vshrl.u32 %v2284, 16
          %v2306 = vrot.slane %v2304, 4
          %v2307 = vshll.u32 %v2284, 16
          %v2309 = vrot.slane %v2307, 5
          %v2310 = vor.u32 %v2306, %v2309
          %v2311 = vrot.slane %v2310, 4
          %v2313 = vshll.u32 %v2292, 16
          %v2315 = vrot.slane %v2313, 5
          %v2316 = vsel %vm2302, %v2311, %v2315
          %v2318 = vshrl.u32 %v2285, 16
          %v2320 = vrot.slane %v2318, 4
          %v2321 = vshll.u32 %v2285, 16
          %v2323 = vrot.slane %v2321, 5
          %v2324 = vor.u32 %v2320, %v2323
          %v2325 = vrot.slane %v2324, 4
          %v2327 = vshll.u32 %v2293, 16
          %v2329 = vrot.slane %v2327, 5
          %v2330 = vsel %vm2302, %v2325, %v2329
          %v2332 = vshrl.u32 %v2286, 16
          %v2334 = vrot.slane %v2332, 4
          %v2335 = vshll.u32 %v2286, 16
          %v2337 = vrot.slane %v2335, 5
          %v2338 = vor.u32 %v2334, %v2337
          %v2339 = vrot.slane %v2338, 4
          %v2341 = vshll.u32 %v2294, 16
          %v2343 = vrot.slane %v2341, 5
          %v2344 = vsel %vm2302, %v2339, %v2343
          %v2346 = vshrl.u32 %v2287, 16
          %v2348 = vrot.slane %v2346, 4
          %v2349 = vshll.u32 %v2287, 16
          %v2351 = vrot.slane %v2349, 5
          %v2352 = vor.u32 %v2348, %v2351
          %v2353 = vrot.slane %v2352, 4
          %v2355 = vshll.u32 %v2295, 16
          %v2357 = vrot.slane %v2355, 5
          %v2358 = vsel %vm2302, %v2353, %v2357
          %v2360 = vshrl.u32 %v2288, 16
          %v2362 = vrot.slane %v2360, 4
          %v2363 = vshll.u32 %v2288, 16
          %v2365 = vrot.slane %v2363, 5
          %v2366 = vor.u32 %v2362, %v2365
          %v2367 = vrot.slane %v2366, 4
          %v2369 = vshll.u32 %v2296, 16
          %v2371 = vrot.slane %v2369, 5
          %v2372 = vsel %vm2302, %v2367, %v2371
          %v2374 = vshrl.u32 %v2289, 16
          %v2376 = vrot.slane %v2374, 4
          %v2377 = vshll.u32 %v2289, 16
          %v2379 = vrot.slane %v2377, 5
          %v2380 = vor.u32 %v2376, %v2379
          %v2381 = vrot.slane %v2380, 4
          %v2383 = vshll.u32 %v2297, 16
          %v2385 = vrot.slane %v2383, 5
          %v2386 = vsel %vm2302, %v2381, %v2385
          %v2388 = vshrl.u32 %v2290, 16
          %v2390 = vrot.slane %v2388, 4
          %v2391 = vshll.u32 %v2290, 16
          %v2393 = vrot.slane %v2391, 5
          %v2394 = vor.u32 %v2390, %v2393
          %v2395 = vrot.slane %v2394, 4
          %v2397 = vshll.u32 %v2298, 16
          %v2399 = vrot.slane %v2397, 5
          %v2400 = vsel %vm2302, %v2395, %v2399
          %v2402 = vshrl.u32 %v2291, 16
          %v2404 = vrot.slane %v2402, 4
          %v2405 = vshll.u32 %v2291, 16
          %v2407 = vrot.slane %v2405, 5
          %v2408 = vor.u32 %v2404, %v2407
          %v2409 = vrot.slane %v2408, 4
          %v2411 = vshll.u32 %v2299, 16
          %v2413 = vrot.slane %v2411, 5
          %v2414 = vsel %vm2302, %v2409, %v2413
          %v2415 = vld [vmem:[#allocation2] sm:$0xe]
          %v2416 = vld [vmem:[#allocation2 + $0x8] sm:$0xe]
          %v2417 = vld [vmem:[#allocation2 + $0x10] sm:$0xe]
          %v2418 = vld [vmem:[#allocation2 + $0x18] sm:$0xe]
          %v2419 = vld [vmem:[#allocation2 + $0x20] sm:$0xe]
          %v2420 = vld [vmem:[#allocation2 + $0x28] sm:$0xe]
          %v2421 = vld [vmem:[#allocation2 + $0x30] sm:$0xe]
          %v2422 = vld [vmem:[#allocation2 + $0x38] sm:$0xe]
          %vm2439 = vcmask 1042432
          %vm2440 = vcmask 1046532
          %vm2441 = vmor %vm2439, %vm2440
          %v2442 = vrot.slane %v2415, 5
          %v2443 = vrot.slane %v2442, 4
          %v2444 = vrot.slane %v2292, 5
          %v2445 = vsel %vm2441, %v2443, %v2444
          %v2446 = vrot.slane %v2416, 5
          %v2447 = vrot.slane %v2446, 4
          %v2448 = vrot.slane %v2293, 5
          %v2449 = vsel %vm2441, %v2447, %v2448
          %v2450 = vrot.slane %v2417, 5
          %v2451 = vrot.slane %v2450, 4
          %v2452 = vrot.slane %v2294, 5
          %v2453 = vsel %vm2441, %v2451, %v2452
          %v2454 = vrot.slane %v2418, 5
          %v2455 = vrot.slane %v2454, 4
          %v2456 = vrot.slane %v2295, 5
          %v2457 = vsel %vm2441, %v2455, %v2456
          %v2458 = vrot.slane %v2419, 5
          %v2459 = vrot.slane %v2458, 4
          %v2460 = vrot.slane %v2296, 5
          %v2461 = vsel %vm2441, %v2459, %v2460
          %v2462 = vrot.slane %v2420, 5
          %v2463 = vrot.slane %v2462, 4
          %v2464 = vrot.slane %v2297, 5
          %v2465 = vsel %vm2441, %v2463, %v2464
          %v2466 = vrot.slane %v2421, 5
          %v2467 = vrot.slane %v2466, 4
          %v2468 = vrot.slane %v2298, 5
          %v2469 = vsel %vm2441, %v2467, %v2468
          %v2470 = vrot.slane %v2422, 5
          %v2471 = vrot.slane %v2470, 4
          %v2472 = vrot.slane %v2299, 5
          %v2473 = vsel %vm2441, %v2471, %v2472
          %v2474 = vld [vmem:[%s2229] sm:$0xf]
          %v2475 = vld [vmem:[%s2229 + $0x8] sm:$0xf]
          %v2476 = vld [vmem:[%s2229 + $0x10] sm:$0xf]
          %v2477 = vld [vmem:[%s2229 + $0x18] sm:$0xf]
          %v2478 = vld [vmem:[%s2229 + $0x20] sm:$0xf]
          %v2479 = vld [vmem:[%s2229 + $0x28] sm:$0xf]
          %v2480 = vld [vmem:[%s2229 + $0x30] sm:$0xf]
          %v2481 = vld [vmem:[%s2229 + $0x38] sm:$0xf]
          %v2482 = vld [vmem:[%s2229 + $0x4] sm:$0x1]
          %v2483 = vld [vmem:[%s2229 + $0xc] sm:$0x1]
          %v2484 = vld [vmem:[%s2229 + $0x14] sm:$0x1]
          %v2485 = vld [vmem:[%s2229 + $0x1c] sm:$0x1]
          %v2486 = vld [vmem:[%s2229 + $0x24] sm:$0x1]
          %v2487 = vld [vmem:[%s2229 + $0x2c] sm:$0x1]
          %v2488 = vld [vmem:[%s2229 + $0x34] sm:$0x1]
          %v2489 = vld [vmem:[%s2229 + $0x3c] sm:$0x1]
          %v2491 = vshrl.u32 %v2474, 16
          %v2493 = vrot.slane %v2491, 4
          %v2494 = vshll.u32 %v2474, 16
          %v2496 = vrot.slane %v2494, 5
          %v2497 = vor.u32 %v2493, %v2496
          %v2498 = vrot.slane %v2497, 4
          %v2500 = vshll.u32 %v2482, 16
          %v2502 = vrot.slane %v2500, 5
          %v2503 = vsel %vm2302, %v2498, %v2502
          %v2505 = vshrl.u32 %v2475, 16
          %v2507 = vrot.slane %v2505, 4
          %v2508 = vshll.u32 %v2475, 16
          %v2510 = vrot.slane %v2508, 5
          %v2511 = vor.u32 %v2507, %v2510
          %v2512 = vrot.slane %v2511, 4
          %v2514 = vshll.u32 %v2483, 16
          %v2516 = vrot.slane %v2514, 5
          %v2517 = vsel %vm2302, %v2512, %v2516
          %v2519 = vshrl.u32 %v2476, 16
          %v2521 = vrot.slane %v2519, 4
          %v2522 = vshll.u32 %v2476, 16
          %v2524 = vrot.slane %v2522, 5
          %v2525 = vor.u32 %v2521, %v2524
          %v2526 = vrot.slane %v2525, 4
          %v2528 = vshll.u32 %v2484, 16
          %v2530 = vrot.slane %v2528, 5
          %v2531 = vsel %vm2302, %v2526, %v2530
          %v2533 = vshrl.u32 %v2477, 16
          %v2535 = vrot.slane %v2533, 4
          %v2536 = vshll.u32 %v2477, 16
          %v2538 = vrot.slane %v2536, 5
          %v2539 = vor.u32 %v2535, %v2538
          %v2540 = vrot.slane %v2539, 4
          %v2542 = vshll.u32 %v2485, 16
          %v2544 = vrot.slane %v2542, 5
          %v2545 = vsel %vm2302, %v2540, %v2544
          %v2547 = vshrl.u32 %v2478, 16
          %v2549 = vrot.slane %v2547, 4
          %v2550 = vshll.u32 %v2478, 16
          %v2552 = vrot.slane %v2550, 5
          %v2553 = vor.u32 %v2549, %v2552
          %v2554 = vrot.slane %v2553, 4
          %v2556 = vshll.u32 %v2486, 16
          %v2558 = vrot.slane %v2556, 5
          %v2559 = vsel %vm2302, %v2554, %v2558
          %v2561 = vshrl.u32 %v2479, 16
          %v2563 = vrot.slane %v2561, 4
          %v2564 = vshll.u32 %v2479, 16
          %v2566 = vrot.slane %v2564, 5
          %v2567 = vor.u32 %v2563, %v2566
          %v2568 = vrot.slane %v2567, 4
          %v2570 = vshll.u32 %v2487, 16
          %v2572 = vrot.slane %v2570, 5
          %v2573 = vsel %vm2302, %v2568, %v2572
          %v2575 = vshrl.u32 %v2480, 16
          %v2577 = vrot.slane %v2575, 4
          %v2578 = vshll.u32 %v2480, 16
          %v2580 = vrot.slane %v2578, 5
          %v2581 = vor.u32 %v2577, %v2580
          %v2582 = vrot.slane %v2581, 4
          %v2584 = vshll.u32 %v2488, 16
          %v2586 = vrot.slane %v2584, 5
          %v2587 = vsel %vm2302, %v2582, %v2586
          %v2589 = vshrl.u32 %v2481, 16
          %v2591 = vrot.slane %v2589, 4
          %v2592 = vshll.u32 %v2481, 16
          %v2594 = vrot.slane %v2592, 5
          %v2595 = vor.u32 %v2591, %v2594
          %v2596 = vrot.slane %v2595, 4
          %v2598 = vshll.u32 %v2489, 16
          %v2600 = vrot.slane %v2598, 5
          %v2601 = vsel %vm2302, %v2596, %v2600
          %v2602 = vld [vmem:[%s2229] sm:$0xe]
          %v2603 = vld [vmem:[%s2229 + $0x8] sm:$0xe]
          %v2604 = vld [vmem:[%s2229 + $0x10] sm:$0xe]
          %v2605 = vld [vmem:[%s2229 + $0x18] sm:$0xe]
          %v2606 = vld [vmem:[%s2229 + $0x20] sm:$0xe]
          %v2607 = vld [vmem:[%s2229 + $0x28] sm:$0xe]
          %v2608 = vld [vmem:[%s2229 + $0x30] sm:$0xe]
          %v2609 = vld [vmem:[%s2229 + $0x38] sm:$0xe]
          %v2626 = vrot.slane %v2602, 5
          %v2627 = vrot.slane %v2626, 4
          %v2628 = vrot.slane %v2482, 5
          %v2629 = vsel %vm2441, %v2627, %v2628
          %v2630 = vrot.slane %v2603, 5
          %v2631 = vrot.slane %v2630, 4
          %v2632 = vrot.slane %v2483, 5
          %v2633 = vsel %vm2441, %v2631, %v2632
          %v2634 = vrot.slane %v2604, 5
          %v2635 = vrot.slane %v2634, 4
          %v2636 = vrot.slane %v2484, 5
          %v2637 = vsel %vm2441, %v2635, %v2636
          %v2638 = vrot.slane %v2605, 5
          %v2639 = vrot.slane %v2638, 4
          %v2640 = vrot.slane %v2485, 5
          %v2641 = vsel %vm2441, %v2639, %v2640
          %v2642 = vrot.slane %v2606, 5
          %v2643 = vrot.slane %v2642, 4
          %v2644 = vrot.slane %v2486, 5
          %v2645 = vsel %vm2441, %v2643, %v2644
          %v2646 = vrot.slane %v2607, 5
          %v2647 = vrot.slane %v2646, 4
          %v2648 = vrot.slane %v2487, 5
          %v2649 = vsel %vm2441, %v2647, %v2648
          %v2650 = vrot.slane %v2608, 5
          %v2651 = vrot.slane %v2650, 4
          %v2652 = vrot.slane %v2488, 5
          %v2653 = vsel %vm2441, %v2651, %v2652
          %v2654 = vrot.slane %v2609, 5
          %v2655 = vrot.slane %v2654, 4
          %v2656 = vrot.slane %v2489, 5
          %v2657 = vsel %vm2441, %v2655, %v2656
          %s2658 = scalar_lea.vmem [#allocation2], 16
          %v2659 = vld [vmem:[%s2658] sm:$0xf]
          %v2660 = vld [vmem:[%s2658 + $0x8] sm:$0xf]
          %v2661 = vld [vmem:[%s2658 + $0x10] sm:$0xf]
          %v2662 = vld [vmem:[%s2658 + $0x18] sm:$0xf]
          %v2663 = vld [vmem:[%s2658 + $0x20] sm:$0xf]
          %v2664 = vld [vmem:[%s2658 + $0x28] sm:$0xf]
          %v2665 = vld [vmem:[%s2658 + $0x30] sm:$0xf]
          %v2666 = vld [vmem:[%s2658 + $0x38] sm:$0xf]
          %v2667 = vld [vmem:[%s2658 + $0x4] sm:$0x1]
          %v2668 = vld [vmem:[%s2658 + $0xc] sm:$0x1]
          %v2669 = vld [vmem:[%s2658 + $0x14] sm:$0x1]
          %v2670 = vld [vmem:[%s2658 + $0x1c] sm:$0x1]
          %v2671 = vld [vmem:[%s2658 + $0x24] sm:$0x1]
          %v2672 = vld [vmem:[%s2658 + $0x2c] sm:$0x1]
          %v2673 = vld [vmem:[%s2658 + $0x34] sm:$0x1]
          %v2674 = vld [vmem:[%s2658 + $0x3c] sm:$0x1]
          %v2676 = vshrl.u32 %v2659, 16
          %v2678 = vrot.slane %v2676, 4
          %v2679 = vshll.u32 %v2659, 16
          %v2681 = vrot.slane %v2679, 5
          %v2682 = vor.u32 %v2678, %v2681
          %v2683 = vrot.slane %v2682, 4
          %v2685 = vshll.u32 %v2667, 16
          %v2687 = vrot.slane %v2685, 5
          %v2688 = vsel %vm2302, %v2683, %v2687
          %v2690 = vshrl.u32 %v2660, 16
          %v2692 = vrot.slane %v2690, 4
          %v2693 = vshll.u32 %v2660, 16
          %v2695 = vrot.slane %v2693, 5
          %v2696 = vor.u32 %v2692, %v2695
          %v2697 = vrot.slane %v2696, 4
          %v2699 = vshll.u32 %v2668, 16
          %v2701 = vrot.slane %v2699, 5
          %v2702 = vsel %vm2302, %v2697, %v2701
          %v2704 = vshrl.u32 %v2661, 16
          %v2706 = vrot.slane %v2704, 4
          %v2707 = vshll.u32 %v2661, 16
          %v2709 = vrot.slane %v2707, 5
          %v2710 = vor.u32 %v2706, %v2709
          %v2711 = vrot.slane %v2710, 4
          %v2713 = vshll.u32 %v2669, 16
          %v2715 = vrot.slane %v2713, 5
          %v2716 = vsel %vm2302, %v2711, %v2715
          %v2718 = vshrl.u32 %v2662, 16
          %v2720 = vrot.slane %v2718, 4
          %v2721 = vshll.u32 %v2662, 16
          %v2723 = vrot.slane %v2721, 5
          %v2724 = vor.u32 %v2720, %v2723
          %v2725 = vrot.slane %v2724, 4
          %v2727 = vshll.u32 %v2670, 16
          %v2729 = vrot.slane %v2727, 5
          %v2730 = vsel %vm2302, %v2725, %v2729
          %v2732 = vshrl.u32 %v2663, 16
          %v2734 = vrot.slane %v2732, 4
          %v2735 = vshll.u32 %v2663, 16
          %v2737 = vrot.slane %v2735, 5
          %v2738 = vor.u32 %v2734, %v2737
          %v2739 = vrot.slane %v2738, 4
          %v2741 = vshll.u32 %v2671, 16
          %v2743 = vrot.slane %v2741, 5
          %v2744 = vsel %vm2302, %v2739, %v2743
          %v2746 = vshrl.u32 %v2664, 16
          %v2748 = vrot.slane %v2746, 4
          %v2749 = vshll.u32 %v2664, 16
          %v2751 = vrot.slane %v2749, 5
          %v2752 = vor.u32 %v2748, %v2751
          %v2753 = vrot.slane %v2752, 4
          %v2755 = vshll.u32 %v2672, 16
          %v2757 = vrot.slane %v2755, 5
          %v2758 = vsel %vm2302, %v2753, %v2757
          %v2760 = vshrl.u32 %v2665, 16
          %v2762 = vrot.slane %v2760, 4
          %v2763 = vshll.u32 %v2665, 16
          %v2765 = vrot.slane %v2763, 5
          %v2766 = vor.u32 %v2762, %v2765
          %v2767 = vrot.slane %v2766, 4
          %v2769 = vshll.u32 %v2673, 16
          %v2771 = vrot.slane %v2769, 5
          %v2772 = vsel %vm2302, %v2767, %v2771
          %v2774 = vshrl.u32 %v2666, 16
          %v2776 = vrot.slane %v2774, 4
          %v2777 = vshll.u32 %v2666, 16
          %v2779 = vrot.slane %v2777, 5
          %v2780 = vor.u32 %v2776, %v2779
          %v2781 = vrot.slane %v2780, 4
          %v2783 = vshll.u32 %v2674, 16
          %v2785 = vrot.slane %v2783, 5
          %v2786 = vsel %vm2302, %v2781, %v2785
          %v2787 = vld [vmem:[%s2658] sm:$0xe]
          %v2788 = vld [vmem:[%s2658 + $0x8] sm:$0xe]
          %v2789 = vld [vmem:[%s2658 + $0x10] sm:$0xe]
          %v2790 = vld [vmem:[%s2658 + $0x18] sm:$0xe]
          %v2791 = vld [vmem:[%s2658 + $0x20] sm:$0xe]
          %v2792 = vld [vmem:[%s2658 + $0x28] sm:$0xe]
          %v2793 = vld [vmem:[%s2658 + $0x30] sm:$0xe]
          %v2794 = vld [vmem:[%s2658 + $0x38] sm:$0xe]
          %v2811 = vrot.slane %v2787, 5
          %v2812 = vrot.slane %v2811, 4
          %v2813 = vrot.slane %v2667, 5
          %v2814 = vsel %vm2441, %v2812, %v2813
          %v2815 = vrot.slane %v2788, 5
          %v2816 = vrot.slane %v2815, 4
          %v2817 = vrot.slane %v2668, 5
          %v2818 = vsel %vm2441, %v2816, %v2817
          %v2819 = vrot.slane %v2789, 5
          %v2820 = vrot.slane %v2819, 4
          %v2821 = vrot.slane %v2669, 5
          %v2822 = vsel %vm2441, %v2820, %v2821
          %v2823 = vrot.slane %v2790, 5
          %v2824 = vrot.slane %v2823, 4
          %v2825 = vrot.slane %v2670, 5
          %v2826 = vsel %vm2441, %v2824, %v2825
          %v2827 = vrot.slane %v2791, 5
          %v2828 = vrot.slane %v2827, 4
          %v2829 = vrot.slane %v2671, 5
          %v2830 = vsel %vm2441, %v2828, %v2829
          %v2831 = vrot.slane %v2792, 5
          %v2832 = vrot.slane %v2831, 4
          %v2833 = vrot.slane %v2672, 5
          %v2834 = vsel %vm2441, %v2832, %v2833
          %v2835 = vrot.slane %v2793, 5
          %v2836 = vrot.slane %v2835, 4
          %v2837 = vrot.slane %v2673, 5
          %v2838 = vsel %vm2441, %v2836, %v2837
          %v2839 = vrot.slane %v2794, 5
          %v2840 = vrot.slane %v2839, 4
          %v2841 = vrot.slane %v2674, 5
          %v2842 = vsel %vm2441, %v2840, %v2841
          %v2851 = vunpack.c.l.b16 %v2284
          %v2852 = vunpack.c.l.b16 %v2285
          %v2853 = vunpack.c.l.b16 %v2286
          %v2854 = vunpack.c.l.b16 %v2287
          %v2855 = vunpack.c.l.b16 %v2288
          %v2856 = vunpack.c.l.b16 %v2289
          %v2857 = vunpack.c.l.b16 %v2290
          %v2858 = vunpack.c.l.b16 %v2291
          %v2859 = vpack.c.b16 %v2852, %v2851
          %v2860 = vpack.c.b16 %v2854, %v2853
          %v2861 = vpack.c.b16 %v2856, %v2855
          %v2862 = vpack.c.b16 %v2858, %v2857
          %v2867 = vunpack.c.l.b16 %v2316
          %v2868 = vunpack.c.l.b16 %v2330
          %v2869 = vunpack.c.l.b16 %v2344
          %v2870 = vunpack.c.l.b16 %v2358
          %v2871 = vunpack.c.l.b16 %v2372
          %v2872 = vunpack.c.l.b16 %v2386
          %v2873 = vunpack.c.l.b16 %v2400
          %v2874 = vunpack.c.l.b16 %v2414
          %v2875 = vpack.c.b16 %v2868, %v2867
          %v2876 = vpack.c.b16 %v2870, %v2869
          %v2877 = vpack.c.b16 %v2872, %v2871
          %v2878 = vpack.c.b16 %v2874, %v2873
          %v2883 = vunpack.c.l.b16 %v2445
          %v2884 = vunpack.c.l.b16 %v2449
          %v2885 = vunpack.c.l.b16 %v2453
          %v2886 = vunpack.c.l.b16 %v2457
          %v2887 = vunpack.c.l.b16 %v2461
          %v2888 = vunpack.c.l.b16 %v2465
          %v2889 = vunpack.c.l.b16 %v2469
          %v2890 = vunpack.c.l.b16 %v2473
          %v2891 = vpack.c.b16 %v2884, %v2883
          %v2892 = vpack.c.b16 %v2886, %v2885
          %v2893 = vpack.c.b16 %v2888, %v2887
          %v2894 = vpack.c.b16 %v2890, %v2889
          %v2907 = vunpack.c.l.b16 %v2474
          %v2908 = vunpack.c.l.b16 %v2475
          %v2909 = vunpack.c.l.b16 %v2476
          %v2910 = vunpack.c.l.b16 %v2477
          %v2911 = vunpack.c.l.b16 %v2478
          %v2912 = vunpack.c.l.b16 %v2479
          %v2913 = vunpack.c.l.b16 %v2480
          %v2914 = vunpack.c.l.b16 %v2481
          %v2915 = vpack.c.b16 %v2908, %v2907
          %v2916 = vpack.c.b16 %v2910, %v2909
          %v2917 = vpack.c.b16 %v2912, %v2911
          %v2918 = vpack.c.b16 %v2914, %v2913
          %v2923 = vunpack.c.l.b16 %v2503
          %v2924 = vunpack.c.l.b16 %v2517
          %v2925 = vunpack.c.l.b16 %v2531
          %v2926 = vunpack.c.l.b16 %v2545
          %v2927 = vunpack.c.l.b16 %v2559
          %v2928 = vunpack.c.l.b16 %v2573
          %v2929 = vunpack.c.l.b16 %v2587
          %v2930 = vunpack.c.l.b16 %v2601
          %v2931 = vpack.c.b16 %v2924, %v2923
          %v2932 = vpack.c.b16 %v2926, %v2925
          %v2933 = vpack.c.b16 %v2928, %v2927
          %v2934 = vpack.c.b16 %v2930, %v2929
          %v2939 = vunpack.c.l.b16 %v2629
          %v2940 = vunpack.c.l.b16 %v2633
          %v2941 = vunpack.c.l.b16 %v2637
          %v2942 = vunpack.c.l.b16 %v2641
          %v2943 = vunpack.c.l.b16 %v2645
          %v2944 = vunpack.c.l.b16 %v2649
          %v2945 = vunpack.c.l.b16 %v2653
          %v2946 = vunpack.c.l.b16 %v2657
          %v2947 = vpack.c.b16 %v2940, %v2939
          %v2948 = vpack.c.b16 %v2942, %v2941
          %v2949 = vpack.c.b16 %v2944, %v2943
          %v2950 = vpack.c.b16 %v2946, %v2945
          %v2963 = vunpack.c.l.b16 %v2659
          %v2964 = vunpack.c.l.b16 %v2660
          %v2965 = vunpack.c.l.b16 %v2661
          %v2966 = vunpack.c.l.b16 %v2662
          %v2967 = vunpack.c.l.b16 %v2663
          %v2968 = vunpack.c.l.b16 %v2664
          %v2969 = vunpack.c.l.b16 %v2665
          %v2970 = vunpack.c.l.b16 %v2666
          %v2971 = vpack.c.b16 %v2964, %v2963
          %v2972 = vpack.c.b16 %v2966, %v2965
          %v2973 = vpack.c.b16 %v2968, %v2967
          %v2974 = vpack.c.b16 %v2970, %v2969
          %v2979 = vunpack.c.l.b16 %v2688
          %v2980 = vunpack.c.l.b16 %v2702
          %v2981 = vunpack.c.l.b16 %v2716
          %v2982 = vunpack.c.l.b16 %v2730
          %v2983 = vunpack.c.l.b16 %v2744
          %v2984 = vunpack.c.l.b16 %v2758
          %v2985 = vunpack.c.l.b16 %v2772
          %v2986 = vunpack.c.l.b16 %v2786
          %v2987 = vpack.c.b16 %v2980, %v2979
          %v2988 = vpack.c.b16 %v2982, %v2981
          %v2989 = vpack.c.b16 %v2984, %v2983
          %v2990 = vpack.c.b16 %v2986, %v2985
          %v2995 = vunpack.c.l.b16 %v2814
          %v2996 = vunpack.c.l.b16 %v2818
          %v2997 = vunpack.c.l.b16 %v2822
          %v2998 = vunpack.c.l.b16 %v2826
          %v2999 = vunpack.c.l.b16 %v2830
          %v3000 = vunpack.c.l.b16 %v2834
          %v3001 = vunpack.c.l.b16 %v2838
          %v3002 = vunpack.c.l.b16 %v2842
          %v3003 = vpack.c.b16 %v2996, %v2995
          %v3004 = vpack.c.b16 %v2998, %v2997
          %v3005 = vpack.c.b16 %v3000, %v2999
          %v3006 = vpack.c.b16 %v3002, %v3001
          %v3011 = vld [vmem:[#allocation12] sm:$0xf]
          %v3012 = vld [vmem:[#allocation12 + $0x4] sm:$0xf]
          %v3013 = vld [vmem:[#allocation12 + $0x8] sm:$0xf]
          %v3014 = vld [vmem:[#allocation12 + $0xc] sm:$0xf]
          %v3015 = vld [vmem:[#allocation12 + $0x10] sm:$0xf]
          %v3016 = vld [vmem:[#allocation12 + $0x14] sm:$0xf]
          %v3017 = vld [vmem:[#allocation12 + $0x18] sm:$0xf]
          %v3018 = vld [vmem:[#allocation12 + $0x1c] sm:$0xf]
          %v3019 = vld [vmem:[#allocation12 + $0x20] sm:$0xf]
          %v3020 = vld [vmem:[#allocation12 + $0x24] sm:$0xf]
          %v3021 = vld [vmem:[#allocation12 + $0x28] sm:$0xf]
          %v3022 = vld [vmem:[#allocation12 + $0x2c] sm:$0xf]
          %v3023 = vld [vmem:[#allocation12 + $0x30] sm:$0xf]
          %v3024 = vld [vmem:[#allocation12 + $0x34] sm:$0xf]
          %v3025 = vld [vmem:[#allocation12 + $0x38] sm:$0xf]
          %v3026 = vld [vmem:[#allocation12 + $0x3c] sm:$0xf]
          %v3027 = vld [vmem:[#allocation12 + $0x40] sm:$0xf]
          %v3028 = vld [vmem:[#allocation12 + $0x44] sm:$0xf]
          %v3029 = vld [vmem:[#allocation12 + $0x48] sm:$0xf]
          %v3030 = vld [vmem:[#allocation12 + $0x4c] sm:$0xf]
          %v3031 = vld [vmem:[#allocation12 + $0x50] sm:$0xf]
          %v3032 = vld [vmem:[#allocation12 + $0x54] sm:$0xf]
          %v3033 = vld [vmem:[#allocation12 + $0x58] sm:$0xf]
          %v3034 = vld [vmem:[#allocation12 + $0x5c] sm:$0xf]
          %v3035 = vld [vmem:[#allocation12 + $0x60] sm:$0xf]
          %v3036 = vld [vmem:[#allocation12 + $0x64] sm:$0xf]
          %v3037 = vld [vmem:[#allocation12 + $0x68] sm:$0xf]
          %v3038 = vld [vmem:[#allocation12 + $0x6c] sm:$0xf]
          %v3039 = vld [vmem:[#allocation12 + $0x70] sm:$0xf]
          %v3040 = vld [vmem:[#allocation12 + $0x74] sm:$0xf]
          %v3041 = vld [vmem:[#allocation12 + $0x78] sm:$0xf]
          %v3042 = vld [vmem:[#allocation12 + $0x7c] sm:$0xf]
          %v3043 = vld [vmem:[#allocation12 + $0x80] sm:$0xf]
          %v3044 = vld [vmem:[#allocation12 + $0x84] sm:$0xf]
          %v3045 = vld [vmem:[#allocation12 + $0x88] sm:$0xf]
          %v3046 = vld [vmem:[#allocation12 + $0x8c] sm:$0xf]
          %v3047 = vld [vmem:[#allocation12 + $0x90] sm:$0xf]
          %v3048 = vld [vmem:[#allocation12 + $0x94] sm:$0xf]
          %v3049 = vld [vmem:[#allocation12 + $0x98] sm:$0xf]
          %v3050 = vld [vmem:[#allocation12 + $0x9c] sm:$0xf]
          %v3051 = vld [vmem:[#allocation12 + $0xa0] sm:$0xf]
          %v3052 = vld [vmem:[#allocation12 + $0xa4] sm:$0xf]
          %v3053 = vld [vmem:[#allocation12 + $0xa8] sm:$0xf]
          %v3054 = vld [vmem:[#allocation12 + $0xac] sm:$0xf]
          %v3055 = vld [vmem:[#allocation12 + $0xb0] sm:$0xf]
          %v3056 = vld [vmem:[#allocation12 + $0xb4] sm:$0xf]
          %v3057 = vld [vmem:[#allocation12 + $0xb8] sm:$0xf]
          %v3058 = vld [vmem:[#allocation12 + $0xbc] sm:$0xf]
          %v3059 = vld [vmem:[#allocation12 + $0xc0] sm:$0xf]
          %v3060 = vld [vmem:[#allocation12 + $0xc4] sm:$0xf]
          %v3061 = vld [vmem:[#allocation12 + $0xc8] sm:$0xf]
          %v3062 = vld [vmem:[#allocation12 + $0xcc] sm:$0xf]
          %v3063 = vld [vmem:[#allocation12 + $0xd0] sm:$0xf]
          %v3064 = vld [vmem:[#allocation12 + $0xd4] sm:$0xf]
          %v3065 = vld [vmem:[#allocation12 + $0xd8] sm:$0xf]
          %v3066 = vld [vmem:[#allocation12 + $0xdc] sm:$0xf]
          %v3067 = vld [vmem:[#allocation12 + $0xe0] sm:$0xf]
          %v3068 = vld [vmem:[#allocation12 + $0xe4] sm:$0xf]
          %v3069 = vld [vmem:[#allocation12 + $0xe8] sm:$0xf]
          %v3070 = vld [vmem:[#allocation12 + $0xec] sm:$0xf]
          %v3071 = vld [vmem:[#allocation12 + $0xf0] sm:$0xf]
          %v3072 = vld [vmem:[#allocation12 + $0xf4] sm:$0xf]
          %v3073 = vld [vmem:[#allocation12 + $0xf8] sm:$0xf]
          %v3074 = vld [vmem:[#allocation12 + $0xfc] sm:$0xf]
          %v3075 = vld [vmem:[#allocation12 + $0x100] sm:$0xf]
          %v3076 = vld [vmem:[#allocation12 + $0x104] sm:$0xf]
          %v3077 = vld [vmem:[#allocation12 + $0x108] sm:$0xf]
          %v3078 = vld [vmem:[#allocation12 + $0x10c] sm:$0xf]
          %v3079 = vld [vmem:[#allocation12 + $0x110] sm:$0xf]
          %v3080 = vld [vmem:[#allocation12 + $0x114] sm:$0xf]
          %v3081 = vld [vmem:[#allocation12 + $0x118] sm:$0xf]
          %v3082 = vld [vmem:[#allocation12 + $0x11c] sm:$0xf]
          %v3083 = vld [vmem:[#allocation12 + $0x120] sm:$0xf]
          %v3084 = vld [vmem:[#allocation12 + $0x124] sm:$0xf]
          %v3085 = vld [vmem:[#allocation12 + $0x128] sm:$0xf]
          %v3086 = vld [vmem:[#allocation12 + $0x12c] sm:$0xf]
          %v3087 = vld [vmem:[#allocation12 + $0x130] sm:$0xf]
          %v3088 = vld [vmem:[#allocation12 + $0x134] sm:$0xf]
          %v3089 = vld [vmem:[#allocation12 + $0x138] sm:$0xf]
          %v3090 = vld [vmem:[#allocation12 + $0x13c] sm:$0xf]
          %v3091 = vld [vmem:[#allocation12 + $0x140] sm:$0xf]
          %v3092 = vld [vmem:[#allocation12 + $0x144] sm:$0xf]
          %v3093 = vld [vmem:[#allocation12 + $0x148] sm:$0xf]
          %v3094 = vld [vmem:[#allocation12 + $0x14c] sm:$0xf]
          %v3095 = vld [vmem:[#allocation12 + $0x150] sm:$0xf]
          %v3096 = vld [vmem:[#allocation12 + $0x154] sm:$0xf]
          %v3097 = vld [vmem:[#allocation12 + $0x158] sm:$0xf]
          %v3098 = vld [vmem:[#allocation12 + $0x15c] sm:$0xf]
          %v3099 = vld [vmem:[#allocation12 + $0x160] sm:$0xf]
          %v3100 = vld [vmem:[#allocation12 + $0x164] sm:$0xf]
          %v3101 = vld [vmem:[#allocation12 + $0x168] sm:$0xf]
          %v3102 = vld [vmem:[#allocation12 + $0x16c] sm:$0xf]
          %v3103 = vld [vmem:[#allocation12 + $0x170] sm:$0xf]
          %v3104 = vld [vmem:[#allocation12 + $0x174] sm:$0xf]
          %v3105 = vld [vmem:[#allocation12 + $0x178] sm:$0xf]
          %v3106 = vld [vmem:[#allocation12 + $0x17c] sm:$0xf]
          %v3107 = vld [vmem:[#allocation12 + $0x180] sm:$0xf]
          %v3108 = vld [vmem:[#allocation12 + $0x184] sm:$0xf]
          %v3109 = vld [vmem:[#allocation12 + $0x188] sm:$0xf]
          %v3110 = vld [vmem:[#allocation12 + $0x18c] sm:$0xf]
          %v3111 = vld [vmem:[#allocation12 + $0x190] sm:$0xf]
          %v3112 = vld [vmem:[#allocation12 + $0x194] sm:$0xf]
          %v3113 = vld [vmem:[#allocation12 + $0x198] sm:$0xf]
          %v3114 = vld [vmem:[#allocation12 + $0x19c] sm:$0xf]
          %v3115 = vld [vmem:[#allocation12 + $0x1a0] sm:$0xf]
          %v3116 = vld [vmem:[#allocation12 + $0x1a4] sm:$0xf]
          %v3117 = vld [vmem:[#allocation12 + $0x1a8] sm:$0xf]
          %v3118 = vld [vmem:[#allocation12 + $0x1ac] sm:$0xf]
          %v3119 = vld [vmem:[#allocation12 + $0x1b0] sm:$0xf]
          %v3120 = vld [vmem:[#allocation12 + $0x1b4] sm:$0xf]
          %v3121 = vld [vmem:[#allocation12 + $0x1b8] sm:$0xf]
          %v3122 = vld [vmem:[#allocation12 + $0x1bc] sm:$0xf]
          %v3123 = vld [vmem:[#allocation12 + $0x1c0] sm:$0xf]
          %v3124 = vld [vmem:[#allocation12 + $0x1c4] sm:$0xf]
          %v3125 = vld [vmem:[#allocation12 + $0x1c8] sm:$0xf]
          %v3126 = vld [vmem:[#allocation12 + $0x1cc] sm:$0xf]
          %v3127 = vld [vmem:[#allocation12 + $0x1d0] sm:$0xf]
          %v3128 = vld [vmem:[#allocation12 + $0x1d4] sm:$0xf]
          %v3129 = vld [vmem:[#allocation12 + $0x1d8] sm:$0xf]
          %v3130 = vld [vmem:[#allocation12 + $0x1dc] sm:$0xf]
          %v3131 = vld [vmem:[#allocation12 + $0x1e0] sm:$0xf]
          %v3132 = vld [vmem:[#allocation12 + $0x1e4] sm:$0xf]
          %v3133 = vld [vmem:[#allocation12 + $0x1e8] sm:$0xf]
          %v3134 = vld [vmem:[#allocation12 + $0x1ec] sm:$0xf]
          %v3135 = vld [vmem:[#allocation12 + $0x1f0] sm:$0xf]
          %v3136 = vld [vmem:[#allocation12 + $0x1f4] sm:$0xf]
          %v3137 = vld [vmem:[#allocation12 + $0x1f8] sm:$0xf]
          %v3138 = vld [vmem:[#allocation12 + $0x1fc] sm:$0xf]
          %v3139 = vld [vmem:[#allocation12 + $0x200] sm:$0xf]
          %v3140 = vld [vmem:[#allocation12 + $0x204] sm:$0xf]
          %v3141 = vld [vmem:[#allocation12 + $0x208] sm:$0xf]
          %v3142 = vld [vmem:[#allocation12 + $0x20c] sm:$0xf]
          %v3143 = vld [vmem:[#allocation12 + $0x210] sm:$0xf]
          %v3144 = vld [vmem:[#allocation12 + $0x214] sm:$0xf]
          %v3145 = vld [vmem:[#allocation12 + $0x218] sm:$0xf]
          %v3146 = vld [vmem:[#allocation12 + $0x21c] sm:$0xf]
          %v3147 = vld [vmem:[#allocation12 + $0x220] sm:$0xf]
          %v3148 = vld [vmem:[#allocation12 + $0x224] sm:$0xf]
          %v3149 = vld [vmem:[#allocation12 + $0x228] sm:$0xf]
          %v3150 = vld [vmem:[#allocation12 + $0x22c] sm:$0xf]
          %v3151 = vld [vmem:[#allocation12 + $0x230] sm:$0xf]
          %v3152 = vld [vmem:[#allocation12 + $0x234] sm:$0xf]
          %v3153 = vld [vmem:[#allocation12 + $0x238] sm:$0xf]
          %v3154 = vld [vmem:[#allocation12 + $0x23c] sm:$0xf]
          %v3299 = vunpack.c.l.b16 %v3011
          %v3300 = vunpack.c.l.b16 %v3012
          %v3301 = vunpack.c.l.b16 %v3013
          %v3302 = vunpack.c.l.b16 %v3014
          %v3303 = vunpack.c.l.b16 %v3015
          %v3304 = vunpack.c.l.b16 %v3016
          %v3305 = vunpack.c.l.b16 %v3017
          %v3306 = vunpack.c.l.b16 %v3018
          %v3307 = vunpack.c.l.b16 %v3019
          %v3308 = vunpack.c.l.b16 %v3020
          %v3309 = vunpack.c.l.b16 %v3021
          %v3310 = vunpack.c.l.b16 %v3022
          %v3311 = vunpack.c.l.b16 %v3023
          %v3312 = vunpack.c.l.b16 %v3024
          %v3313 = vunpack.c.l.b16 %v3025
          %v3314 = vunpack.c.l.b16 %v3026
          %v3315 = vunpack.c.l.b16 %v3027
          %v3316 = vunpack.c.l.b16 %v3028
          %v3317 = vunpack.c.l.b16 %v3029
          %v3318 = vunpack.c.l.b16 %v3030
          %v3319 = vunpack.c.l.b16 %v3031
          %v3320 = vunpack.c.l.b16 %v3032
          %v3321 = vunpack.c.l.b16 %v3033
          %v3322 = vunpack.c.l.b16 %v3034
          %v3323 = vunpack.c.l.b16 %v3035
          %v3324 = vunpack.c.l.b16 %v3036
          %v3325 = vunpack.c.l.b16 %v3037
          %v3326 = vunpack.c.l.b16 %v3038
          %v3327 = vunpack.c.l.b16 %v3039
          %v3328 = vunpack.c.l.b16 %v3040
          %v3329 = vunpack.c.l.b16 %v3041
          %v3330 = vunpack.c.l.b16 %v3042
          %v3331 = vunpack.c.l.b16 %v3043
          %v3332 = vunpack.c.l.b16 %v3044
          %v3333 = vunpack.c.l.b16 %v3045
          %v3334 = vunpack.c.l.b16 %v3046
          %v3335 = vunpack.c.l.b16 %v3047
          %v3336 = vunpack.c.l.b16 %v3048
          %v3337 = vunpack.c.l.b16 %v3049
          %v3338 = vunpack.c.l.b16 %v3050
          %v3339 = vunpack.c.l.b16 %v3051
          %v3340 = vunpack.c.l.b16 %v3052
          %v3341 = vunpack.c.l.b16 %v3053
          %v3342 = vunpack.c.l.b16 %v3054
          %v3343 = vunpack.c.l.b16 %v3055
          %v3344 = vunpack.c.l.b16 %v3056
          %v3345 = vunpack.c.l.b16 %v3057
          %v3346 = vunpack.c.l.b16 %v3058
          %v3347 = vunpack.c.l.b16 %v3059
          %v3348 = vunpack.c.l.b16 %v3060
          %v3349 = vunpack.c.l.b16 %v3061
          %v3350 = vunpack.c.l.b16 %v3062
          %v3351 = vunpack.c.l.b16 %v3063
          %v3352 = vunpack.c.l.b16 %v3064
          %v3353 = vunpack.c.l.b16 %v3065
          %v3354 = vunpack.c.l.b16 %v3066
          %v3355 = vunpack.c.l.b16 %v3067
          %v3356 = vunpack.c.l.b16 %v3068
          %v3357 = vunpack.c.l.b16 %v3069
          %v3358 = vunpack.c.l.b16 %v3070
          %v3359 = vunpack.c.l.b16 %v3071
          %v3360 = vunpack.c.l.b16 %v3072
          %v3361 = vunpack.c.l.b16 %v3073
          %v3362 = vunpack.c.l.b16 %v3074
          %v3363 = vunpack.c.l.b16 %v3075
          %v3364 = vunpack.c.l.b16 %v3076
          %v3365 = vunpack.c.l.b16 %v3077
          %v3366 = vunpack.c.l.b16 %v3078
          %v3367 = vunpack.c.l.b16 %v3079
          %v3368 = vunpack.c.l.b16 %v3080
          %v3369 = vunpack.c.l.b16 %v3081
          %v3370 = vunpack.c.l.b16 %v3082
          %v3371 = vunpack.c.l.b16 %v3083
          %v3372 = vunpack.c.l.b16 %v3084
          %v3373 = vunpack.c.l.b16 %v3085
          %v3374 = vunpack.c.l.b16 %v3086
          %v3375 = vunpack.c.l.b16 %v3087
          %v3376 = vunpack.c.l.b16 %v3088
          %v3377 = vunpack.c.l.b16 %v3089
          %v3378 = vunpack.c.l.b16 %v3090
          %v3379 = vunpack.c.l.b16 %v3091
          %v3380 = vunpack.c.l.b16 %v3092
          %v3381 = vunpack.c.l.b16 %v3093
          %v3382 = vunpack.c.l.b16 %v3094
          %v3383 = vunpack.c.l.b16 %v3095
          %v3384 = vunpack.c.l.b16 %v3096
          %v3385 = vunpack.c.l.b16 %v3097
          %v3386 = vunpack.c.l.b16 %v3098
          %v3387 = vunpack.c.l.b16 %v3099
          %v3388 = vunpack.c.l.b16 %v3100
          %v3389 = vunpack.c.l.b16 %v3101
          %v3390 = vunpack.c.l.b16 %v3102
          %v3391 = vunpack.c.l.b16 %v3103
          %v3392 = vunpack.c.l.b16 %v3104
          %v3393 = vunpack.c.l.b16 %v3105
          %v3394 = vunpack.c.l.b16 %v3106
          %v3395 = vunpack.c.l.b16 %v3107
          %v3396 = vunpack.c.l.b16 %v3108
          %v3397 = vunpack.c.l.b16 %v3109
          %v3398 = vunpack.c.l.b16 %v3110
          %v3399 = vunpack.c.l.b16 %v3111
          %v3400 = vunpack.c.l.b16 %v3112
          %v3401 = vunpack.c.l.b16 %v3113
          %v3402 = vunpack.c.l.b16 %v3114
          %v3403 = vunpack.c.l.b16 %v3115
          %v3404 = vunpack.c.l.b16 %v3116
          %v3405 = vunpack.c.l.b16 %v3117
          %v3406 = vunpack.c.l.b16 %v3118
          %v3407 = vunpack.c.l.b16 %v3119
          %v3408 = vunpack.c.l.b16 %v3120
          %v3409 = vunpack.c.l.b16 %v3121
          %v3410 = vunpack.c.l.b16 %v3122
          %v3411 = vunpack.c.l.b16 %v3123
          %v3412 = vunpack.c.l.b16 %v3124
          %v3413 = vunpack.c.l.b16 %v3125
          %v3414 = vunpack.c.l.b16 %v3126
          %v3415 = vunpack.c.l.b16 %v3127
          %v3416 = vunpack.c.l.b16 %v3128
          %v3417 = vunpack.c.l.b16 %v3129
          %v3418 = vunpack.c.l.b16 %v3130
          %v3419 = vunpack.c.l.b16 %v3131
          %v3420 = vunpack.c.l.b16 %v3132
          %v3421 = vunpack.c.l.b16 %v3133
          %v3422 = vunpack.c.l.b16 %v3134
          %v3423 = vunpack.c.l.b16 %v3135
          %v3424 = vunpack.c.l.b16 %v3136
          %v3425 = vunpack.c.l.b16 %v3137
          %v3426 = vunpack.c.l.b16 %v3138
          %v3427 = vunpack.c.l.b16 %v3139
          %v3428 = vunpack.c.l.b16 %v3140
          %v3429 = vunpack.c.l.b16 %v3141
          %v3430 = vunpack.c.l.b16 %v3142
          %v3431 = vunpack.c.l.b16 %v3143
          %v3432 = vunpack.c.l.b16 %v3144
          %v3433 = vunpack.c.l.b16 %v3145
          %v3434 = vunpack.c.l.b16 %v3146
          %v3435 = vunpack.c.l.b16 %v3147
          %v3436 = vunpack.c.l.b16 %v3148
          %v3437 = vunpack.c.l.b16 %v3149
          %v3438 = vunpack.c.l.b16 %v3150
          %v3439 = vunpack.c.l.b16 %v3151
          %v3440 = vunpack.c.l.b16 %v3152
          %v3441 = vunpack.c.l.b16 %v3153
          %v3442 = vunpack.c.l.b16 %v3154
          %v3443 = vpack.c.b16 %v3300, %v3299
          %v3444 = vpack.c.b16 %v3302, %v3301
          %v3445 = vpack.c.b16 %v3304, %v3303
          %v3446 = vpack.c.b16 %v3306, %v3305
          %v3447 = vpack.c.b16 %v3308, %v3307
          %v3448 = vpack.c.b16 %v3310, %v3309
          %v3449 = vpack.c.b16 %v3312, %v3311
          %v3450 = vpack.c.b16 %v3314, %v3313
          %v3451 = vpack.c.b16 %v3316, %v3315
          %v3452 = vpack.c.b16 %v3318, %v3317
          %v3453 = vpack.c.b16 %v3320, %v3319
          %v3454 = vpack.c.b16 %v3322, %v3321
          %v3455 = vpack.c.b16 %v3324, %v3323
          %v3456 = vpack.c.b16 %v3326, %v3325
          %v3457 = vpack.c.b16 %v3328, %v3327
          %v3458 = vpack.c.b16 %v3330, %v3329
          %v3459 = vpack.c.b16 %v3332, %v3331
          %v3460 = vpack.c.b16 %v3334, %v3333
          %v3461 = vpack.c.b16 %v3336, %v3335
          %v3462 = vpack.c.b16 %v3338, %v3337
          %v3463 = vpack.c.b16 %v3340, %v3339
          %v3464 = vpack.c.b16 %v3342, %v3341
          %v3465 = vpack.c.b16 %v3344, %v3343
          %v3466 = vpack.c.b16 %v3346, %v3345
          %v3467 = vpack.c.b16 %v3348, %v3347
          %v3468 = vpack.c.b16 %v3350, %v3349
          %v3469 = vpack.c.b16 %v3352, %v3351
          %v3470 = vpack.c.b16 %v3354, %v3353
          %v3471 = vpack.c.b16 %v3356, %v3355
          %v3472 = vpack.c.b16 %v3358, %v3357
          %v3473 = vpack.c.b16 %v3360, %v3359
          %v3474 = vpack.c.b16 %v3362, %v3361
          %v3475 = vpack.c.b16 %v3364, %v3363
          %v3476 = vpack.c.b16 %v3366, %v3365
          %v3477 = vpack.c.b16 %v3368, %v3367
          %v3478 = vpack.c.b16 %v3370, %v3369
          %v3479 = vpack.c.b16 %v3372, %v3371
          %v3480 = vpack.c.b16 %v3374, %v3373
          %v3481 = vpack.c.b16 %v3376, %v3375
          %v3482 = vpack.c.b16 %v3378, %v3377
          %v3483 = vpack.c.b16 %v3380, %v3379
          %v3484 = vpack.c.b16 %v3382, %v3381
          %v3485 = vpack.c.b16 %v3384, %v3383
          %v3486 = vpack.c.b16 %v3386, %v3385
          %v3487 = vpack.c.b16 %v3388, %v3387
          %v3488 = vpack.c.b16 %v3390, %v3389
          %v3489 = vpack.c.b16 %v3392, %v3391
          %v3490 = vpack.c.b16 %v3394, %v3393
          %v3491 = vpack.c.b16 %v3396, %v3395
          %v3492 = vpack.c.b16 %v3398, %v3397
          %v3493 = vpack.c.b16 %v3400, %v3399
          %v3494 = vpack.c.b16 %v3402, %v3401
          %v3495 = vpack.c.b16 %v3404, %v3403
          %v3496 = vpack.c.b16 %v3406, %v3405
          %v3497 = vpack.c.b16 %v3408, %v3407
          %v3498 = vpack.c.b16 %v3410, %v3409
          %v3499 = vpack.c.b16 %v3412, %v3411
          %v3500 = vpack.c.b16 %v3414, %v3413
          %v3501 = vpack.c.b16 %v3416, %v3415
          %v3502 = vpack.c.b16 %v3418, %v3417
          %v3503 = vpack.c.b16 %v3420, %v3419
          %v3504 = vpack.c.b16 %v3422, %v3421
          %v3505 = vpack.c.b16 %v3424, %v3423
          %v3506 = vpack.c.b16 %v3426, %v3425
          %v3507 = vpack.c.b16 %v3428, %v3427
          %v3508 = vpack.c.b16 %v3430, %v3429
          %v3509 = vpack.c.b16 %v3432, %v3431
          %v3510 = vpack.c.b16 %v3434, %v3433
          %v3511 = vpack.c.b16 %v3436, %v3435
          %v3512 = vpack.c.b16 %v3438, %v3437
          %v3513 = vpack.c.b16 %v3440, %v3439
          %v3514 = vpack.c.b16 %v3442, %v3441
          %3587 = vmatprep.subr.bf16.mxu0 0
          %3588 = vmatpush1.bf16.msra.mxu0 %v3450
          %3589 = vmatprep.subr.bf16.mxu0 0
          %3590 = vmatpush1.bf16.msra.mxu0 %v3449
          %3591 = vmatprep.subr.bf16.mxu0 0
          %3592 = vmatpush1.bf16.msra.mxu0 %v3448
          %3593 = vmatprep.subr.bf16.mxu0 0
          %3594 = vmatpush1.bf16.msra.mxu0 %v3447
          %3595 = vmatprep.subr.bf16.mxu0 0
          %3596 = vmatpush1.bf16.msra.mxu0 %v3446
          %3597 = vmatprep.subr.bf16.mxu0 0
          %3598 = vmatpush1.bf16.msra.mxu0 %v3445
          %3599 = vmatprep.subr.bf16.mxu0 0
          %3600 = vmatpush1.bf16.msra.mxu0 %v3444
          %3601 = vmatprep.subr.bf16.mxu0 0
          %3602 = vmatpush1.bf16.msra.mxu0 %v3443
          %3603 = vmatprep.subr.bf16.mxu0 0
          %3604 = vmatpush2.bf16.msra.mxu0 %v3458
          %3605 = vmatprep.subr.bf16.mxu0 0
          %3606 = vmatpush2.bf16.msra.mxu0 %v3457
          %3607 = vmatprep.subr.bf16.mxu0 0
          %3608 = vmatpush2.bf16.msra.mxu0 %v3456
          %3609 = vmatprep.subr.bf16.mxu0 0
          %3610 = vmatpush2.bf16.msra.mxu0 %v3455
          %3611 = vmatprep.subr.bf16.mxu0 0
          %3612 = vmatpush2.bf16.msra.mxu0 %v3454
          %3613 = vmatprep.subr.bf16.mxu0 0
          %3614 = vmatpush2.bf16.msra.mxu0 %v3453
          %3615 = vmatprep.subr.bf16.mxu0 0
          %3616 = vmatpush2.bf16.msra.mxu0 %v3452
          %3617 = vmatprep.subr.bf16.mxu0 0
          %3618 = vmatpush2.bf16.msra.mxu0 %v3451
          %3619 = vmatprep.mubr.bf16.mxu0 %v2875
          %3620 = vmatmul.mubr.bf16.gmra.mxu0 %v2859
          %v3621 = vpop.f32.mrf.mxu0
          %v3622 = vadd.f32 0.0, %v3621
          %v3623 = vpop.f32.mrf.mxu0
          %v3624 = vpop.f32.mrf.mxu0
          %v3625 = vadd.f32 0.0, %v3624
          %v3626 = vpop.f32.mrf.mxu0
          %3627 = vmatprep.mubr.bf16.mxu0 %v2876
          %3628 = vmatmul.mubr.bf16.gmra.mxu0 %v2860
          %v3629 = vpop.f32.mrf.mxu0
          %v3630 = vadd.f32 0.0, %v3629
          %v3631 = vpop.f32.mrf.mxu0
          %v3632 = vpop.f32.mrf.mxu0
          %v3633 = vadd.f32 0.0, %v3632
          %v3634 = vpop.f32.mrf.mxu0
          %3635 = vmatprep.mubr.bf16.mxu0 %v2877
          %3636 = vmatmul.mubr.bf16.gmra.mxu0 %v2861
          %v3637 = vpop.f32.mrf.mxu0
          %v3638 = vadd.f32 0.0, %v3637
          %v3639 = vpop.f32.mrf.mxu0
          %v3640 = vpop.f32.mrf.mxu0
          %v3641 = vadd.f32 0.0, %v3640
          %v3642 = vpop.f32.mrf.mxu0
          %3643 = vmatprep.mubr.bf16.mxu0 %v2878
          %3644 = vmatmul.mubr.bf16.gmra.mxu0 %v2862
          %v3645 = vpop.f32.mrf.mxu0
          %v3646 = vadd.f32 0.0, %v3645
          %v3647 = vpop.f32.mrf.mxu0
          %v3648 = vpop.f32.mrf.mxu0
          %v3649 = vadd.f32 0.0, %v3648
          %v3650 = vpop.f32.mrf.mxu0
          %3651 = vdwg.mxu0
          %3652 = vmatprep.subr.bf16.mxu0 0
          %3653 = vmatpush1.bf16.msra.mxu0 %v3466
          %3654 = vmatprep.subr.bf16.mxu0 0
          %3655 = vmatpush1.bf16.msra.mxu0 %v3465
          %3656 = vmatprep.subr.bf16.mxu0 0
          %3657 = vmatpush1.bf16.msra.mxu0 %v3464
          %3658 = vmatprep.subr.bf16.mxu0 0
          %3659 = vmatpush1.bf16.msra.mxu0 %v3463
          %3660 = vmatprep.subr.bf16.mxu0 0
          %3661 = vmatpush1.bf16.msra.mxu0 %v3462
          %3662 = vmatprep.subr.bf16.mxu0 0
          %3663 = vmatpush1.bf16.msra.mxu0 %v3461
          %3664 = vmatprep.subr.bf16.mxu0 0
          %3665 = vmatpush1.bf16.msra.mxu0 %v3460
          %3666 = vmatprep.subr.bf16.mxu0 0
          %3667 = vmatpush1.bf16.msra.mxu0 %v3459
          %3668 = vmatprep.subr.bf16.mxu0 0
          %3669 = vmatpush2.bf16.msra.mxu0 %v3474
          %3670 = vmatprep.subr.bf16.mxu0 0
          %3671 = vmatpush2.bf16.msra.mxu0 %v3473
          %3672 = vmatprep.subr.bf16.mxu0 0
          %3673 = vmatpush2.bf16.msra.mxu0 %v3472
          %3674 = vmatprep.subr.bf16.mxu0 0
          %3675 = vmatpush2.bf16.msra.mxu0 %v3471
          %3676 = vmatprep.subr.bf16.mxu0 0
          %3677 = vmatpush2.bf16.msra.mxu0 %v3470
          %3678 = vmatprep.subr.bf16.mxu0 0
          %3679 = vmatpush2.bf16.msra.mxu0 %v3469
          %3680 = vmatprep.subr.bf16.mxu0 0
          %3681 = vmatpush2.bf16.msra.mxu0 %v3468
          %3682 = vmatprep.subr.bf16.mxu0 0
          %3683 = vmatpush2.bf16.msra.mxu0 %v3467
          %3684 = vmatprep.mubr.bf16.mxu0 %v2915
          %3685 = vmatmul.mubr.bf16.gmra.mxu0 %v2891
          %v3686 = vpop.f32.mrf.mxu0
          %v3687 = vadd.f32 %v3622, %v3686
          %v3688 = vpop.f32.mrf.mxu0
          %v3689 = vpop.f32.mrf.mxu0
          %v3690 = vadd.f32 %v3625, %v3689
          %v3691 = vpop.f32.mrf.mxu0
          %3692 = vmatprep.mubr.bf16.mxu0 %v2916
          %3693 = vmatmul.mubr.bf16.gmra.mxu0 %v2892
          %v3694 = vpop.f32.mrf.mxu0
          %v3695 = vadd.f32 %v3630, %v3694
          %v3696 = vpop.f32.mrf.mxu0
          %v3697 = vpop.f32.mrf.mxu0
          %v3698 = vadd.f32 %v3633, %v3697
          %v3699 = vpop.f32.mrf.mxu0
          %3700 = vmatprep.mubr.bf16.mxu0 %v2917
          %3701 = vmatmul.mubr.bf16.gmra.mxu0 %v2893
          %v3702 = vpop.f32.mrf.mxu0
          %v3703 = vadd.f32 %v3638, %v3702
          %v3704 = vpop.f32.mrf.mxu0
          %v3705 = vpop.f32.mrf.mxu0
          %v3706 = vadd.f32 %v3641, %v3705
          %v3707 = vpop.f32.mrf.mxu0
          %3708 = vmatprep.mubr.bf16.mxu0 %v2918
          %3709 = vmatmul.mubr.bf16.gmra.mxu0 %v2894
          %v3710 = vpop.f32.mrf.mxu0
          %v3711 = vadd.f32 %v3646, %v3710
          %v3712 = vpop.f32.mrf.mxu0
          %v3713 = vpop.f32.mrf.mxu0
          %v3714 = vadd.f32 %v3649, %v3713
          %v3715 = vpop.f32.mrf.mxu0
          %3716 = vdwg.mxu0
          %3717 = vmatprep.subr.bf16.mxu0 0
          %3718 = vmatpush1.bf16.msra.mxu0 %v3482
          %3719 = vmatprep.subr.bf16.mxu0 0
          %3720 = vmatpush1.bf16.msra.mxu0 %v3481
          %3721 = vmatprep.subr.bf16.mxu0 0
          %3722 = vmatpush1.bf16.msra.mxu0 %v3480
          %3723 = vmatprep.subr.bf16.mxu0 0
          %3724 = vmatpush1.bf16.msra.mxu0 %v3479
          %3725 = vmatprep.subr.bf16.mxu0 0
          %3726 = vmatpush1.bf16.msra.mxu0 %v3478
          %3727 = vmatprep.subr.bf16.mxu0 0
          %3728 = vmatpush1.bf16.msra.mxu0 %v3477
          %3729 = vmatprep.subr.bf16.mxu0 0
          %3730 = vmatpush1.bf16.msra.mxu0 %v3476
          %3731 = vmatprep.subr.bf16.mxu0 0
          %3732 = vmatpush1.bf16.msra.mxu0 %v3475
          %3733 = vmatprep.subr.bf16.mxu0 0
          %3734 = vmatpush2.bf16.msra.mxu0 %v3490
          %3735 = vmatprep.subr.bf16.mxu0 0
          %3736 = vmatpush2.bf16.msra.mxu0 %v3489
          %3737 = vmatprep.subr.bf16.mxu0 0
          %3738 = vmatpush2.bf16.msra.mxu0 %v3488
          %3739 = vmatprep.subr.bf16.mxu0 0
          %3740 = vmatpush2.bf16.msra.mxu0 %v3487
          %3741 = vmatprep.subr.bf16.mxu0 0
          %3742 = vmatpush2.bf16.msra.mxu0 %v3486
          %3743 = vmatprep.subr.bf16.mxu0 0
          %3744 = vmatpush2.bf16.msra.mxu0 %v3485
          %3745 = vmatprep.subr.bf16.mxu0 0
          %3746 = vmatpush2.bf16.msra.mxu0 %v3484
          %3747 = vmatprep.subr.bf16.mxu0 0
          %3748 = vmatpush2.bf16.msra.mxu0 %v3483
          %3749 = vmatprep.mubr.bf16.mxu0 %v2947
          %3750 = vmatmul.mubr.bf16.gmra.mxu0 %v2931
          %v3751 = vpop.f32.mrf.mxu0
          %v3752 = vadd.f32 %v3687, %v3751
          %v3753 = vpop.f32.mrf.mxu0
          %v3754 = vpop.f32.mrf.mxu0
          %v3755 = vadd.f32 %v3690, %v3754
          %v3756 = vpop.f32.mrf.mxu0
          %3757 = vmatprep.mubr.bf16.mxu0 %v2948
          %3758 = vmatmul.mubr.bf16.gmra.mxu0 %v2932
          %v3759 = vpop.f32.mrf.mxu0
          %v3760 = vadd.f32 %v3695, %v3759
          %v3761 = vpop.f32.mrf.mxu0
          %v3762 = vpop.f32.mrf.mxu0
          %v3763 = vadd.f32 %v3698, %v3762
          %v3764 = vpop.f32.mrf.mxu0
          %3765 = vmatprep.mubr.bf16.mxu0 %v2949
          %3766 = vmatmul.mubr.bf16.gmra.mxu0 %v2933
          %v3767 = vpop.f32.mrf.mxu0
          %v3768 = vadd.f32 %v3703, %v3767
          %v3769 = vpop.f32.mrf.mxu0
          %v3770 = vpop.f32.mrf.mxu0
          %v3771 = vadd.f32 %v3706, %v3770
          %v3772 = vpop.f32.mrf.mxu0
          %3773 = vmatprep.mubr.bf16.mxu0 %v2950
          %3774 = vmatmul.mubr.bf16.gmra.mxu0 %v2934
          %v3775 = vpop.f32.mrf.mxu0
          %v3776 = vadd.f32 %v3711, %v3775
          %v3777 = vpop.f32.mrf.mxu0
          %v3778 = vpop.f32.mrf.mxu0
          %v3779 = vadd.f32 %v3714, %v3778
          %v3780 = vpop.f32.mrf.mxu0
          %3781 = vdwg.mxu0
          %3782 = vmatprep.subr.bf16.mxu0 0
          %3783 = vmatpush1.bf16.msra.mxu0 %v3498
          %3784 = vmatprep.subr.bf16.mxu0 0
          %3785 = vmatpush1.bf16.msra.mxu0 %v3497
          %3786 = vmatprep.subr.bf16.mxu0 0
          %3787 = vmatpush1.bf16.msra.mxu0 %v3496
          %3788 = vmatprep.subr.bf16.mxu0 0
          %3789 = vmatpush1.bf16.msra.mxu0 %v3495
          %3790 = vmatprep.subr.bf16.mxu0 0
          %3791 = vmatpush1.bf16.msra.mxu0 %v3494
          %3792 = vmatprep.subr.bf16.mxu0 0
          %3793 = vmatpush1.bf16.msra.mxu0 %v3493
          %3794 = vmatprep.subr.bf16.mxu0 0
          %3795 = vmatpush1.bf16.msra.mxu0 %v3492
          %3796 = vmatprep.subr.bf16.mxu0 0
          %3797 = vmatpush1.bf16.msra.mxu0 %v3491
          %3798 = vmatprep.subr.bf16.mxu0 0
          %3799 = vmatpush2.bf16.msra.mxu0 %v3506
          %3800 = vmatprep.subr.bf16.mxu0 0
          %3801 = vmatpush2.bf16.msra.mxu0 %v3505
          %3802 = vmatprep.subr.bf16.mxu0 0
          %3803 = vmatpush2.bf16.msra.mxu0 %v3504
          %3804 = vmatprep.subr.bf16.mxu0 0
          %3805 = vmatpush2.bf16.msra.mxu0 %v3503
          %3806 = vmatprep.subr.bf16.mxu0 0
          %3807 = vmatpush2.bf16.msra.mxu0 %v3502
          %3808 = vmatprep.subr.bf16.mxu0 0
          %3809 = vmatpush2.bf16.msra.mxu0 %v3501
          %3810 = vmatprep.subr.bf16.mxu0 0
          %3811 = vmatpush2.bf16.msra.mxu0 %v3500
          %3812 = vmatprep.subr.bf16.mxu0 0
          %3813 = vmatpush2.bf16.msra.mxu0 %v3499
          %3814 = vmatprep.mubr.bf16.mxu0 %v2987
          %3815 = vmatmul.mubr.bf16.gmra.mxu0 %v2971
          %v3816 = vpop.f32.mrf.mxu0
          %v3817 = vadd.f32 %v3752, %v3816
          %v3818 = vpop.f32.mrf.mxu0
          %v3819 = vpop.f32.mrf.mxu0
          %v3820 = vadd.f32 %v3755, %v3819
          %v3821 = vpop.f32.mrf.mxu0
          %3822 = vmatprep.mubr.bf16.mxu0 %v2988
          %3823 = vmatmul.mubr.bf16.gmra.mxu0 %v2972
          %v3824 = vpop.f32.mrf.mxu0
          %v3825 = vadd.f32 %v3760, %v3824
          %v3826 = vpop.f32.mrf.mxu0
          %v3827 = vpop.f32.mrf.mxu0
          %v3828 = vadd.f32 %v3763, %v3827
          %v3829 = vpop.f32.mrf.mxu0
          %3830 = vmatprep.mubr.bf16.mxu0 %v2989
          %3831 = vmatmul.mubr.bf16.gmra.mxu0 %v2973
          %v3832 = vpop.f32.mrf.mxu0
          %v3833 = vadd.f32 %v3768, %v3832
          %v3834 = vpop.f32.mrf.mxu0
          %v3835 = vpop.f32.mrf.mxu0
          %v3836 = vadd.f32 %v3771, %v3835
          %v3837 = vpop.f32.mrf.mxu0
          %3838 = vmatprep.mubr.bf16.mxu0 %v2990
          %3839 = vmatmul.mubr.bf16.gmra.mxu0 %v2974
          %v3840 = vpop.f32.mrf.mxu0
          %v3841 = vadd.f32 %v3776, %v3840
          %v3842 = vpop.f32.mrf.mxu0
          %v3843 = vpop.f32.mrf.mxu0
          %v3844 = vadd.f32 %v3779, %v3843
          %v3845 = vpop.f32.mrf.mxu0
          %3846 = vdwg.mxu0
          %3847 = vmatprep.subr.bf16.mxu0 0
          %3848 = vmatpush1.bf16.msra.mxu0 %v3514
          %3849 = vmatprep.subr.bf16.mxu0 0
          %3850 = vmatpush1.bf16.msra.mxu0 %v3513
          %3851 = vmatprep.subr.bf16.mxu0 0
          %3852 = vmatpush1.bf16.msra.mxu0 %v3512
          %3853 = vmatprep.subr.bf16.mxu0 0
          %3854 = vmatpush1.bf16.msra.mxu0 %v3511
          %3855 = vmatprep.subr.bf16.mxu0 0
          %3856 = vmatpush1.bf16.msra.mxu0 %v3510
          %3857 = vmatprep.subr.bf16.mxu0 0
          %3858 = vmatpush1.bf16.msra.mxu0 %v3509
          %3859 = vmatprep.subr.bf16.mxu0 0
          %3860 = vmatpush1.bf16.msra.mxu0 %v3508
          %3861 = vmatprep.subr.bf16.mxu0 0
          %3862 = vmatpush1.bf16.msra.mxu0 %v3507
          %3863 = vmatprep.subr.bf16.mxu0 0
          %3864 = vmatpush2.bf16.msra.mxu0 0
          %3865 = vmatprep.subr.bf16.mxu0 0
          %3866 = vmatpush2.bf16.msra.mxu0 0
          %3867 = vmatprep.subr.bf16.mxu0 0
          %3868 = vmatpush2.bf16.msra.mxu0 0
          %3869 = vmatprep.subr.bf16.mxu0 0
          %3870 = vmatpush2.bf16.msra.mxu0 0
          %3871 = vmatprep.subr.bf16.mxu0 0
          %3872 = vmatpush2.bf16.msra.mxu0 0
          %3873 = vmatprep.subr.bf16.mxu0 0
          %3874 = vmatpush2.bf16.msra.mxu0 0
          %3875 = vmatprep.subr.bf16.mxu0 0
          %3876 = vmatpush2.bf16.msra.mxu0 0
          %3877 = vmatprep.subr.bf16.mxu0 0
          %3878 = vmatpush2.bf16.msra.mxu0 0
          %3879 = vmatprep.mubr.bf16.mxu0 0
          %3880 = vmatmul.mubr.bf16.gmra.mxu0 %v3003
          %v3881 = vpop.f32.mrf.mxu0
          %v3882 = vadd.f32 %v3817, %v3881
          %v3883 = vpop.f32.mrf.mxu0
          %v3884 = vpop.f32.mrf.mxu0
          %v3885 = vadd.f32 %v3820, %v3884
          %v3886 = vpop.f32.mrf.mxu0
          %3887 = vmatprep.mubr.bf16.mxu0 0
          %3888 = vmatmul.mubr.bf16.gmra.mxu0 %v3004
          %v3889 = vpop.f32.mrf.mxu0
          %v3890 = vadd.f32 %v3825, %v3889
          %v3891 = vpop.f32.mrf.mxu0
          %v3892 = vpop.f32.mrf.mxu0
          %v3893 = vadd.f32 %v3828, %v3892
          %v3894 = vpop.f32.mrf.mxu0
          %3895 = vmatprep.mubr.bf16.mxu0 0
          %3896 = vmatmul.mubr.bf16.gmra.mxu0 %v3005
          %v3897 = vpop.f32.mrf.mxu0
          %v3898 = vadd.f32 %v3833, %v3897
          %v3899 = vpop.f32.mrf.mxu0
          %v3900 = vpop.f32.mrf.mxu0
          %v3901 = vadd.f32 %v3836, %v3900
          %v3902 = vpop.f32.mrf.mxu0
          %3903 = vmatprep.mubr.bf16.mxu0 0
          %3904 = vmatmul.mubr.bf16.gmra.mxu0 %v3006
          %v3905 = vpop.f32.mrf.mxu0
          %v3906 = vadd.f32 %v3841, %v3905
          %v3907 = vpop.f32.mrf.mxu0
          %v3908 = vpop.f32.mrf.mxu0
          %v3909 = vadd.f32 %v3844, %v3908
          %v3910 = vpop.f32.mrf.mxu0
          %3911 = vdwg.mxu0
          // Predicated region
          $region83: #{mutable_block_forward.1} parent=72 // pred_check
            %p3912 = pneg %p2014
          $region84: #{mutable_block_forward.1} parent=72 // pred_check_branch
            %3914 = sbr.rel (%p3912) target = $region86
          $region85: #{mutable_block_forward.1} parent=72 // pred_region
            %v3915 = vadd.f32 %v3882, %v3885
            %v3916 = vadd.f32 %v3915, %v3890
            %v3917 = vadd.f32 %v3916, %v3893
            %v3918 = vadd.f32 %v3917, %v3898
            %v3919 = vadd.f32 %v3918, %v3901
            %v3920 = vadd.f32 %v3919, %v3906
            %v3921 = vadd.f32 %v3920, %v3909
            %v3922 = vrot.slane %v3921, 4
            %v3923 = vadd.f32 %v3921, %v3922
            %v3924 = vrot.slane %v3923, 2
            %v3925 = vadd.f32 %v3923, %v3924
            %v3926 = vrot.slane %v3925, 1
            %v3927 = vadd.f32 %v3925, %v3926
            %v3928 = vrcp.pop 64.0
            %v3929 = vmul.f32 %v3927, %v3928
            %3930 = vst [vmem:[#allocation8] sm:$0x1] %v3929
          $region86: #{mutable_block_forward.1} parent=72 // pred_fallthru
            _
          %v3931 = vld [vmem:[#allocation8] sm:$0x1]
          %v3932 = vlaneseq
          %v3933 = vshrl.u32 %v3932, 7
          %v3934 = vsub.s32 0, %v3933
          %v3935 = vrot.slane %v3931, %v3934
          %v3936 = vsub.f32 %v3882, %v3935
          %v3937 = vsub.f32 %v3885, %v3935
          %v3938 = vsub.f32 %v3890, %v3935
          %v3939 = vsub.f32 %v3893, %v3935
          %v3940 = vsub.f32 %v3898, %v3935
          %v3941 = vsub.f32 %v3901, %v3935
          %v3942 = vsub.f32 %v3906, %v3935
          %v3943 = vsub.f32 %v3909, %v3935
          %v3944 = vld [vmem:[#allocation8 + $0x1] sm:$0x1]
          %v3945 = vadd.f32 %v3936, %v3937
          %v3946 = vadd.f32 %v3945, %v3938
          %v3947 = vadd.f32 %v3946, %v3939
          %v3948 = vadd.f32 %v3947, %v3940
          %v3949 = vadd.f32 %v3948, %v3941
          %v3950 = vadd.f32 %v3949, %v3942
          %v3951 = vadd.f32 %v3950, %v3943
          %v3952 = vrot.slane %v3951, 4
          %v3953 = vadd.f32 %v3951, %v3952
          %v3954 = vrot.slane %v3953, 2
          %v3955 = vadd.f32 %v3953, %v3954
          %v3956 = vrot.slane %v3955, 1
          %v3957 = vadd.f32 %v3955, %v3956
          %v3958 = vadd.f32 %v3944, %v3957
          %3959 = vst [vmem:[#allocation8 + $0x1] sm:$0x1] %v3958
          %v3960 = vld [vmem:[#allocation8 + $0x2] sm:$0x1]
          %v3961 = vmul.f32 %v3936, %v3936
          %v3962 = vmul.f32 %v3937, %v3937
          %v3963 = vmul.f32 %v3938, %v3938
          %v3964 = vmul.f32 %v3939, %v3939
          %v3965 = vmul.f32 %v3940, %v3940
          %v3966 = vmul.f32 %v3941, %v3941
          %v3967 = vmul.f32 %v3942, %v3942
          %v3968 = vmul.f32 %v3943, %v3943
          %v3969 = vadd.f32 %v3961, %v3962
          %v3970 = vadd.f32 %v3969, %v3963
          %v3971 = vadd.f32 %v3970, %v3964
          %v3972 = vadd.f32 %v3971, %v3965
          %v3973 = vadd.f32 %v3972, %v3966
          %v3974 = vadd.f32 %v3973, %v3967
          %v3975 = vadd.f32 %v3974, %v3968
          %v3976 = vrot.slane %v3975, 4
          %v3977 = vadd.f32 %v3975, %v3976
          %v3978 = vrot.slane %v3977, 2
          %v3979 = vadd.f32 %v3977, %v3978
          %v3980 = vrot.slane %v3979, 1
          %v3981 = vadd.f32 %v3979, %v3980
          %v3982 = vadd.f32 %v3960, %v3981
          %3983 = vst [vmem:[#allocation8 + $0x2] sm:$0x1] %v3982
          %v3984 = vpack.c.bf16 %v3885, %v3882
          %v3985 = vpack.c.bf16 %v3893, %v3890
          %v3986 = vpack.c.bf16 %v3901, %v3898
          %v3987 = vpack.c.bf16 %v3909, %v3906
          %v3992 = vunpack.c.l.b16 %v3984
          %v3993 = vunpack.c.h.b16 %v3984
          %v3994 = vunpack.c.l.b16 %v3985
          %v3995 = vunpack.c.h.b16 %v3985
          %v3996 = vunpack.c.l.b16 %v3986
          %v3997 = vunpack.c.h.b16 %v3986
          %v3998 = vunpack.c.l.b16 %v3987
          %v3999 = vunpack.c.h.b16 %v3987
          %v4000 = vpack.c.b16 %v3992, %v3992
          %v4001 = vpack.c.b16 %v3993, %v3993
          %v4002 = vpack.c.b16 %v3994, %v3994
          %v4003 = vpack.c.b16 %v3995, %v3995
          %v4004 = vpack.c.b16 %v3996, %v3996
          %v4005 = vpack.c.b16 %v3997, %v3997
          %v4006 = vpack.c.b16 %v3998, %v3998
          %v4007 = vpack.c.b16 %v3999, %v3999
          %4016 = vst [vmem:[#allocation4] sm:$0xf] %v4000
          %4017 = vst [vmem:[#allocation4 + $0x4] sm:$0xf] %v4001
          %4018 = vst [vmem:[#allocation4 + $0x8] sm:$0xf] %v4002
          %4019 = vst [vmem:[#allocation4 + $0xc] sm:$0xf] %v4003
          %4020 = vst [vmem:[#allocation4 + $0x10] sm:$0xf] %v4004
          %4021 = vst [vmem:[#allocation4 + $0x14] sm:$0xf] %v4005
          %4022 = vst [vmem:[#allocation4 + $0x18] sm:$0xf] %v4006
          %4023 = vst [vmem:[#allocation4 + $0x1c] sm:$0xf] %v4007
          $region87: #{mutable_block_forward.1} parent=72
            #allocation22 [shape = 's32[1]{0}', space=sflag, size = 0x4, scoped, tag = 'scoped memory for mutable_block_forward.1']
            %s4024 = smul.u32 %s27, 8
            %s4025 = smul.addr %s4024, 64
            %s4026 = scalar_lea.hbm %s9, %s4025
            // Predicated region
            $region88: #{mutable_block_forward.1} parent=87 // pred_check
              _
            $region89: #{mutable_block_forward.1} parent=87 // pred_check_branch
              %4028 = sbr.rel target = $region91
            $region90: #{mutable_block_forward.1} parent=87 // pred_region
              %4029 = sst [smem:[#allocation17]] [#allocation24]
              %4030 = sst [smem:[#allocation18]] [#allocation23]
            $region91: #{mutable_block_forward.1} parent=87 // pred_fallthru
              _
            %4032 = shalt.err (0)
            %s4034 = sshll.u32 [#allocation4], 4
            %s4035 = int_to_ptr.vmem [resolvable:$true] %s4034
            %4037 = dma.vmem_to_hbm [thread:$0]  %s4035, 512, %s4026, [#allocation22]
            %s4038 = smul.u32 4, 8
            %s4039 = smul.u32 %s4038, 1
            %s4040 = sshll.u32 %s4039, 4
            %4041 = dma.done [#allocation22], %s4040
        $region73: #{mutable_block_forward.1} parent=47 // pred_fallthru
          _
        %p4042 = scmp.eq.s32.totalorder %s26, 2
        // Predicated region
        $region92: #{mutable_block_forward.1} parent=47 // pred_check
          %p4043 = pneg %p4042
        $region93: #{mutable_block_forward.1} parent=47 // pred_check_branch
          %4045 = sbr.rel (%p4043) target = $region95
        $region94: #{mutable_block_forward.1} parent=47 // pred_region
          %p4046 = scmp.eq.s32.totalorder %s27, 0
          // Predicated region
          $region96: #{mutable_block_forward.1} parent=94 // pred_check
            %p4047 = pneg %p4046
          $region97: #{mutable_block_forward.1} parent=94 // pred_check_branch
            %4049 = sbr.rel (%p4047) target = $region99
          $region98: #{mutable_block_forward.1} parent=94 // pred_region
            %v4050 = vld [vmem:[#allocation8] sm:$0x1]
            %v4051 = vld [vmem:[#allocation8 + $0x1] sm:$0x1]
            %v4052 = vmul.f32 %v4051, 0.0078125
            %v4053 = vadd.f32 %v4050, %v4052
            %v4054 = vld [vmem:[#allocation8 + $0x2] sm:$0x1]
            %v4055 = vmul.f32 %v4054, 0.0078125
            %v4056 = vmul.f32 %v4052, %v4052
            %v4057 = vsub.f32 %v4055, %v4056
            %v4058 = vmax.f32 %v4057, 0.0
            %v4059 = vld [vmem:[%s5] sm:$0x1]
            %v4060 = vadd.f32 %v4058, 1e-05
            %v4061 = vrsqrt.pop %v4060
            %v4062 = vmul.f32 %v4059, %v4061
            %4063 = vst [vmem:[#allocation9] sm:$0x1] %v4062
            %v4064 = vld [vmem:[%s6] sm:$0x1]
            %v4065 = vmul.f32 %v4062, %v4053
            %v4066 = vsub.f32 %v4064, %v4065
            %4067 = vst [vmem:[#allocation9 + $0x1] sm:$0x1] %v4066
          $region99: #{mutable_block_forward.1} parent=94 // pred_fallthru
            _
          $region100: #{mutable_block_forward.1} parent=94
            #allocation25 [shape = 's32[1]{0}', space=sflag, size = 0x4, scoped, tag = 'scoped memory for mutable_block_forward.1']
            %s4068 = smul.u32 %s27, 8
            %s4069 = smul.addr %s4068, 64
            %s4070 = scalar_lea.hbm %s9, %s4069
            // Predicated region
            $region101: #{mutable_block_forward.1} parent=100 // pred_check
              _
            $region102: #{mutable_block_forward.1} parent=100 // pred_check_branch
              %4072 = sbr.rel target = $region104
            $region103: #{mutable_block_forward.1} parent=100 // pred_region
              %4073 = sst [smem:[#allocation17]] [#allocation27]
              %4074 = sst [smem:[#allocation18]] [#allocation26]
            $region104: #{mutable_block_forward.1} parent=100 // pred_fallthru
              _
            %4076 = shalt.err (0)
            %s4078 = sshll.u32 [#allocation3], 4
            %s4079 = int_to_ptr.vmem [resolvable:$true] %s4078
            %4081 = dma.hbm_to_vmem [thread:$0]  %s4070, 512, %s4079, [#allocation25]
            %s4082 = smul.u32 4, 8
            %s4083 = smul.u32 %s4082, 1
            %s4084 = sshll.u32 %s4083, 4
            %4085 = dma.done [#allocation25], %s4084
          %v4086 = vld [vmem:[#allocation3] sm:$0xf]
          %v4087 = vld [vmem:[#allocation3 + $0x4] sm:$0xf]
          %v4088 = vld [vmem:[#allocation3 + $0x8] sm:$0xf]
          %v4089 = vld [vmem:[#allocation3 + $0xc] sm:$0xf]
          %v4090 = vld [vmem:[#allocation3 + $0x10] sm:$0xf]
          %v4091 = vld [vmem:[#allocation3 + $0x14] sm:$0xf]
          %v4092 = vld [vmem:[#allocation3 + $0x18] sm:$0xf]
          %v4093 = vld [vmem:[#allocation3 + $0x1c] sm:$0xf]
          %v4094 = vunpack.c.l.bf16 %v4086
          %v4095 = vunpack.c.l.bf16 %v4087
          %v4096 = vunpack.c.l.bf16 %v4088
          %v4097 = vunpack.c.l.bf16 %v4089
          %v4098 = vunpack.c.l.bf16 %v4090
          %v4099 = vunpack.c.l.bf16 %v4091
          %v4100 = vunpack.c.l.bf16 %v4092
          %v4101 = vunpack.c.l.bf16 %v4093
          %v4102 = vld [vmem:[#allocation9] sm:$0x1]
          %v4103 = vlaneseq
          %v4104 = vshrl.u32 %v4103, 7
          %v4105 = vsub.s32 0, %v4104
          %v4106 = vrot.slane %v4102, %v4105
          %v4107 = vmul.f32 %v4094, %v4106
          %v4108 = vmul.f32 %v4095, %v4106
          %v4109 = vmul.f32 %v4096, %v4106
          %v4110 = vmul.f32 %v4097, %v4106
          %v4111 = vmul.f32 %v4098, %v4106
          %v4112 = vmul.f32 %v4099, %v4106
          %v4113 = vmul.f32 %v4100, %v4106
          %v4114 = vmul.f32 %v4101, %v4106
          %v4115 = vld [vmem:[#allocation9 + $0x1] sm:$0x1]
          %v4116 = vlaneseq
          %v4117 = vshrl.u32 %v4116, 7
          %v4118 = vsub.s32 0, %v4117
          %v4119 = vrot.slane %v4115, %v4118
          %v4120 = vadd.f32 %v4107, %v4119
          %v4121 = vadd.f32 %v4108, %v4119
          %v4122 = vadd.f32 %v4109, %v4119
          %v4123 = vadd.f32 %v4110, %v4119
          %v4124 = vadd.f32 %v4111, %v4119
          %v4125 = vadd.f32 %v4112, %v4119
          %v4126 = vadd.f32 %v4113, %v4119
          %v4127 = vadd.f32 %v4114, %v4119
          %s4128 = scalar_lea.vmem %s241, 8
          %v4129 = vld [vmem:[%s4128] sm:$0xf]
          %v4130 = vld [vmem:[%s4128 + $0x4] sm:$0x1]
          %v4131 = vld [vmem:[%s4128 + $0x8] sm:$0xf]
          %v4132 = vld [vmem:[%s4128 + $0xc] sm:$0x1]
          %v4133 = vld [vmem:[%s4128 + $0x10] sm:$0xf]
          %v4134 = vld [vmem:[%s4128 + $0x14] sm:$0x1]
          %v4135 = vld [vmem:[%s4128 + $0x18] sm:$0xf]
          %v4136 = vld [vmem:[%s4128 + $0x1c] sm:$0x1]
          %v4137 = vld [vmem:[%s4128 + $0x20] sm:$0xf]
          %v4138 = vld [vmem:[%s4128 + $0x24] sm:$0x1]
          %v4139 = vld [vmem:[%s4128 + $0x28] sm:$0xf]
          %v4140 = vld [vmem:[%s4128 + $0x2c] sm:$0x1]
          %v4141 = vld [vmem:[%s4128 + $0x30] sm:$0xf]
          %v4142 = vld [vmem:[%s4128 + $0x34] sm:$0x1]
          %v4143 = vld [vmem:[%s4128 + $0x38] sm:$0xf]
          %v4144 = vld [vmem:[%s4128 + $0x3c] sm:$0x1]
          %vm4145 = vsmask.f32 3328
          %vm4146 = vsmask.f32 7440
          %vm4147 = vmor %vm4145, %vm4146
          %v4149 = vshrl.u32 %v4129, 16
          %v4151 = vrot.slane %v4149, 4
          %v4152 = vshll.u32 %v4129, 16
          %v4154 = vrot.slane %v4152, 5
          %v4155 = vor.u32 %v4151, %v4154
          %v4156 = vrot.slane %v4155, 4
          %v4158 = vshll.u32 %v4130, 16
          %v4160 = vrot.slane %v4158, 5
          %v4161 = vsel %vm4147, %v4156, %v4160
          %v4163 = vshrl.u32 %v4131, 16
          %v4165 = vrot.slane %v4163, 4
          %v4166 = vshll.u32 %v4131, 16
          %v4168 = vrot.slane %v4166, 5
          %v4169 = vor.u32 %v4165, %v4168
          %v4170 = vrot.slane %v4169, 4
          %v4172 = vshll.u32 %v4132, 16
          %v4174 = vrot.slane %v4172, 5
          %v4175 = vsel %vm4147, %v4170, %v4174
          %v4177 = vshrl.u32 %v4133, 16
          %v4179 = vrot.slane %v4177, 4
          %v4180 = vshll.u32 %v4133, 16
          %v4182 = vrot.slane %v4180, 5
          %v4183 = vor.u32 %v4179, %v4182
          %v4184 = vrot.slane %v4183, 4
          %v4186 = vshll.u32 %v4134, 16
          %v4188 = vrot.slane %v4186, 5
          %v4189 = vsel %vm4147, %v4184, %v4188
          %v4191 = vshrl.u32 %v4135, 16
          %v4193 = vrot.slane %v4191, 4
          %v4194 = vshll.u32 %v4135, 16
          %v4196 = vrot.slane %v4194, 5
          %v4197 = vor.u32 %v4193, %v4196
          %v4198 = vrot.slane %v4197, 4
          %v4200 = vshll.u32 %v4136, 16
          %v4202 = vrot.slane %v4200, 5
          %v4203 = vsel %vm4147, %v4198, %v4202
          %v4205 = vshrl.u32 %v4137, 16
          %v4207 = vrot.slane %v4205, 4
          %v4208 = vshll.u32 %v4137, 16
          %v4210 = vrot.slane %v4208, 5
          %v4211 = vor.u32 %v4207, %v4210
          %v4212 = vrot.slane %v4211, 4
          %v4214 = vshll.u32 %v4138, 16
          %v4216 = vrot.slane %v4214, 5
          %v4217 = vsel %vm4147, %v4212, %v4216
          %v4219 = vshrl.u32 %v4139, 16
          %v4221 = vrot.slane %v4219, 4
          %v4222 = vshll.u32 %v4139, 16
          %v4224 = vrot.slane %v4222, 5
          %v4225 = vor.u32 %v4221, %v4224
          %v4226 = vrot.slane %v4225, 4
          %v4228 = vshll.u32 %v4140, 16
          %v4230 = vrot.slane %v4228, 5
          %v4231 = vsel %vm4147, %v4226, %v4230
          %v4233 = vshrl.u32 %v4141, 16
          %v4235 = vrot.slane %v4233, 4
          %v4236 = vshll.u32 %v4141, 16
          %v4238 = vrot.slane %v4236, 5
          %v4239 = vor.u32 %v4235, %v4238
          %v4240 = vrot.slane %v4239, 4
          %v4242 = vshll.u32 %v4142, 16
          %v4244 = vrot.slane %v4242, 5
          %v4245 = vsel %vm4147, %v4240, %v4244
          %v4247 = vshrl.u32 %v4143, 16
          %v4249 = vrot.slane %v4247, 4
          %v4250 = vshll.u32 %v4143, 16
          %v4252 = vrot.slane %v4250, 5
          %v4253 = vor.u32 %v4249, %v4252
          %v4254 = vrot.slane %v4253, 4
          %v4256 = vshll.u32 %v4144, 16
          %v4258 = vrot.slane %v4256, 5
          %v4259 = vsel %vm4147, %v4254, %v4258
          %v4268 = vunpack.c.l.bf16 %v4161
          %v4269 = vunpack.c.l.bf16 %v4175
          %v4270 = vunpack.c.l.bf16 %v4189
          %v4271 = vunpack.c.l.bf16 %v4203
          %v4272 = vunpack.c.l.bf16 %v4217
          %v4273 = vunpack.c.l.bf16 %v4231
          %v4274 = vunpack.c.l.bf16 %v4245
          %v4275 = vunpack.c.l.bf16 %v4259
          %v4276 = vadd.f32 %v4120, %v4268
          %v4277 = vadd.f32 %v4121, %v4269
          %v4278 = vadd.f32 %v4122, %v4270
          %v4279 = vadd.f32 %v4123, %v4271
          %v4280 = vadd.f32 %v4124, %v4272
          %v4281 = vadd.f32 %v4125, %v4273
          %v4282 = vadd.f32 %v4126, %v4274
          %v4283 = vadd.f32 %v4127, %v4275
          %v4284 = vmax.f32 %v4276, 0.0
          %v4285 = vmax.f32 %v4277, 0.0
          %v4286 = vmax.f32 %v4278, 0.0
          %v4287 = vmax.f32 %v4279, 0.0
          %v4288 = vmax.f32 %v4280, 0.0
          %v4289 = vmax.f32 %v4281, 0.0
          %v4290 = vmax.f32 %v4282, 0.0
          %v4291 = vmax.f32 %v4283, 0.0
          %v4292 = vpack.c.bf16 %v4285, %v4284
          %v4293 = vpack.c.bf16 %v4287, %v4286
          %v4294 = vpack.c.bf16 %v4289, %v4288
          %v4295 = vpack.c.bf16 %v4291, %v4290
          %v4300 = vunpack.c.l.b16 %v4292
          %v4301 = vunpack.c.h.b16 %v4292
          %v4302 = vunpack.c.l.b16 %v4293
          %v4303 = vunpack.c.h.b16 %v4293
          %v4304 = vunpack.c.l.b16 %v4294
          %v4305 = vunpack.c.h.b16 %v4294
          %v4306 = vunpack.c.l.b16 %v4295
          %v4307 = vunpack.c.h.b16 %v4295
          %v4308 = vpack.c.b16 %v4300, %v4300
          %v4309 = vpack.c.b16 %v4301, %v4301
          %v4310 = vpack.c.b16 %v4302, %v4302
          %v4311 = vpack.c.b16 %v4303, %v4303
          %v4312 = vpack.c.b16 %v4304, %v4304
          %v4313 = vpack.c.b16 %v4305, %v4305
          %v4314 = vpack.c.b16 %v4306, %v4306
          %v4315 = vpack.c.b16 %v4307, %v4307
          %4324 = vst [vmem:[#allocation5] sm:$0xf] %v4308
          %4325 = vst [vmem:[#allocation5 + $0x4] sm:$0xf] %v4309
          %4326 = vst [vmem:[#allocation5 + $0x8] sm:$0xf] %v4310
          %4327 = vst [vmem:[#allocation5 + $0xc] sm:$0xf] %v4311
          %4328 = vst [vmem:[#allocation5 + $0x10] sm:$0xf] %v4312
          %4329 = vst [vmem:[#allocation5 + $0x14] sm:$0xf] %v4313
          %4330 = vst [vmem:[#allocation5 + $0x18] sm:$0xf] %v4314
          %4331 = vst [vmem:[#allocation5 + $0x1c] sm:$0xf] %v4315
          $region105: #{mutable_block_forward.1} parent=94
            #allocation28 [shape = 's32[1]{0}', space=sflag, size = 0x4, scoped, tag = 'scoped memory for mutable_block_forward.1']
            %s4332 = smul.u32 %s27, 8
            %s4333 = smul.addr %s4332, 4
            %s4334 = scalar_lea.vmem %s7, %s4333
            %p4336 = scmp.lt.u32.totalorder 32, 8
            %p4337 = pneg %p4336
            // Predicated region
            $region106: #{mutable_block_forward.1} parent=105 // pred_check
              _
            $region107: #{mutable_block_forward.1} parent=105 // pred_check_branch
              %4339 = sbr.rel (%p4336) target = $region109
            $region108: #{mutable_block_forward.1} parent=105 // pred_region
              %s4355 = sand.u32 32, 7
              %p4356 = scmp.eq.s32.totalorder %s4355, 0
              // Predicated region
              $region121: #{mutable_block_forward.1} parent=108 // pred_check
                %p4357 = pneg %p4356
              $region122: #{mutable_block_forward.1} parent=108 // pred_check_branch
                %4359 = sbr.rel (%p4357) target = $region124
              $region123: #{mutable_block_forward.1} parent=108 // pred_region
                loop: start=0, step=1, limit=1
                $region125: #{mutable_block_forward.1} parent=123 // loop_pre_header
                  _
                $region126: #{mutable_block_forward.1} parent=123 // loop_header
                  %s4361 = sphi 0, %s4365
                  %p4362 = scmp.ge.s32.totalorder %s4361, 1
                  %s4366 = sphi [#allocation5], [#allocation5]
                  %s4367 = sphi %s4334, %s4334
                $region127: #{mutable_block_forward.1} parent=123 // loop_header_branch
                  %4364 = sbr.rel (%p4362) target = $region131
                $region128: #{mutable_block_forward.1} parent=123 // loop_body
                  %v4368 = vld [vmem:[%s4366] sm:$0xff]
                  %4369 = vst [vmem:[%s4367] sm:$0xff] %v4368
                  %v4370 = vld [vmem:[%s4366 + $0x8] sm:$0xff]
                  %4371 = vst [vmem:[%s4367 + $0x8] sm:$0xff] %v4370
                  %v4372 = vld [vmem:[%s4366 + $0x10] sm:$0xff]
                  %4373 = vst [vmem:[%s4367 + $0x10] sm:$0xff] %v4372
                  %v4374 = vld [vmem:[%s4366 + $0x18] sm:$0xff]
                  %4375 = vst [vmem:[%s4367 + $0x18] sm:$0xff] %v4374
                $region129: #{mutable_block_forward.1} parent=123 // loop_footer
                  %s4365 = sadd.s32 1, %s4361
                $region130: #{mutable_block_forward.1} parent=123 // loop_footer_branch
                  %4360 = sbr.rel target = $region126
                $region131: #{mutable_block_forward.1} parent=123 // loop_exit
                  _
              $region124: #{mutable_block_forward.1} parent=108 // pred_fallthru
                _
              %p4376 = pneg %p4356
              // Predicated region
              $region132: #{mutable_block_forward.1} parent=108 // pred_check
                _
              $region133: #{mutable_block_forward.1} parent=108 // pred_check_branch
                %4378 = sbr.rel (%p4356) target = $region135
              $region134: #{mutable_block_forward.1} parent=108 // pred_region
                %s4379 = sand.u32 32, 7
              $region135: #{mutable_block_forward.1} parent=108 // pred_fallthru
                _
            $region109: #{mutable_block_forward.1} parent=105 // pred_fallthru
              _
            // Predicated region
            $region110: #{mutable_block_forward.1} parent=105 // pred_check
              %p4340 = pneg %p4336
            $region111: #{mutable_block_forward.1} parent=105 // pred_check_branch
              %4342 = sbr.rel (%p4340) target = $region113
            $region112: #{mutable_block_forward.1} parent=105 // pred_region
              %s4343 = sshll.u32 1, 32
              %s4344 = ssub.s32 %s4343, 1
              loop: start=0, step=1, limit=1
              $region114: #{mutable_block_forward.1} parent=112 // loop_pre_header
                _
              $region115: #{mutable_block_forward.1} parent=112 // loop_header
                %s4346 = sphi 0, %s4350
                %p4347 = scmp.ge.s32.totalorder %s4346, 1
                %s4351 = sphi [#allocation5], [#allocation5]
                %s4352 = sphi %s4334, %s4334
              $region116: #{mutable_block_forward.1} parent=112 // loop_header_branch
                %4349 = sbr.rel (%p4347) target = $region120
              $region117: #{mutable_block_forward.1} parent=112 // loop_body
                %v4353 = vld [vmem:[%s4351] sm:%s4344]
                %4354 = vst [vmem:[%s4352] sm:%s4344] %v4353
              $region118: #{mutable_block_forward.1} parent=112 // loop_footer
                %s4350 = sadd.s32 1, %s4346
              $region119: #{mutable_block_forward.1} parent=112 // loop_footer_branch
                %4345 = sbr.rel target = $region115
              $region120: #{mutable_block_forward.1} parent=112 // loop_exit
                _
            $region113: #{mutable_block_forward.1} parent=105 // pred_fallthru
              _
            // Predicated region
            $region136: #{mutable_block_forward.1} parent=105 // pred_check
              _
            $region137: #{mutable_block_forward.1} parent=105 // pred_check_branch
              %4382 = sbr.rel (0) target = $region139
            $region138: #{mutable_block_forward.1} parent=105 // pred_region
              %4383 = vsyncadd [#allocation28], 512
            $region139: #{mutable_block_forward.1} parent=105 // pred_fallthru
              _
            %s4384 = smul.u32 4, 1
            %s4385 = smul.u32 %s4384, 8
            %s4386 = smul.u32 %s4385, 1
            %s4387 = smul.u32 %s4386, 1
            %s4388 = sshll.u32 %s4387, 4
            %4389 = dma.done [#allocation28], %s4388
        $region95: #{mutable_block_forward.1} parent=47 // pred_fallthru
          _
      $region48: #{mutable_block_forward.1} parent=5 // pred_fallthru
        _
    $region6: #{mutable_block_forward.1} parent=1 // loop_footer
      %s22 = sadd.s32 1, %s18
    $region7: #{mutable_block_forward.1} parent=1 // loop_footer_branch
      %17 = sbr.rel target = $region3
    $region8: #{mutable_block_forward.1} parent=1 // loop_exit
      _
    %4390 = vsyncpa [#allocation11], 1
    %s4391 = scalar_lea.sflag [#allocation11], 1
    %4392 = vsyncpa %s4391, 1
    %4393 = vsyncpa [#allocation13], 1

</llo_original>
